<compile_context>
chip_gen: v6e
topology: v6e:2x2x1
jax: 0.10.0
libtpu: 0.0.40
codegen_flags: <defaults>
</compile_context>

<pallas_src>
import collections

import jax
import jax.numpy as jnp
import numpy as np
from jax.experimental import pallas as pl
from jax.experimental.pallas import tpu as pltpu

# ----------------------------- config ------------------------------------ #
BLOCKS = 2
LAYERS = 2                   # layers per block
RESIDUAL_CHANNELS = 8
DILATION_CHANNELS = 16
SKIP_CHANNELS = 8
QUANTIZATION_CHANNELS = 32
AUDIO_CHANNELS = 1           # kernel assumes audio_channels == 1, batch == 1
KERNEL_SIZE = 2
INPUT_LEN = 512              # divisible by every dilation used; spans 4 time tiles
T_TILE = 128                 # time tile (lanes); multiple of 128. Sweep larger for real audio.
CARRY = 128                  # carried history lanes per layer (>= max dilation, <= T_TILE)


def prime_factors(n):
    facs = collections.deque()
    d = 2
    while d * d <= n:
        while n % d == 0:
            facs.append(d)
            n //= d
        d += 1
    if n > 1:
        facs.append(n)
    return facs


def build_dilations(blocks, layers, input_len):
    """Replicates the dilation schedule built in FastWaveNet.__init__."""
    scope_mul = prime_factors(input_len)
    if layers is None or layers > len(scope_mul):
        layers = len(scope_mul)
    dils = []
    for _ in range(blocks):
        new_dilation = 1
        for _ in range(layers):
            dils.append(new_dilation)
            new_dilation *= scope_mul[0]
            scope_mul.rotate(-1)
    return dils, layers


# ----------------------------- kernel ------------------------------------ #
def make_wavenet_kernel(dilations, rc, dc, sc, qc, t_tile):
    """Fused forward kernel over one (…, t_tile) time tile.

    Inputs : x (1, t_tile), w0 (rc, 1), wgate (L, 2dc, 2rc), wrs (L, rc+sc, dc),
             wout (qc, sc), bout (qc, 1), wend (qc, qc)
    Output : (qc, t_tile)
    Scratch: carry (L, rc, CARRY) — last CARRY columns of each layer's input,
             carried across (sequential) time tiles.
    """
    hp = jax.lax.Precision.HIGHEST

    def kernel(x_ref, w0_ref, wgate_ref, wrs_ref, wout_ref, bout_ref, wend_ref,
               out_ref, carry_ref):
        f32 = jnp.float32

        # First time tile: zero the carried causal history (left zero-padding).
        @pl.when(pl.program_id(0) == 0)
        def _():
            carry_ref[...] = jnp.zeros_like(carry_ref)

        # conv0: 1x1 conv with a single input channel == VPU outer product.
        x = (w0_ref[...] * x_ref[...]).astype(f32)                  # (rc, T)

        skip = None
        for i, d in enumerate(dilations):        # static unroll (only 4 layers)
            hist = carry_ref[i]                  # (rc, CARRY) prev-tile tail of layer input
            # Causal shift-by-d across the tile boundary: xs[:, t] = x_in[:, t - d].
            xs = jnp.concatenate([hist[:, CARRY - d:], x[:, :t_tile - d]], axis=1)
            # Save this tile's tail as next tile's history (before x is overwritten).
            carry_ref[i] = x[:, t_tile - CARRY:]

            xcat = jnp.concatenate([x, xs], axis=0)                  # (2rc, T)
            # Fused filter+gate taps: one (2dc, 2rc) @ (2rc, T) MXU push.
            # Row layout of wgate: [wf1@x + wf0@xs ; wg1@x + wg0@xs].
            z = jnp.dot(wgate_ref[i], xcat, preferred_element_type=f32, precision=hp)
            h = jnp.tanh(z[:dc]) * jax.nn.sigmoid(z[dc:])            # (dc, T)

            # Fused residual + skip 1x1 convs: one (rc+sc, dc) @ (dc, T) push.
            rs = jnp.dot(wrs_ref[i], h, preferred_element_type=f32, precision=hp)
            x = rs[:rc] + x                      # residual connection
            # TODO(synk): source does `skip = s + skip` with `s` undefined
            # (NameError at runtime); implementing the clearly intended skip
            # accumulation (ss) instead.
            skip = rs[rc:] if skip is None else skip + rs[rc:]

        s = jnp.maximum(skip, 0.0)                                   # nl_out (ReLU)
        y = jnp.dot(wout_ref[...], s, preferred_element_type=f32, precision=hp)
        y = jnp.maximum(y + bout_ref[...], 0.0)                      # bias + nl_end (ReLU)
        out_ref[...] = jnp.dot(wend_ref[...], y, preferred_element_type=f32,
                               precision=hp).astype(out_ref.dtype)

    return kernel


# ------------------------- host-side weight packing ------------------------ #
def pack_params(params):
    """Pack the gate and residual/skip weights for the fused per-layer matmuls."""
    # Gate taps: [[wf1, wf0], [wg1, wg0]] -> (L, 2*dc, 2*rc); multiplies [x; xs].
    wgate = jnp.concatenate(
        [jnp.concatenate([params["wf1"], params["wf0"]], axis=2),
         jnp.concatenate([params["wg1"], params["wg0"]], axis=2)], axis=1)
    # Residual + skip 1x1 convs stacked: (L, rc+sc, dc).
    wrs = jnp.concatenate([params["wr"], params["ws"]], axis=1)
    return wgate, wrs


# ------------------------------ wrapper ------------------------------------ #
def fast_wavenet_forward(x_ncl, params, dilations, *, t_tile=T_TILE,
                         out_dtype=jnp.float32):
    b, ac, T = x_ncl.shape
    assert b == 1 and ac == AUDIO_CHANNELS == 1, "kernel assumes batch=1, audio_channels=1"
    rc = RESIDUAL_CHANNELS * ac
    dc = DILATION_CHANNELS * ac
    sc = SKIP_CHANNELS * ac
    qc = QUANTIZATION_CHANNELS * ac
    assert t_tile % 128 == 0 and CARRY <= t_tile and max(dilations) <= CARRY

    # Lane-dense time axis: zero-pad T up to a multiple of t_tile.  All convs are
    # causal, so right-padding never affects the first T output columns, and the
    # padded tail only exists in the final tile (never carried forward).
    Tp = ((T + t_tile - 1) // t_tile) * t_tile
    x = jnp.zeros((1, Tp), jnp.float32).at[0, :T].set(x_ncl[0, 0].astype(jnp.float32))

    wgate, wrs = pack_params(params)
    L = wgate.shape[0]
    n_tiles = Tp // t_tile

    # ~600 B of f32 intermediates per time column plus double-buffered I/O tiles;
    # cap at 64 MiB so the same setting stays legal on v7x (64 MiB VMEM / TC).
    vmem_limit = int(min(64 * 2**20, max(32 * 2**20, 2 * 2**20 + 1024 * t_tile)))

    kernel = make_wavenet_kernel(dilations, rc, dc, sc, qc, t_tile)
    out = pl.pallas_call(
        kernel,
        out_shape=jax.ShapeDtypeStruct((qc, Tp), out_dtype),
        grid=(n_tiles,),
        in_specs=[
            pl.BlockSpec((1, t_tile), lambda t: (0, t)),          # x     (streamed)
            pl.BlockSpec((rc, 1), lambda t: (0, 0)),              # w0    (resident)
            pl.BlockSpec((L, 2 * dc, 2 * rc), lambda t: (0, 0, 0)),  # wgate (resident)
            pl.BlockSpec((L, rc + sc, dc), lambda t: (0, 0, 0)),  # wrs   (resident)
            pl.BlockSpec((qc, sc), lambda t: (0, 0)),             # wout  (resident)
            pl.BlockSpec((qc, 1), lambda t: (0, 0)),              # bout  (resident)
            pl.BlockSpec((qc, qc), lambda t: (0, 0)),             # wend  (resident)
        ],
        out_specs=pl.BlockSpec((qc, t_tile), lambda t: (0, t)),
        scratch_shapes=[pltpu.VMEM((len(dilations), rc, CARRY), jnp.float32)],
        compiler_params=pltpu.CompilerParams(
            # Time axis carries causal state in scratch -> must run sequentially.
            dimension_semantics=("arbitrary",),
            vmem_limit_bytes=vmem_limit,
        ),
    )(x, params["w0"], wgate, wrs, params["wout"], params["bout"], params["wend"])

    # Back to PyTorch layout (batch, quantization_channels*audio_channels, T).
    return out[None, :, :T]


# -------------------------- params & reference ---------------------------- #
def init_params(key, n_layers):
    rc = RESIDUAL_CHANNELS * AUDIO_CHANNELS
    dc = DILATION_CHANNELS * AUDIO_CHANNELS
    sc = SKIP_CHANNELS * AUDIO_CHANNELS
    qc = QUANTIZATION_CHANNELS * AUDIO_CHANNELS
    ks = jax.random.split(key, 10)

    def init(k, shape, fan_in):
        return (jax.random.normal(k, shape, jnp.float32) / np.sqrt(fan_in)).astype(jnp.float32)

    L = n_layers
    return {
        "w0":   init(ks[0], (rc, AUDIO_CHANNELS), AUDIO_CHANNELS),   # conv0 (k=1, no bias)
        "wf0":  init(ks[1], (L, dc, rc), rc * KERNEL_SIZE),          # filter conv tap t-d
        "wf1":  init(ks[2], (L, dc, rc), rc * KERNEL_SIZE),          # filter conv tap t
        "wg0":  init(ks[3], (L, dc, rc), rc * KERNEL_SIZE),          # gate conv tap t-d
        "wg1":  init(ks[4], (L, dc, rc), rc * KERNEL_SIZE),          # gate conv tap t
        "wr":   init(ks[5], (L, rc, dc), dc),                        # residual 1x1
        "ws":   init(ks[6], (L, sc, dc), dc),                        # skip 1x1
        "wout": init(ks[7], (qc, sc), sc),                           # conv_out (bias=True)
        "bout": init(ks[8], (qc, 1), 1),
        "wend": init(ks[9], (qc, qc), qc),                           # conv_end (no bias)
    }


def reference_forward(x_ncl, params, dilations):
    """Pure-JAX reference with identical math (for correctness check)."""
    hp = jax.lax.Precision.HIGHEST
    x = jnp.dot(params["w0"], x_ncl[0].astype(jnp.float32), precision=hp)
    T = x.shape[1]
    skip = 0.0
    for i, d in enumerate(dilations):
        xs = jnp.pad(x, ((0, 0), (d, 0)))[:, :T]
        fil = jnp.tanh(jnp.dot(params["wf1"][i], x, precision=hp)
                       + jnp.dot(params["wf0"][i], xs, precision=hp))
        gate = jax.nn.sigmoid(jnp.dot(params["wg1"][i], x, precision=hp)
                              + jnp.dot(params["wg0"][i], xs, precision=hp))
        h = fil * gate
        skip = skip + jnp.dot(params["ws"][i], h, precision=hp)
        x = jnp.dot(params["wr"][i], h, precision=hp) + x
    s = jnp.maximum(skip, 0.0)
    y = jnp.dot(params["wout"], s, precision=hp) + params["bout"]
    y = jnp.maximum(y, 0.0)
    return jnp.dot(params["wend"], y, precision=hp)[None]


# ------------------------------- main ------------------------------------- #
if __name__ == "__main__":
    dilations, layers_per_block = build_dilations(BLOCKS, LAYERS, INPUT_LEN)
    n_layers = BLOCKS * layers_per_block     # -> 4 layers, dilations [1, 2, 1, 2]

    key = jax.random.PRNGKey(0)
    k_x, k_p = jax.random.split(key)
    params = init_params(k_p, n_layers)
    x = jax.random.normal(k_x, (1, AUDIO_CHANNELS, INPUT_LEN), jnp.float32)

    out = jax.block_until_ready(fast_wavenet_forward(x, params, dilations))
    assert out.shape == (1, QUANTIZATION_CHANNELS * AUDIO_CHANNELS, INPUT_LEN), out.shape

    ref = jax.block_until_ready(reference_forward(x, params, dilations))
    np.testing.assert_allclose(np.asarray(out), np.asarray(ref), rtol=2e-3, atol=2e-3)

    print("KERNEL_OK")
</pallas_src>

<mosaic_0001>
module attributes {stable_mosaic.version = 11 : i64} {
  func.func @kernel(%arg0: i32, %arg1: memref<1x128xf32, #tpu.memory_space<vmem>>, %arg2: memref<8x1xf32, #tpu.memory_space<vmem>>, %arg3: memref<4x32x16xf32, #tpu.memory_space<vmem>>, %arg4: memref<4x16x16xf32, #tpu.memory_space<vmem>>, %arg5: memref<32x8xf32, #tpu.memory_space<vmem>>, %arg6: memref<32x1xf32, #tpu.memory_space<vmem>>, %arg7: memref<32x32xf32, #tpu.memory_space<vmem>>, %arg8: memref<32x128xf32, #tpu.memory_space<vmem>>, %arg9: memref<4x8x128xf32, #tpu.memory_space<vmem>>) attributes {dimension_semantics = [#tpu.dimension_semantics<arbitrary>], iteration_bounds = array<i64: 4>, scalar_prefetch = 0 : i64, scratch_operands = 1 : i64, tpu.core_type = #tpu.core_type<tc>, window_params = [{transform_indices = @transform_0, window_bounds = array<i64: 1, 128>}, {pipeline_mode = #tpu.pipeline_mode<synchronous>, transform_indices = @transform_1, window_bounds = array<i64: 8, 1>}, {pipeline_mode = #tpu.pipeline_mode<synchronous>, transform_indices = @transform_2, window_bounds = array<i64: 4, 32, 16>}, {pipeline_mode = #tpu.pipeline_mode<synchronous>, transform_indices = @transform_3, window_bounds = array<i64: 4, 16, 16>}, {pipeline_mode = #tpu.pipeline_mode<synchronous>, transform_indices = @transform_4, window_bounds = array<i64: 32, 8>}, {pipeline_mode = #tpu.pipeline_mode<synchronous>, transform_indices = @transform_5, window_bounds = array<i64: 32, 1>}, {pipeline_mode = #tpu.pipeline_mode<synchronous>, transform_indices = @transform_6, window_bounds = array<i64: 32, 32>}, {transform_indices = @transform_7, window_bounds = array<i64: 32, 128>}]} {
    %c0_i32 = arith.constant 0 : i32
    %0 = arith.cmpi eq, %arg0, %c0_i32 : i32
    %1 = arith.extui %0 : i1 to i32
    %c0_i32_0 = arith.constant 0 : i32
    %2 = arith.cmpi ne, %1, %c0_i32_0 : i32
    scf.if %2 {
      %cst_72 = arith.constant 0.000000e+00 : f32
      %129 = vector.broadcast %cst_72 : f32 to vector<4x8x128xf32>
      %c0_73 = arith.constant 0 : index
      %c0_74 = arith.constant 0 : index
      %c0_75 = arith.constant 0 : index
      %130 = vector.load %arg9[%c0_73, %c0_74, %c0_75] : memref<4x8x128xf32, #tpu.memory_space<vmem>>, vector<4x8x128xf32>
      tpu.vector_store %arg9[%c0_73, %c0_74, %c0_75], %129 {strides = array<i32>} : memref<4x8x128xf32, #tpu.memory_space<vmem>>, vector<4x8x128xf32>,
    } else {
    }
    %c0 = arith.constant 0 : index
    %c0_1 = arith.constant 0 : index
    %3 = vector.load %arg2[%c0, %c0_1] : memref<8x1xf32, #tpu.memory_space<vmem>>, vector<8x1xf32>
    %c0_2 = arith.constant 0 : index
    %c0_3 = arith.constant 0 : index
    %4 = vector.load %arg1[%c0_2, %c0_3] : memref<1x128xf32, #tpu.memory_space<vmem>>, vector<1x128xf32>
    %5 = vector.broadcast %3 : vector<8x1xf32> to vector<8x128xf32>
    %6 = vector.broadcast %4 : vector<1x128xf32> to vector<8x128xf32>
    %7 = arith.mulf %5, %6 : vector<8x128xf32>
    %c0_4 = arith.constant 0 : index
    %c0_5 = arith.constant 0 : index
    %c0_6 = arith.constant 0 : index
    %8 = vector.load %arg9[%c0_4, %c0_5, %c0_6] : memref<4x8x128xf32, #tpu.memory_space<vmem>>, vector<1x8x128xf32>
    %9 = vector.shape_cast %8 : vector<1x8x128xf32> to vector<8x128xf32>
    %10 = vector.extract_strided_slice %9 {offsets = [0, 127], sizes = [8, 1], strides = [1, 1]} : vector<8x128xf32> to vector<8x1xf32>
    %11 = vector.extract_strided_slice %7 {offsets = [0, 0], sizes = [8, 127], strides = [1, 1]} : vector<8x128xf32> to vector<8x127xf32>
    %12 = tpu.concatenate %10, %11 in 1 : vector<8x1xf32>, vector<8x127xf32> -> vector<8x128xf32>
    %c0_7 = arith.constant 0 : index
    %c0_8 = arith.constant 0 : index
    %c0_9 = arith.constant 0 : index
    %13 = vector.load %arg9[%c0_7, %c0_8, %c0_9] : memref<4x8x128xf32, #tpu.memory_space<vmem>>, vector<1x8x128xf32>
    %14 = vector.shape_cast %13 : vector<1x8x128xf32> to vector<8x128xf32>
    %15 = vector.shape_cast %7 : vector<8x128xf32> to vector<1x8x128xf32>
    tpu.vector_store %arg9[%c0_7, %c0_8, %c0_9], %15 {strides = array<i32>} : memref<4x8x128xf32, #tpu.memory_space<vmem>>, vector<1x8x128xf32>,
    %16 = tpu.concatenate %7, %12 in 0 : vector<8x128xf32>, vector<8x128xf32> -> vector<16x128xf32>
    %c0_10 = arith.constant 0 : index
    %c0_11 = arith.constant 0 : index
    %c0_12 = arith.constant 0 : index
    %17 = vector.load %arg3[%c0_10, %c0_11, %c0_12] : memref<4x32x16xf32, #tpu.memory_space<vmem>>, vector<1x32x16xf32>
    %18 = vector.shape_cast %17 : vector<1x32x16xf32> to vector<32x16xf32>
    %cst = arith.constant dense<0.000000e+00> : vector<32x128xf32>
    %19 = tpu.matmul %18, %16, %cst {dimension_numbers = #tpu.dot_dimension_numbers<[1], [0], [0], [1], [0, 0, 1, 1], [], []>, precision = #tpu.contract_precision<fp32>} : vector<32x16xf32>, vector<16x128xf32>, vector<32x128xf32> -> vector<32x128xf32>
    %20 = vector.extract_strided_slice %19 {offsets = [0, 0], sizes = [16, 128], strides = [1, 1]} : vector<32x128xf32> to vector<16x128xf32>
    %21 = math.tanh %20 : vector<16x128xf32>
    %22 = vector.extract_strided_slice %19 {offsets = [16, 0], sizes = [16, 128], strides = [1, 1]} : vector<32x128xf32> to vector<16x128xf32>
    %23 = arith.negf %22 : vector<16x128xf32>
    %24 = math.exp %23 : vector<16x128xf32>
    %cst_13 = arith.constant 1.000000e+00 : f32
    %25 = vector.broadcast %cst_13 : f32 to vector<16x128xf32>
    %26 = arith.addf %25, %24 : vector<16x128xf32>
    %27 = arith.divf %25, %26 : vector<16x128xf32>
    %28 = arith.mulf %21, %27 : vector<16x128xf32>
    %c0_14 = arith.constant 0 : index
    %c0_15 = arith.constant 0 : index
    %c0_16 = arith.constant 0 : index
    %29 = vector.load %arg4[%c0_14, %c0_15, %c0_16] : memref<4x16x16xf32, #tpu.memory_space<vmem>>, vector<1x16x16xf32>
    %30 = vector.shape_cast %29 : vector<1x16x16xf32> to vector<16x16xf32>
    %cst_17 = arith.constant dense<0.000000e+00> : vector<16x128xf32>
    %31 = tpu.matmul %30, %28, %cst_17 {dimension_numbers = #tpu.dot_dimension_numbers<[1], [0], [0], [1], [0, 0, 1, 1], [], []>, precision = #tpu.contract_precision<fp32>} : vector<16x16xf32>, vector<16x128xf32>, vector<16x128xf32> -> vector<16x128xf32>
    %32 = vector.extract_strided_slice %31 {offsets = [0, 0], sizes = [8, 128], strides = [1, 1]} : vector<16x128xf32> to vector<8x128xf32>
    %33 = arith.addf %32, %7 : vector<8x128xf32>
    %34 = vector.extract_strided_slice %31 {offsets = [8, 0], sizes = [8, 128], strides = [1, 1]} : vector<16x128xf32> to vector<8x128xf32>
    %c1 = arith.constant 1 : index
    %c0_18 = arith.constant 0 : index
    %c0_19 = arith.constant 0 : index
    %35 = vector.load %arg9[%c1, %c0_18, %c0_19] : memref<4x8x128xf32, #tpu.memory_space<vmem>>, vector<1x8x128xf32>
    %36 = vector.shape_cast %35 : vector<1x8x128xf32> to vector<8x128xf32>
    %37 = vector.extract_strided_slice %36 {offsets = [0, 126], sizes = [8, 2], strides = [1, 1]} : vector<8x128xf32> to vector<8x2xf32>
    %38 = vector.extract_strided_slice %33 {offsets = [0, 0], sizes = [8, 126], strides = [1, 1]} : vector<8x128xf32> to vector<8x126xf32>
    %39 = tpu.concatenate %37, %38 in 1 : vector<8x2xf32>, vector<8x126xf32> -> vector<8x128xf32>
    %c1_20 = arith.constant 1 : index
    %c0_21 = arith.constant 0 : index
    %c0_22 = arith.constant 0 : index
    %40 = vector.load %arg9[%c1_20, %c0_21, %c0_22] : memref<4x8x128xf32, #tpu.memory_space<vmem>>, vector<1x8x128xf32>
    %41 = vector.shape_cast %40 : vector<1x8x128xf32> to vector<8x128xf32>
    %42 = vector.shape_cast %33 : vector<8x128xf32> to vector<1x8x128xf32>
    tpu.vector_store %arg9[%c1_20, %c0_21, %c0_22], %42 {strides = array<i32>} : memref<4x8x128xf32, #tpu.memory_space<vmem>>, vector<1x8x128xf32>,
    %43 = tpu.concatenate %33, %39 in 0 : vector<8x128xf32>, vector<8x128xf32> -> vector<16x128xf32>
    %c1_23 = arith.constant 1 : index
    %c0_24 = arith.constant 0 : index
    %c0_25 = arith.constant 0 : index
    %44 = vector.load %arg3[%c1_23, %c0_24, %c0_25] : memref<4x32x16xf32, #tpu.memory_space<vmem>>, vector<1x32x16xf32>
    %45 = vector.shape_cast %44 : vector<1x32x16xf32> to vector<32x16xf32>
    %cst_26 = arith.constant dense<0.000000e+00> : vector<32x128xf32>
    %46 = tpu.matmul %45, %43, %cst_26 {dimension_numbers = #tpu.dot_dimension_numbers<[1], [0], [0], [1], [0, 0, 1, 1], [], []>, precision = #tpu.contract_precision<fp32>} : vector<32x16xf32>, vector<16x128xf32>, vector<32x128xf32> -> vector<32x128xf32>
    %47 = vector.extract_strided_slice %46 {offsets = [0, 0], sizes = [16, 128], strides = [1, 1]} : vector<32x128xf32> to vector<16x128xf32>
    %48 = math.tanh %47 : vector<16x128xf32>
    %49 = vector.extract_strided_slice %46 {offsets = [16, 0], sizes = [16, 128], strides = [1, 1]} : vector<32x128xf32> to vector<16x128xf32>
    %50 = arith.negf %49 : vector<16x128xf32>
    %51 = math.exp %50 : vector<16x128xf32>
    %cst_27 = arith.constant 1.000000e+00 : f32
    %52 = vector.broadcast %cst_27 : f32 to vector<16x128xf32>
    %53 = arith.addf %52, %51 : vector<16x128xf32>
    %54 = arith.divf %52, %53 : vector<16x128xf32>
    %55 = arith.mulf %48, %54 : vector<16x128xf32>
    %c1_28 = arith.constant 1 : index
    %c0_29 = arith.constant 0 : index
    %c0_30 = arith.constant 0 : index
    %56 = vector.load %arg4[%c1_28, %c0_29, %c0_30] : memref<4x16x16xf32, #tpu.memory_space<vmem>>, vector<1x16x16xf32>
    %57 = vector.shape_cast %56 : vector<1x16x16xf32> to vector<16x16xf32>
    %cst_31 = arith.constant dense<0.000000e+00> : vector<16x128xf32>
    %58 = tpu.matmul %57, %55, %cst_31 {dimension_numbers = #tpu.dot_dimension_numbers<[1], [0], [0], [1], [0, 0, 1, 1], [], []>, precision = #tpu.contract_precision<fp32>} : vector<16x16xf32>, vector<16x128xf32>, vector<16x128xf32> -> vector<16x128xf32>
    %59 = vector.extract_strided_slice %58 {offsets = [0, 0], sizes = [8, 128], strides = [1, 1]} : vector<16x128xf32> to vector<8x128xf32>
    %60 = arith.addf %59, %33 : vector<8x128xf32>
    %61 = vector.extract_strided_slice %58 {offsets = [8, 0], sizes = [8, 128], strides = [1, 1]} : vector<16x128xf32> to vector<8x128xf32>
    %62 = arith.addf %34, %61 : vector<8x128xf32>
    %c2 = arith.constant 2 : index
    %c0_32 = arith.constant 0 : index
    %c0_33 = arith.constant 0 : index
    %63 = vector.load %arg9[%c2, %c0_32, %c0_33] : memref<4x8x128xf32, #tpu.memory_space<vmem>>, vector<1x8x128xf32>
    %64 = vector.shape_cast %63 : vector<1x8x128xf32> to vector<8x128xf32>
    %65 = vector.extract_strided_slice %64 {offsets = [0, 127], sizes = [8, 1], strides = [1, 1]} : vector<8x128xf32> to vector<8x1xf32>
    %66 = vector.extract_strided_slice %60 {offsets = [0, 0], sizes = [8, 127], strides = [1, 1]} : vector<8x128xf32> to vector<8x127xf32>
    %67 = tpu.concatenate %65, %66 in 1 : vector<8x1xf32>, vector<8x127xf32> -> vector<8x128xf32>
    %c2_34 = arith.constant 2 : index
    %c0_35 = arith.constant 0 : index
    %c0_36 = arith.constant 0 : index
    %68 = vector.load %arg9[%c2_34, %c0_35, %c0_36] : memref<4x8x128xf32, #tpu.memory_space<vmem>>, vector<1x8x128xf32>
    %69 = vector.shape_cast %68 : vector<1x8x128xf32> to vector<8x128xf32>
    %70 = vector.shape_cast %60 : vector<8x128xf32> to vector<1x8x128xf32>
    tpu.vector_store %arg9[%c2_34, %c0_35, %c0_36], %70 {strides = array<i32>} : memref<4x8x128xf32, #tpu.memory_space<vmem>>, vector<1x8x128xf32>,
    %71 = tpu.concatenate %60, %67 in 0 : vector<8x128xf32>, vector<8x128xf32> -> vector<16x128xf32>
    %c2_37 = arith.constant 2 : index
    %c0_38 = arith.constant 0 : index
    %c0_39 = arith.constant 0 : index
    %72 = vector.load %arg3[%c2_37, %c0_38, %c0_39] : memref<4x32x16xf32, #tpu.memory_space<vmem>>, vector<1x32x16xf32>
    %73 = vector.shape_cast %72 : vector<1x32x16xf32> to vector<32x16xf32>
    %cst_40 = arith.constant dense<0.000000e+00> : vector<32x128xf32>
    %74 = tpu.matmul %73, %71, %cst_40 {dimension_numbers = #tpu.dot_dimension_numbers<[1], [0], [0], [1], [0, 0, 1, 1], [], []>, precision = #tpu.contract_precision<fp32>} : vector<32x16xf32>, vector<16x128xf32>, vector<32x128xf32> -> vector<32x128xf32>
    %75 = vector.extract_strided_slice %74 {offsets = [0, 0], sizes = [16, 128], strides = [1, 1]} : vector<32x128xf32> to vector<16x128xf32>
    %76 = math.tanh %75 : vector<16x128xf32>
    %77 = vector.extract_strided_slice %74 {offsets = [16, 0], sizes = [16, 128], strides = [1, 1]} : vector<32x128xf32> to vector<16x128xf32>
    %78 = arith.negf %77 : vector<16x128xf32>
    %79 = math.exp %78 : vector<16x128xf32>
    %cst_41 = arith.constant 1.000000e+00 : f32
    %80 = vector.broadcast %cst_41 : f32 to vector<16x128xf32>
    %81 = arith.addf %80, %79 : vector<16x128xf32>
    %82 = arith.divf %80, %81 : vector<16x128xf32>
    %83 = arith.mulf %76, %82 : vector<16x128xf32>
    %c2_42 = arith.constant 2 : index
    %c0_43 = arith.constant 0 : index
    %c0_44 = arith.constant 0 : index
    %84 = vector.load %arg4[%c2_42, %c0_43, %c0_44] : memref<4x16x16xf32, #tpu.memory_space<vmem>>, vector<1x16x16xf32>
    %85 = vector.shape_cast %84 : vector<1x16x16xf32> to vector<16x16xf32>
    %cst_45 = arith.constant dense<0.000000e+00> : vector<16x128xf32>
    %86 = tpu.matmul %85, %83, %cst_45 {dimension_numbers = #tpu.dot_dimension_numbers<[1], [0], [0], [1], [0, 0, 1, 1], [], []>, precision = #tpu.contract_precision<fp32>} : vector<16x16xf32>, vector<16x128xf32>, vector<16x128xf32> -> vector<16x128xf32>
    %87 = vector.extract_strided_slice %86 {offsets = [0, 0], sizes = [8, 128], strides = [1, 1]} : vector<16x128xf32> to vector<8x128xf32>
    %88 = arith.addf %87, %60 : vector<8x128xf32>
    %89 = vector.extract_strided_slice %86 {offsets = [8, 0], sizes = [8, 128], strides = [1, 1]} : vector<16x128xf32> to vector<8x128xf32>
    %90 = arith.addf %62, %89 : vector<8x128xf32>
    %c3 = arith.constant 3 : index
    %c0_46 = arith.constant 0 : index
    %c0_47 = arith.constant 0 : index
    %91 = vector.load %arg9[%c3, %c0_46, %c0_47] : memref<4x8x128xf32, #tpu.memory_space<vmem>>, vector<1x8x128xf32>
    %92 = vector.shape_cast %91 : vector<1x8x128xf32> to vector<8x128xf32>
    %93 = vector.extract_strided_slice %92 {offsets = [0, 126], sizes = [8, 2], strides = [1, 1]} : vector<8x128xf32> to vector<8x2xf32>
    %94 = vector.extract_strided_slice %88 {offsets = [0, 0], sizes = [8, 126], strides = [1, 1]} : vector<8x128xf32> to vector<8x126xf32>
    %95 = tpu.concatenate %93, %94 in 1 : vector<8x2xf32>, vector<8x126xf32> -> vector<8x128xf32>
    %c3_48 = arith.constant 3 : index
    %c0_49 = arith.constant 0 : index
    %c0_50 = arith.constant 0 : index
    %96 = vector.load %arg9[%c3_48, %c0_49, %c0_50] : memref<4x8x128xf32, #tpu.memory_space<vmem>>, vector<1x8x128xf32>
    %97 = vector.shape_cast %96 : vector<1x8x128xf32> to vector<8x128xf32>
    %98 = vector.shape_cast %88 : vector<8x128xf32> to vector<1x8x128xf32>
    tpu.vector_store %arg9[%c3_48, %c0_49, %c0_50], %98 {strides = array<i32>} : memref<4x8x128xf32, #tpu.memory_space<vmem>>, vector<1x8x128xf32>,
    %99 = tpu.concatenate %88, %95 in 0 : vector<8x128xf32>, vector<8x128xf32> -> vector<16x128xf32>
    %c3_51 = arith.constant 3 : index
    %c0_52 = arith.constant 0 : index
    %c0_53 = arith.constant 0 : index
    %100 = vector.load %arg3[%c3_51, %c0_52, %c0_53] : memref<4x32x16xf32, #tpu.memory_space<vmem>>, vector<1x32x16xf32>
    %101 = vector.shape_cast %100 : vector<1x32x16xf32> to vector<32x16xf32>
    %cst_54 = arith.constant dense<0.000000e+00> : vector<32x128xf32>
    %102 = tpu.matmul %101, %99, %cst_54 {dimension_numbers = #tpu.dot_dimension_numbers<[1], [0], [0], [1], [0, 0, 1, 1], [], []>, precision = #tpu.contract_precision<fp32>} : vector<32x16xf32>, vector<16x128xf32>, vector<32x128xf32> -> vector<32x128xf32>
    %103 = vector.extract_strided_slice %102 {offsets = [0, 0], sizes = [16, 128], strides = [1, 1]} : vector<32x128xf32> to vector<16x128xf32>
    %104 = math.tanh %103 : vector<16x128xf32>
    %105 = vector.extract_strided_slice %102 {offsets = [16, 0], sizes = [16, 128], strides = [1, 1]} : vector<32x128xf32> to vector<16x128xf32>
    %106 = arith.negf %105 : vector<16x128xf32>
    %107 = math.exp %106 : vector<16x128xf32>
    %cst_55 = arith.constant 1.000000e+00 : f32
    %108 = vector.broadcast %cst_55 : f32 to vector<16x128xf32>
    %109 = arith.addf %108, %107 : vector<16x128xf32>
    %110 = arith.divf %108, %109 : vector<16x128xf32>
    %111 = arith.mulf %104, %110 : vector<16x128xf32>
    %c3_56 = arith.constant 3 : index
    %c0_57 = arith.constant 0 : index
    %c0_58 = arith.constant 0 : index
    %112 = vector.load %arg4[%c3_56, %c0_57, %c0_58] : memref<4x16x16xf32, #tpu.memory_space<vmem>>, vector<1x16x16xf32>
    %113 = vector.shape_cast %112 : vector<1x16x16xf32> to vector<16x16xf32>
    %cst_59 = arith.constant dense<0.000000e+00> : vector<16x128xf32>
    %114 = tpu.matmul %113, %111, %cst_59 {dimension_numbers = #tpu.dot_dimension_numbers<[1], [0], [0], [1], [0, 0, 1, 1], [], []>, precision = #tpu.contract_precision<fp32>} : vector<16x16xf32>, vector<16x128xf32>, vector<16x128xf32> -> vector<16x128xf32>
    %115 = vector.extract_strided_slice %114 {offsets = [8, 0], sizes = [8, 128], strides = [1, 1]} : vector<16x128xf32> to vector<8x128xf32>
    %116 = arith.addf %90, %115 : vector<8x128xf32>
    %cst_60 = arith.constant 0.000000e+00 : f32
    %117 = vector.broadcast %cst_60 : f32 to vector<8x128xf32>
    %118 = arith.maximumf %116, %117 : vector<8x128xf32>
    %c0_61 = arith.constant 0 : index
    %c0_62 = arith.constant 0 : index
    %119 = vector.load %arg5[%c0_61, %c0_62] : memref<32x8xf32, #tpu.memory_space<vmem>>, vector<32x8xf32>
    %cst_63 = arith.constant dense<0.000000e+00> : vector<32x128xf32>
    %120 = tpu.matmul %119, %118, %cst_63 {dimension_numbers = #tpu.dot_dimension_numbers<[1], [0], [0], [1], [0, 0, 1, 1], [], []>, precision = #tpu.contract_precision<fp32>} : vector<32x8xf32>, vector<8x128xf32>, vector<32x128xf32> -> vector<32x128xf32>
    %c0_64 = arith.constant 0 : index
    %c0_65 = arith.constant 0 : index
    %121 = vector.load %arg6[%c0_64, %c0_65] : memref<32x1xf32, #tpu.memory_space<vmem>>, vector<32x1xf32>
    %122 = vector.broadcast %121 : vector<32x1xf32> to vector<32x128xf32>
    %123 = arith.addf %120, %122 : vector<32x128xf32>
    %cst_66 = arith.constant 0.000000e+00 : f32
    %124 = vector.broadcast %cst_66 : f32 to vector<32x128xf32>
    %125 = arith.maximumf %123, %124 : vector<32x128xf32>
    %c0_67 = arith.constant 0 : index
    %c0_68 = arith.constant 0 : index
    %126 = vector.load %arg7[%c0_67, %c0_68] : memref<32x32xf32, #tpu.memory_space<vmem>>, vector<32x32xf32>
    %cst_69 = arith.constant dense<0.000000e+00> : vector<32x128xf32>
    %127 = tpu.matmul %126, %125, %cst_69 {dimension_numbers = #tpu.dot_dimension_numbers<[1], [0], [0], [1], [0, 0, 1, 1], [], []>, precision = #tpu.contract_precision<fp32>} : vector<32x32xf32>, vector<32x128xf32>, vector<32x128xf32> -> vector<32x128xf32>
    %c0_70 = arith.constant 0 : index
    %c0_71 = arith.constant 0 : index
    %128 = vector.load %arg8[%c0_70, %c0_71] : memref<32x128xf32, #tpu.memory_space<vmem>>, vector<32x128xf32>
    tpu.vector_store %arg8[%c0_70, %c0_71], %127 {strides = array<i32>} : memref<32x128xf32, #tpu.memory_space<vmem>>, vector<32x128xf32>,
    return
  }
  func.func @transform_0(%arg0: i32) -> (i32, i32) {
    %c0_i32 = arith.constant 0 : i32
    %c0_i32_0 = arith.constant 0 : i32
    return %c0_i32, %arg0 : i32, i32
  }
  func.func @transform_1(%arg0: i32) -> (i32, i32) {
    %c0_i32 = arith.constant 0 : i32
    %c0_i32_0 = arith.constant 0 : i32
    %c0_i32_1 = arith.constant 0 : i32
    return %c0_i32, %c0_i32_0 : i32, i32
  }
  func.func @transform_2(%arg0: i32) -> (i32, i32, i32) {
    %c0_i32 = arith.constant 0 : i32
    %c0_i32_0 = arith.constant 0 : i32
    %c0_i32_1 = arith.constant 0 : i32
    %c0_i32_2 = arith.constant 0 : i32
    return %c0_i32, %c0_i32_0, %c0_i32_1 : i32, i32, i32
  }
  func.func @transform_3(%arg0: i32) -> (i32, i32, i32) {
    %c0_i32 = arith.constant 0 : i32
    %c0_i32_0 = arith.constant 0 : i32
    %c0_i32_1 = arith.constant 0 : i32
    %c0_i32_2 = arith.constant 0 : i32
    return %c0_i32, %c0_i32_0, %c0_i32_1 : i32, i32, i32
  }
  func.func @transform_4(%arg0: i32) -> (i32, i32) {
    %c0_i32 = arith.constant 0 : i32
    %c0_i32_0 = arith.constant 0 : i32
    %c0_i32_1 = arith.constant 0 : i32
    return %c0_i32, %c0_i32_0 : i32, i32
  }
  func.func @transform_5(%arg0: i32) -> (i32, i32) {
    %c0_i32 = arith.constant 0 : i32
    %c0_i32_0 = arith.constant 0 : i32
    %c0_i32_1 = arith.constant 0 : i32
    return %c0_i32, %c0_i32_0 : i32, i32
  }
  func.func @transform_6(%arg0: i32) -> (i32, i32) {
    %c0_i32 = arith.constant 0 : i32
    %c0_i32_0 = arith.constant 0 : i32
    %c0_i32_1 = arith.constant 0 : i32
    return %c0_i32, %c0_i32_0 : i32, i32
  }
  func.func @transform_7(%arg0: i32) -> (i32, i32) {
    %c0_i32 = arith.constant 0 : i32
    %c0_i32_0 = arith.constant 0 : i32
    return %c0_i32, %arg0 : i32, i32
  }
}

</mosaic_0001>

<llo_original>
// kernel: tpu_custom_call.1
$region0: #{tpu_custom_call.1}
  #allocation0 [shape = 'u32[]', space=smem, size = 0x4, offset = 0x4, fixed_abs, tag = 'smem constant byte address 0x4 - core index']
  #allocation1 [shape = 'u32[144,128]{1,0:T(1,128)}', space=vmem, size = 0x12000, scoped, tag = 'internal scratch']
  #allocation2 [shape = 'f32[4,8,128]{2,1,0:T(8,128)}', space=vmem, size = 0x4000, scoped, tag = 'scratch operand']
  %s0 = inlined_call_operand.vmem [shape: f32[1,512], index: 0, kind: input, shape index: {}]
  %s1 = inlined_call_operand.vmem [shape: f32[8,1], index: 1, kind: input, shape index: {}]
  %s2 = inlined_call_operand.vmem [shape: f32[4,32,16], index: 2, kind: input, shape index: {}]
  %s3 = inlined_call_operand.vmem [shape: f32[4,16,16], index: 3, kind: input, shape index: {}]
  %s4 = inlined_call_operand.vmem [shape: f32[32,8], index: 4, kind: input, shape index: {}]
  %s5 = inlined_call_operand.vmem [shape: f32[32,1], index: 5, kind: input, shape index: {}]
  %s6 = inlined_call_operand.vmem [shape: f32[32,32], index: 6, kind: input, shape index: {}]
  %s7 = inlined_call_operand.hbm [shape: f32[32,512], index: 7, kind: output, shape index: {}]
  %s8 = sld [smem:[#allocation0]]
  $region65: #{tpu_custom_call.1} parent=0
    _
  %s10 = ssub.s32 1, %s8
  %s11 = scalar_select 0, %s10, %s8
  $region1: #{tpu_custom_call.1} parent=0
    #allocation3 [shape = 'u8[32768]{0}', space=vmem, size = 0x8000, scoped, tag = 'output window, operand 0']
    #allocation4 [shape = 's32[2]{0}', space=sflag, size = 0x8, scoped, tag = 'scoped memory for tpu_custom_call.1']
    %12 = vsyncpa [#allocation4], 0
    %s13 = scalar_lea.sflag [#allocation4], 1
    %14 = vsyncpa %s13, 0
    loop: start=0, step=1, limit=6
    $region2: #{tpu_custom_call.1} parent=1 // loop_pre_header
      _
    $region3: #{tpu_custom_call.1} parent=1 // loop_header
      %s16 = sphi 0, %s20
      %p17 = scmp.ge.s32.totalorder %s16, 6
      %s26 = sphi 0, %s28
      %s29 = sphi 0, %s26
      %s30 = sphi 0, %s29
      %s46 = sphi 0, %s30
      %s50 = sphi 0, %s50
      %s52 = sphi 0, %s50
      %s53 = sphi 0, %s52
      %s67 = sphi 0, %s53
      %s71 = sphi 0, %s71
      %s73 = sphi 0, %s71
      %s74 = sphi 0, %s73
      %s88 = sphi 0, %s74
      %s92 = sphi 0, %s92
      %s94 = sphi 0, %s92
      %s95 = sphi 0, %s94
      %s109 = sphi 0, %s95
      %s113 = sphi 0, %s113
      %s115 = sphi 0, %s113
      %s116 = sphi 0, %s115
      %s130 = sphi 0, %s116
      %s134 = sphi 0, %s134
      %s136 = sphi 0, %s134
      %s137 = sphi 0, %s136
      %s151 = sphi 0, %s137
      %s155 = sphi 0, %s155
      %s157 = sphi 0, %s155
      %s158 = sphi 0, %s157
      %s172 = sphi 0, %s158
      %s178 = sphi 0, %s180
      %s181 = sphi 0, %s178
      %s182 = sphi 0, %s181
      %s198 = sphi 0, %s182
    $region4: #{tpu_custom_call.1} parent=1 // loop_header_branch
      %19 = sbr.rel (%p17) target = $region8
    $region5: #{tpu_custom_call.1} parent=1 // loop_body
      %s21 = ssub.s32 %s16, 1
      %s22 = ssub.s32 %s16, 2
      %s23 = sadd.s32 %s16, 1
      %s24 = ssub.s32 %s16, %s23
      %p25 = scmp.eq.s32.totalorder %s24, 0
      %s27 = sadd.s32 %s26, 1
      %s28 = scalar_select %p25, %s26, %s27
      %p31 = pneg %p25
      %p32 = scmp.eq.s32.totalorder %s16, 3
      %p33 = por %p31, %p32
      %p34 = scmp.ne.s32.totalorder %s26, %s29
      %p35 = scmp.eq.s32.totalorder %s16, 0
      %p36 = por %p34, %p35
      %p37 = scmp.ne.s32.totalorder %s26, %s29
      %p38 = scmp.eq.s32.totalorder %s21, 3
      %p39 = por %p37, %p38
      %p40 = scmp.ne.s32.totalorder %s29, %s30
      %p41 = scmp.eq.s32.totalorder %s21, 0
      %p42 = por %p40, %p41
      %p43 = scmp.ne.s32.totalorder %s29, %s30
      %p44 = scmp.eq.s32.totalorder %s22, 3
      %p45 = por %p43, %p44
      %p47 = scmp.ne.s32.totalorder %s30, %s46
      %p48 = scmp.eq.s32.totalorder %s22, 0
      %p49 = por %p47, %p48
      %s51 = sadd.s32 %s50, 1
      %p54 = scmp.eq.s32.totalorder %s16, 3
      %p55 = scmp.ne.s32.totalorder %s50, %s52
      %p56 = scmp.eq.s32.totalorder %s16, 0
      %p57 = por %p55, %p56
      %p58 = scmp.ne.s32.totalorder %s50, %s52
      %p59 = scmp.eq.s32.totalorder %s21, 3
      %p60 = por %p58, %p59
      %p61 = scmp.ne.s32.totalorder %s52, %s53
      %p62 = scmp.eq.s32.totalorder %s21, 0
      %p63 = por %p61, %p62
      %p64 = scmp.ne.s32.totalorder %s52, %s53
      %p65 = scmp.eq.s32.totalorder %s22, 3
      %p66 = por %p64, %p65
      %p68 = scmp.ne.s32.totalorder %s53, %s67
      %p69 = scmp.eq.s32.totalorder %s22, 0
      %p70 = por %p68, %p69
      %s72 = sadd.s32 %s71, 1
      %p75 = scmp.eq.s32.totalorder %s16, 3
      %p76 = scmp.ne.s32.totalorder %s71, %s73
      %p77 = scmp.eq.s32.totalorder %s16, 0
      %p78 = por %p76, %p77
      %p79 = scmp.ne.s32.totalorder %s71, %s73
      %p80 = scmp.eq.s32.totalorder %s21, 3
      %p81 = por %p79, %p80
      %p82 = scmp.ne.s32.totalorder %s73, %s74
      %p83 = scmp.eq.s32.totalorder %s21, 0
      %p84 = por %p82, %p83
      %p85 = scmp.ne.s32.totalorder %s73, %s74
      %p86 = scmp.eq.s32.totalorder %s22, 3
      %p87 = por %p85, %p86
      %p89 = scmp.ne.s32.totalorder %s74, %s88
      %p90 = scmp.eq.s32.totalorder %s22, 0
      %p91 = por %p89, %p90
      %s93 = sadd.s32 %s92, 1
      %p96 = scmp.eq.s32.totalorder %s16, 3
      %p97 = scmp.ne.s32.totalorder %s92, %s94
      %p98 = scmp.eq.s32.totalorder %s16, 0
      %p99 = por %p97, %p98
      %p100 = scmp.ne.s32.totalorder %s92, %s94
      %p101 = scmp.eq.s32.totalorder %s21, 3
      %p102 = por %p100, %p101
      %p103 = scmp.ne.s32.totalorder %s94, %s95
      %p104 = scmp.eq.s32.totalorder %s21, 0
      %p105 = por %p103, %p104
      %p106 = scmp.ne.s32.totalorder %s94, %s95
      %p107 = scmp.eq.s32.totalorder %s22, 3
      %p108 = por %p106, %p107
      %p110 = scmp.ne.s32.totalorder %s95, %s109
      %p111 = scmp.eq.s32.totalorder %s22, 0
      %p112 = por %p110, %p111
      %s114 = sadd.s32 %s113, 1
      %p117 = scmp.eq.s32.totalorder %s16, 3
      %p118 = scmp.ne.s32.totalorder %s113, %s115
      %p119 = scmp.eq.s32.totalorder %s16, 0
      %p120 = por %p118, %p119
      %p121 = scmp.ne.s32.totalorder %s113, %s115
      %p122 = scmp.eq.s32.totalorder %s21, 3
      %p123 = por %p121, %p122
      %p124 = scmp.ne.s32.totalorder %s115, %s116
      %p125 = scmp.eq.s32.totalorder %s21, 0
      %p126 = por %p124, %p125
      %p127 = scmp.ne.s32.totalorder %s115, %s116
      %p128 = scmp.eq.s32.totalorder %s22, 3
      %p129 = por %p127, %p128
      %p131 = scmp.ne.s32.totalorder %s116, %s130
      %p132 = scmp.eq.s32.totalorder %s22, 0
      %p133 = por %p131, %p132
      %s135 = sadd.s32 %s134, 1
      %p138 = scmp.eq.s32.totalorder %s16, 3
      %p139 = scmp.ne.s32.totalorder %s134, %s136
      %p140 = scmp.eq.s32.totalorder %s16, 0
      %p141 = por %p139, %p140
      %p142 = scmp.ne.s32.totalorder %s134, %s136
      %p143 = scmp.eq.s32.totalorder %s21, 3
      %p144 = por %p142, %p143
      %p145 = scmp.ne.s32.totalorder %s136, %s137
      %p146 = scmp.eq.s32.totalorder %s21, 0
      %p147 = por %p145, %p146
      %p148 = scmp.ne.s32.totalorder %s136, %s137
      %p149 = scmp.eq.s32.totalorder %s22, 3
      %p150 = por %p148, %p149
      %p152 = scmp.ne.s32.totalorder %s137, %s151
      %p153 = scmp.eq.s32.totalorder %s22, 0
      %p154 = por %p152, %p153
      %s156 = sadd.s32 %s155, 1
      %p159 = scmp.eq.s32.totalorder %s16, 3
      %p160 = scmp.ne.s32.totalorder %s155, %s157
      %p161 = scmp.eq.s32.totalorder %s16, 0
      %p162 = por %p160, %p161
      %p163 = scmp.ne.s32.totalorder %s155, %s157
      %p164 = scmp.eq.s32.totalorder %s21, 3
      %p165 = por %p163, %p164
      %p166 = scmp.ne.s32.totalorder %s157, %s158
      %p167 = scmp.eq.s32.totalorder %s21, 0
      %p168 = por %p166, %p167
      %p169 = scmp.ne.s32.totalorder %s157, %s158
      %p170 = scmp.eq.s32.totalorder %s22, 3
      %p171 = por %p169, %p170
      %p173 = scmp.ne.s32.totalorder %s158, %s172
      %p174 = scmp.eq.s32.totalorder %s22, 0
      %p175 = por %p173, %p174
      %s176 = ssub.s32 %s16, %s23
      %p177 = scmp.eq.s32.totalorder %s176, 0
      %s179 = sadd.s32 %s178, 1
      %s180 = scalar_select %p177, %s178, %s179
      %p183 = pneg %p177
      %p184 = scmp.eq.s32.totalorder %s16, 3
      %p185 = por %p183, %p184
      %p186 = scmp.ne.s32.totalorder %s178, %s181
      %p187 = scmp.eq.s32.totalorder %s16, 0
      %p188 = por %p186, %p187
      %p189 = scmp.ne.s32.totalorder %s178, %s181
      %p190 = scmp.eq.s32.totalorder %s21, 3
      %p191 = por %p189, %p190
      %p192 = scmp.ne.s32.totalorder %s181, %s182
      %p193 = scmp.eq.s32.totalorder %s21, 0
      %p194 = por %p192, %p193
      %p195 = scmp.ne.s32.totalorder %s181, %s182
      %p196 = scmp.eq.s32.totalorder %s22, 3
      %p197 = por %p195, %p196
      %p199 = scmp.ne.s32.totalorder %s182, %s198
      %p200 = scmp.eq.s32.totalorder %s22, 0
      %p201 = por %p199, %p200
      %p202 = scmp.le.s32.totalorder 1, %s16
      %p203 = scmp.lt.s32.totalorder %s16, 5
      %p204 = pnand %p202, %p203
      %p205 = pneg %p204
      // Predicated region
      $region9: #{tpu_custom_call.1} parent=5 // pred_check
        _
      $region10: #{tpu_custom_call.1} parent=5 // pred_check_branch
        %207 = sbr.rel (%p204) target = $region12
      $region11: #{tpu_custom_call.1} parent=5 // pred_region
        %s208 = ssub.s32 %s16, 1
        // Predicated region
        $region13: #{tpu_custom_call.1} parent=11 // pred_check
          %p209 = pneg %p63
        $region14: #{tpu_custom_call.1} parent=11 // pred_check_branch
          %211 = sbr.rel (%p209) target = $region16
        $region15: #{tpu_custom_call.1} parent=11 // pred_region
          _
        $region16: #{tpu_custom_call.1} parent=11 // pred_fallthru
          _
        // Predicated region
        $region17: #{tpu_custom_call.1} parent=11 // pred_check
          %p212 = pneg %p84
        $region18: #{tpu_custom_call.1} parent=11 // pred_check_branch
          %214 = sbr.rel (%p212) target = $region20
        $region19: #{tpu_custom_call.1} parent=11 // pred_region
          _
        $region20: #{tpu_custom_call.1} parent=11 // pred_fallthru
          _
        // Predicated region
        $region21: #{tpu_custom_call.1} parent=11 // pred_check
          %p215 = pneg %p105
        $region22: #{tpu_custom_call.1} parent=11 // pred_check_branch
          %217 = sbr.rel (%p215) target = $region24
        $region23: #{tpu_custom_call.1} parent=11 // pred_region
          _
        $region24: #{tpu_custom_call.1} parent=11 // pred_fallthru
          _
        // Predicated region
        $region25: #{tpu_custom_call.1} parent=11 // pred_check
          %p218 = pneg %p126
        $region26: #{tpu_custom_call.1} parent=11 // pred_check_branch
          %220 = sbr.rel (%p218) target = $region28
        $region27: #{tpu_custom_call.1} parent=11 // pred_region
          _
        $region28: #{tpu_custom_call.1} parent=11 // pred_fallthru
          _
        // Predicated region
        $region29: #{tpu_custom_call.1} parent=11 // pred_check
          %p221 = pneg %p147
        $region30: #{tpu_custom_call.1} parent=11 // pred_check_branch
          %223 = sbr.rel (%p221) target = $region32
        $region31: #{tpu_custom_call.1} parent=11 // pred_region
          _
        $region32: #{tpu_custom_call.1} parent=11 // pred_fallthru
          _
        // Predicated region
        $region33: #{tpu_custom_call.1} parent=11 // pred_check
          %p224 = pneg %p168
        $region34: #{tpu_custom_call.1} parent=11 // pred_check_branch
          %226 = sbr.rel (%p224) target = $region36
        $region35: #{tpu_custom_call.1} parent=11 // pred_region
          _
        $region36: #{tpu_custom_call.1} parent=11 // pred_fallthru
          _
      $region12: #{tpu_custom_call.1} parent=5 // pred_fallthru
        _
      %p227 = scmp.lt.s32.totalorder %s16, 4
      // Predicated region
      $region37: #{tpu_custom_call.1} parent=5 // pred_check
        %p228 = pneg %p227
      $region38: #{tpu_custom_call.1} parent=5 // pred_check_branch
        %230 = sbr.rel (%p228) target = $region40
      $region39: #{tpu_custom_call.1} parent=5 // pred_region
        // Predicated region
        $region41: #{tpu_custom_call.1} parent=39 // pred_check
          %p231 = pneg %p36
        $region42: #{tpu_custom_call.1} parent=39 // pred_check_branch
          %233 = sbr.rel (%p231) target = $region44
        $region43: #{tpu_custom_call.1} parent=39 // pred_region
          %p234 = scmp.lt.s32.totalorder %s16, 3
          %s235 = scalar_select %p234, %s16, 3
          %s236 = scalar_lea.vmem %s0, %s235
        $region44: #{tpu_custom_call.1} parent=39 // pred_fallthru
          _
      $region40: #{tpu_custom_call.1} parent=5 // pred_fallthru
        _
      %p237 = scmp.le.s32.totalorder 1, %s16
      %p238 = scmp.lt.s32.totalorder %s16, 5
      %p239 = pnand %p237, %p238
      %p240 = pneg %p239
      // Predicated region
      $region45: #{tpu_custom_call.1} parent=5 // pred_check
        _
      $region46: #{tpu_custom_call.1} parent=5 // pred_check_branch
        %242 = sbr.rel (%p239) target = $region48
      $region47: #{tpu_custom_call.1} parent=5 // pred_region
        %s243 = ssub.s32 %s16, 1
        %p244 = scmp.lt.s32.totalorder %s21, 3
        %s245 = scalar_select %p244, %s21, 3
        %s246 = scalar_lea.vmem %s0, %s245
        %p247 = pneg %p42
        %p248 = pneg %p39
        %p249 = pneg %p63
        %p250 = pneg %p60
        %p251 = pneg %p84
        %p252 = pneg %p81
        %p253 = pneg %p105
        %p254 = pneg %p102
        %p255 = pneg %p126
        %p256 = pneg %p123
        %p257 = pneg %p147
        %p258 = pneg %p144
        %p259 = pneg %p168
        %p260 = pneg %p165
        %p261 = pneg %p194
        %p262 = pneg %p191
        %s263 = sand.u32 %s181, 1
        %s264 = scalar_lea.sflag [#allocation4], %s263
        %s265 = sand.u32 %s181, 1
        %s266 = smul.addr %s265, 32
        %s267 = scalar_lea.vmem [#allocation3], %s266
        %p268 = scmp.lt.s32.totalorder %s21, 3
        %s269 = scalar_select %p268, %s21, 3
        %s270 = scalar_lea.vmem %s0, %s269
        %p271 = scmp.eq.s32.totalorder %s21, 0
        // Predicated region
        $region49: #{tpu_custom_call.1} parent=47 // pred_check
          %p272 = pneg %p271
        $region50: #{tpu_custom_call.1} parent=47 // pred_check_branch
          %274 = sbr.rel (%p272) target = $region52
        $region51: #{tpu_custom_call.1} parent=47 // pred_region
          %275 = vst [vmem:[#allocation2] sm:$0xff] 0.0
          %276 = vst [vmem:[#allocation2 + $0x8] sm:$0xff] 0.0
          %277 = vst [vmem:[#allocation2 + $0x10] sm:$0xff] 0.0
          %278 = vst [vmem:[#allocation2 + $0x18] sm:$0xff] 0.0
        $region52: #{tpu_custom_call.1} parent=47 // pred_fallthru
          _
        %v279 = vld [vmem:[%s1] sm:$0xff]
        %v280 = vld [vmem:[%s270] sm:$0x1]
        %282 = vset.pattern.permute.xlu0 0
        %283 = vperm.xlu0 %282, %v279
        %v284 = vpop.permute.xlu0 %283
        %v287 = vlaneseq
        %v288 = vshrl.u32 %v287, 7
        %v289 = vsub.s32 0, %v288
        %v290 = vrot.slane %v280, %v289
        %v292 = vmul.f32 %v284, %v290
        %v293 = vld [vmem:[#allocation2] sm:$0xff]
        %295 = vrot.lane.b32.xlu0 %v293, 1
        %v296 = vpop.permute.xlu0 %295
        %299 = vrot.lane.b32.xlu0 %v292, 1
        %v300 = vpop.permute.xlu0 %299
        %vm302 = vcmask 7168
        %v303 = vsel %vm302, %v296, %v300
        %304 = vst [vmem:[#allocation2] sm:$0xff] %v292
        %v305 = vld [vmem:[%s2] sm:$0xff]
        %v306 = vld [vmem:[%s2 + $0x8] sm:$0xff]
        %v307 = vld [vmem:[%s2 + $0x10] sm:$0xff]
        %v308 = vld [vmem:[%s2 + $0x18] sm:$0xff]
        %vm309 = vcmask 130048
        %v311 = vsel %vm309, %v305, 0
        %v314 = vsel %vm309, %v306, 0
        %v317 = vsel %vm309, %v307, 0
        %v320 = vsel %vm309, %v308, 0
        %322 = vmatprep.subr.mxu0 0.0
        %323 = vmatpush1.msra.mxu0 0.0
        %324 = vmatprep.subr.mxu0 0.0
        %325 = vmatpush1.msra.mxu0 0.0
        %326 = vmatprep.subr.mxu0 0.0
        %327 = vmatpush1.msra.mxu0 0.0
        %328 = vmatprep.subr.mxu0 0.0
        %329 = vmatpush1.msra.mxu0 0.0
        %330 = vmatprep.subr.mxu0 0.0
        %331 = vmatpush1.msra.mxu0 0.0
        %332 = vmatprep.subr.mxu0 0.0
        %333 = vmatpush1.msra.mxu0 0.0
        %334 = vmatprep.subr.mxu0 0.0
        %335 = vmatpush1.msra.mxu0 0.0
        %336 = vmatprep.subr.mxu0 0.0
        %337 = vmatpush1.msra.mxu0 0.0
        %338 = vmatprep.subr.mxu0 0.0
        %339 = vmatpush1.msra.mxu0 0.0
        %340 = vmatprep.subr.mxu0 0.0
        %341 = vmatpush1.msra.mxu0 0.0
        %342 = vmatprep.subr.mxu0 0.0
        %343 = vmatpush1.msra.mxu0 0.0
        %344 = vmatprep.subr.mxu0 0.0
        %345 = vmatpush1.msra.mxu0 0.0
        %346 = vmatprep.subr.mxu0 0.0
        %347 = vmatpush1.msra.mxu0 0.0
        %348 = vmatprep.subr.mxu0 0.0
        %349 = vmatpush1.msra.mxu0 0.0
        %350 = vmatprep.subr.mxu0 0.0
        %v351 = vand.u32 %v303, 4294901760
        %352 = vmatpush1.msra.mxu0 %v351
        %353 = vmatprep.subr.mxu0 0.0
        %v354 = vand.u32 %v292, 4294901760
        %355 = vmatpush1.msra.mxu0 %v354
        %356 = vmatprep.subr.mxu0 0.0
        %357 = vmatpush2.msra.mxu0 0.0
        %358 = vmatprep.subr.mxu0 0.0
        %359 = vmatpush2.msra.mxu0 0.0
        %360 = vmatprep.subr.mxu0 0.0
        %361 = vmatpush2.msra.mxu0 0.0
        %362 = vmatprep.subr.mxu0 0.0
        %363 = vmatpush2.msra.mxu0 0.0
        %364 = vmatprep.subr.mxu0 0.0
        %365 = vmatpush2.msra.mxu0 0.0
        %366 = vmatprep.subr.mxu0 0.0
        %367 = vmatpush2.msra.mxu0 0.0
        %368 = vmatprep.subr.mxu0 0.0
        %369 = vmatpush2.msra.mxu0 0.0
        %370 = vmatprep.subr.mxu0 0.0
        %371 = vmatpush2.msra.mxu0 0.0
        %372 = vmatprep.subr.mxu0 0.0
        %373 = vmatpush2.msra.mxu0 0.0
        %374 = vmatprep.subr.mxu0 0.0
        %375 = vmatpush2.msra.mxu0 0.0
        %376 = vmatprep.subr.mxu0 0.0
        %377 = vmatpush2.msra.mxu0 0.0
        %378 = vmatprep.subr.mxu0 0.0
        %379 = vmatpush2.msra.mxu0 0.0
        %380 = vmatprep.subr.mxu0 0.0
        %381 = vmatpush2.msra.mxu0 0.0
        %382 = vmatprep.subr.mxu0 0.0
        %383 = vmatpush2.msra.mxu0 0.0
        %384 = vmatprep.subr.mxu0 0.0
        %385 = vmatpush2.msra.mxu0 0.0
        %386 = vmatprep.subr.mxu0 0.0
        %387 = vmatpush2.msra.mxu0 0.0
        %388 = vmatprep.mubr.f32.mxu0 0.0
        %v389 = vand.u32 %v311, 4294901760
        %v390 = vsub.f32 %v311, %v389
        %v391 = vand.u32 %v390, 4294901760
        %v392 = vsub.f32 %v390, %v391
        %v393 = vand.u32 %v392, 4294901760
        %394 = vmatmul.mubr.f32.gmra.mxu0 %v393
        %v395 = vpop.f32.mrf.mxu0
        %v396 = vadd.f32 0.0, %v395
        %v397 = vpop.f32.mrf.mxu0
        %398 = vmatprep.mubr.f32.mxu0 0.0
        %v399 = vand.u32 %v314, 4294901760
        %v400 = vsub.f32 %v314, %v399
        %v401 = vand.u32 %v400, 4294901760
        %v402 = vsub.f32 %v400, %v401
        %v403 = vand.u32 %v402, 4294901760
        %404 = vmatmul.mubr.f32.gmra.mxu0 %v403
        %v405 = vpop.f32.mrf.mxu0
        %v406 = vadd.f32 0.0, %v405
        %v407 = vpop.f32.mrf.mxu0
        %408 = vmatprep.mubr.f32.mxu0 0.0
        %v409 = vand.u32 %v317, 4294901760
        %v410 = vsub.f32 %v317, %v409
        %v411 = vand.u32 %v410, 4294901760
        %v412 = vsub.f32 %v410, %v411
        %v413 = vand.u32 %v412, 4294901760
        %414 = vmatmul.mubr.f32.gmra.mxu0 %v413
        %v415 = vpop.f32.mrf.mxu0
        %v416 = vadd.f32 0.0, %v415
        %v417 = vpop.f32.mrf.mxu0
        %418 = vmatprep.mubr.f32.mxu0 0.0
        %v419 = vand.u32 %v320, 4294901760
        %v420 = vsub.f32 %v320, %v419
        %v421 = vand.u32 %v420, 4294901760
        %v422 = vsub.f32 %v420, %v421
        %v423 = vand.u32 %v422, 4294901760
        %424 = vmatmul.mubr.f32.gmra.mxu0 %v423
        %v425 = vpop.f32.mrf.mxu0
        %v426 = vadd.f32 0.0, %v425
        %v427 = vpop.f32.mrf.mxu0
        %428 = vdwg.mxu0
        %429 = vmatprep.subr.mxu0 0.0
        %430 = vmatpush1.msra.mxu0 0.0
        %431 = vmatprep.subr.mxu0 0.0
        %432 = vmatpush1.msra.mxu0 0.0
        %433 = vmatprep.subr.mxu0 0.0
        %434 = vmatpush1.msra.mxu0 0.0
        %435 = vmatprep.subr.mxu0 0.0
        %436 = vmatpush1.msra.mxu0 0.0
        %437 = vmatprep.subr.mxu0 0.0
        %438 = vmatpush1.msra.mxu0 0.0
        %439 = vmatprep.subr.mxu0 0.0
        %440 = vmatpush1.msra.mxu0 0.0
        %441 = vmatprep.subr.mxu0 0.0
        %442 = vmatpush1.msra.mxu0 0.0
        %443 = vmatprep.subr.mxu0 0.0
        %444 = vmatpush1.msra.mxu0 0.0
        %445 = vmatprep.subr.mxu0 0.0
        %446 = vmatpush1.msra.mxu0 0.0
        %447 = vmatprep.subr.mxu0 0.0
        %448 = vmatpush1.msra.mxu0 0.0
        %449 = vmatprep.subr.mxu0 0.0
        %450 = vmatpush1.msra.mxu0 0.0
        %451 = vmatprep.subr.mxu0 0.0
        %452 = vmatpush1.msra.mxu0 0.0
        %453 = vmatprep.subr.mxu0 0.0
        %454 = vmatpush1.msra.mxu0 0.0
        %455 = vmatprep.subr.mxu0 0.0
        %456 = vmatpush1.msra.mxu0 0.0
        %457 = vmatprep.subr.mxu0 0.0
        %v458 = vand.u32 %v303, 4294901760
        %v459 = vsub.f32 %v303, %v458
        %v460 = vand.u32 %v459, 4294901760
        %v461 = vsub.f32 %v459, %v460
        %v462 = vand.u32 %v461, 4294901760
        %463 = vmatpush1.msra.mxu0 %v462
        %464 = vmatprep.subr.mxu0 0.0
        %v465 = vand.u32 %v292, 4294901760
        %v466 = vsub.f32 %v292, %v465
        %v467 = vand.u32 %v466, 4294901760
        %v468 = vsub.f32 %v466, %v467
        %v469 = vand.u32 %v468, 4294901760
        %470 = vmatpush1.msra.mxu0 %v469
        %471 = vmatprep.subr.mxu0 0.0
        %472 = vmatpush2.msra.mxu0 0.0
        %473 = vmatprep.subr.mxu0 0.0
        %474 = vmatpush2.msra.mxu0 0.0
        %475 = vmatprep.subr.mxu0 0.0
        %476 = vmatpush2.msra.mxu0 0.0
        %477 = vmatprep.subr.mxu0 0.0
        %478 = vmatpush2.msra.mxu0 0.0
        %479 = vmatprep.subr.mxu0 0.0
        %480 = vmatpush2.msra.mxu0 0.0
        %481 = vmatprep.subr.mxu0 0.0
        %482 = vmatpush2.msra.mxu0 0.0
        %483 = vmatprep.subr.mxu0 0.0
        %484 = vmatpush2.msra.mxu0 0.0
        %485 = vmatprep.subr.mxu0 0.0
        %486 = vmatpush2.msra.mxu0 0.0
        %487 = vmatprep.subr.mxu0 0.0
        %488 = vmatpush2.msra.mxu0 0.0
        %489 = vmatprep.subr.mxu0 0.0
        %490 = vmatpush2.msra.mxu0 0.0
        %491 = vmatprep.subr.mxu0 0.0
        %492 = vmatpush2.msra.mxu0 0.0
        %493 = vmatprep.subr.mxu0 0.0
        %494 = vmatpush2.msra.mxu0 0.0
        %495 = vmatprep.subr.mxu0 0.0
        %496 = vmatpush2.msra.mxu0 0.0
        %497 = vmatprep.subr.mxu0 0.0
        %498 = vmatpush2.msra.mxu0 0.0
        %499 = vmatprep.subr.mxu0 0.0
        %500 = vmatpush2.msra.mxu0 0.0
        %501 = vmatprep.subr.mxu0 0.0
        %502 = vmatpush2.msra.mxu0 0.0
        %503 = vmatprep.mubr.f32.mxu0 0.0
        %v504 = vand.u32 %v311, 4294901760
        %505 = vmatmul.mubr.f32.gmra.mxu0 %v504
        %v506 = vpop.f32.mrf.mxu0
        %v507 = vadd.f32 %v396, %v506
        %v508 = vpop.f32.mrf.mxu0
        %509 = vmatprep.mubr.f32.mxu0 0.0
        %v510 = vand.u32 %v314, 4294901760
        %511 = vmatmul.mubr.f32.gmra.mxu0 %v510
        %v512 = vpop.f32.mrf.mxu0
        %v513 = vadd.f32 %v406, %v512
        %v514 = vpop.f32.mrf.mxu0
        %515 = vmatprep.mubr.f32.mxu0 0.0
        %v516 = vand.u32 %v317, 4294901760
        %517 = vmatmul.mubr.f32.gmra.mxu0 %v516
        %v518 = vpop.f32.mrf.mxu0
        %v519 = vadd.f32 %v416, %v518
        %v520 = vpop.f32.mrf.mxu0
        %521 = vmatprep.mubr.f32.mxu0 0.0
        %v522 = vand.u32 %v320, 4294901760
        %523 = vmatmul.mubr.f32.gmra.mxu0 %v522
        %v524 = vpop.f32.mrf.mxu0
        %v525 = vadd.f32 %v426, %v524
        %v526 = vpop.f32.mrf.mxu0
        %527 = vdwg.mxu0
        %528 = vmatprep.subr.mxu0 0.0
        %529 = vmatpush1.msra.mxu0 0.0
        %530 = vmatprep.subr.mxu0 0.0
        %531 = vmatpush1.msra.mxu0 0.0
        %532 = vmatprep.subr.mxu0 0.0
        %533 = vmatpush1.msra.mxu0 0.0
        %534 = vmatprep.subr.mxu0 0.0
        %535 = vmatpush1.msra.mxu0 0.0
        %536 = vmatprep.subr.mxu0 0.0
        %537 = vmatpush1.msra.mxu0 0.0
        %538 = vmatprep.subr.mxu0 0.0
        %539 = vmatpush1.msra.mxu0 0.0
        %540 = vmatprep.subr.mxu0 0.0
        %541 = vmatpush1.msra.mxu0 0.0
        %542 = vmatprep.subr.mxu0 0.0
        %543 = vmatpush1.msra.mxu0 0.0
        %544 = vmatprep.subr.mxu0 0.0
        %545 = vmatpush1.msra.mxu0 0.0
        %546 = vmatprep.subr.mxu0 0.0
        %547 = vmatpush1.msra.mxu0 0.0
        %548 = vmatprep.subr.mxu0 0.0
        %549 = vmatpush1.msra.mxu0 0.0
        %550 = vmatprep.subr.mxu0 0.0
        %551 = vmatpush1.msra.mxu0 0.0
        %552 = vmatprep.subr.mxu0 0.0
        %553 = vmatpush1.msra.mxu0 0.0
        %554 = vmatprep.subr.mxu0 0.0
        %555 = vmatpush1.msra.mxu0 0.0
        %556 = vmatprep.subr.mxu0 0.0
        %v557 = vand.u32 %v303, 4294901760
        %v558 = vsub.f32 %v303, %v557
        %559 = vmatpush1.msra.mxu0 %v558
        %560 = vmatprep.subr.mxu0 0.0
        %v561 = vand.u32 %v292, 4294901760
        %v562 = vsub.f32 %v292, %v561
        %563 = vmatpush1.msra.mxu0 %v562
        %564 = vmatprep.subr.mxu0 0.0
        %565 = vmatpush2.msra.mxu0 0.0
        %566 = vmatprep.subr.mxu0 0.0
        %567 = vmatpush2.msra.mxu0 0.0
        %568 = vmatprep.subr.mxu0 0.0
        %569 = vmatpush2.msra.mxu0 0.0
        %570 = vmatprep.subr.mxu0 0.0
        %571 = vmatpush2.msra.mxu0 0.0
        %572 = vmatprep.subr.mxu0 0.0
        %573 = vmatpush2.msra.mxu0 0.0
        %574 = vmatprep.subr.mxu0 0.0
        %575 = vmatpush2.msra.mxu0 0.0
        %576 = vmatprep.subr.mxu0 0.0
        %577 = vmatpush2.msra.mxu0 0.0
        %578 = vmatprep.subr.mxu0 0.0
        %579 = vmatpush2.msra.mxu0 0.0
        %580 = vmatprep.subr.mxu0 0.0
        %581 = vmatpush2.msra.mxu0 0.0
        %582 = vmatprep.subr.mxu0 0.0
        %583 = vmatpush2.msra.mxu0 0.0
        %584 = vmatprep.subr.mxu0 0.0
        %585 = vmatpush2.msra.mxu0 0.0
        %586 = vmatprep.subr.mxu0 0.0
        %587 = vmatpush2.msra.mxu0 0.0
        %588 = vmatprep.subr.mxu0 0.0
        %589 = vmatpush2.msra.mxu0 0.0
        %590 = vmatprep.subr.mxu0 0.0
        %591 = vmatpush2.msra.mxu0 0.0
        %592 = vmatprep.subr.mxu0 0.0
        %593 = vmatpush2.msra.mxu0 0.0
        %594 = vmatprep.subr.mxu0 0.0
        %595 = vmatpush2.msra.mxu0 0.0
        %596 = vmatprep.mubr.f32.mxu0 0.0
        %v597 = vand.u32 %v311, 4294901760
        %v598 = vsub.f32 %v311, %v597
        %599 = vmatmul.mubr.f32.gmra.mxu0 %v598
        %v600 = vpop.f32.mrf.mxu0
        %v601 = vadd.f32 %v507, %v600
        %v602 = vpop.f32.mrf.mxu0
        %603 = vmatprep.mubr.f32.mxu0 0.0
        %v604 = vand.u32 %v314, 4294901760
        %v605 = vsub.f32 %v314, %v604
        %606 = vmatmul.mubr.f32.gmra.mxu0 %v605
        %v607 = vpop.f32.mrf.mxu0
        %v608 = vadd.f32 %v513, %v607
        %v609 = vpop.f32.mrf.mxu0
        %610 = vmatprep.mubr.f32.mxu0 0.0
        %v611 = vand.u32 %v317, 4294901760
        %v612 = vsub.f32 %v317, %v611
        %613 = vmatmul.mubr.f32.gmra.mxu0 %v612
        %v614 = vpop.f32.mrf.mxu0
        %v615 = vadd.f32 %v519, %v614
        %v616 = vpop.f32.mrf.mxu0
        %617 = vmatprep.mubr.f32.mxu0 0.0
        %v618 = vand.u32 %v320, 4294901760
        %v619 = vsub.f32 %v320, %v618
        %620 = vmatmul.mubr.f32.gmra.mxu0 %v619
        %v621 = vpop.f32.mrf.mxu0
        %v622 = vadd.f32 %v525, %v621
        %v623 = vpop.f32.mrf.mxu0
        %624 = vdwg.mxu0
        %625 = vmatprep.subr.mxu0 0.0
        %626 = vmatpush1.msra.mxu0 0.0
        %627 = vmatprep.subr.mxu0 0.0
        %628 = vmatpush1.msra.mxu0 0.0
        %629 = vmatprep.subr.mxu0 0.0
        %630 = vmatpush1.msra.mxu0 0.0
        %631 = vmatprep.subr.mxu0 0.0
        %632 = vmatpush1.msra.mxu0 0.0
        %633 = vmatprep.subr.mxu0 0.0
        %634 = vmatpush1.msra.mxu0 0.0
        %635 = vmatprep.subr.mxu0 0.0
        %636 = vmatpush1.msra.mxu0 0.0
        %637 = vmatprep.subr.mxu0 0.0
        %638 = vmatpush1.msra.mxu0 0.0
        %639 = vmatprep.subr.mxu0 0.0
        %640 = vmatpush1.msra.mxu0 0.0
        %641 = vmatprep.subr.mxu0 0.0
        %642 = vmatpush1.msra.mxu0 0.0
        %643 = vmatprep.subr.mxu0 0.0
        %644 = vmatpush1.msra.mxu0 0.0
        %645 = vmatprep.subr.mxu0 0.0
        %646 = vmatpush1.msra.mxu0 0.0
        %647 = vmatprep.subr.mxu0 0.0
        %648 = vmatpush1.msra.mxu0 0.0
        %649 = vmatprep.subr.mxu0 0.0
        %650 = vmatpush1.msra.mxu0 0.0
        %651 = vmatprep.subr.mxu0 0.0
        %652 = vmatpush1.msra.mxu0 0.0
        %653 = vmatprep.subr.mxu0 0.0
        %v654 = vand.u32 %v303, 4294901760
        %655 = vmatpush1.msra.mxu0 %v654
        %656 = vmatprep.subr.mxu0 0.0
        %v657 = vand.u32 %v292, 4294901760
        %658 = vmatpush1.msra.mxu0 %v657
        %659 = vmatprep.subr.mxu0 0.0
        %660 = vmatpush2.msra.mxu0 0.0
        %661 = vmatprep.subr.mxu0 0.0
        %662 = vmatpush2.msra.mxu0 0.0
        %663 = vmatprep.subr.mxu0 0.0
        %664 = vmatpush2.msra.mxu0 0.0
        %665 = vmatprep.subr.mxu0 0.0
        %666 = vmatpush2.msra.mxu0 0.0
        %667 = vmatprep.subr.mxu0 0.0
        %668 = vmatpush2.msra.mxu0 0.0
        %669 = vmatprep.subr.mxu0 0.0
        %670 = vmatpush2.msra.mxu0 0.0
        %671 = vmatprep.subr.mxu0 0.0
        %672 = vmatpush2.msra.mxu0 0.0
        %673 = vmatprep.subr.mxu0 0.0
        %674 = vmatpush2.msra.mxu0 0.0
        %675 = vmatprep.subr.mxu0 0.0
        %676 = vmatpush2.msra.mxu0 0.0
        %677 = vmatprep.subr.mxu0 0.0
        %678 = vmatpush2.msra.mxu0 0.0
        %679 = vmatprep.subr.mxu0 0.0
        %680 = vmatpush2.msra.mxu0 0.0
        %681 = vmatprep.subr.mxu0 0.0
        %682 = vmatpush2.msra.mxu0 0.0
        %683 = vmatprep.subr.mxu0 0.0
        %684 = vmatpush2.msra.mxu0 0.0
        %685 = vmatprep.subr.mxu0 0.0
        %686 = vmatpush2.msra.mxu0 0.0
        %687 = vmatprep.subr.mxu0 0.0
        %688 = vmatpush2.msra.mxu0 0.0
        %689 = vmatprep.subr.mxu0 0.0
        %690 = vmatpush2.msra.mxu0 0.0
        %691 = vmatprep.mubr.f32.mxu0 0.0
        %v692 = vand.u32 %v311, 4294901760
        %v693 = vsub.f32 %v311, %v692
        %v694 = vand.u32 %v693, 4294901760
        %695 = vmatmul.mubr.f32.gmra.mxu0 %v694
        %v696 = vpop.f32.mrf.mxu0
        %v697 = vadd.f32 %v601, %v696
        %v698 = vpop.f32.mrf.mxu0
        %699 = vmatprep.mubr.f32.mxu0 0.0
        %v700 = vand.u32 %v314, 4294901760
        %v701 = vsub.f32 %v314, %v700
        %v702 = vand.u32 %v701, 4294901760
        %703 = vmatmul.mubr.f32.gmra.mxu0 %v702
        %v704 = vpop.f32.mrf.mxu0
        %v705 = vadd.f32 %v608, %v704
        %v706 = vpop.f32.mrf.mxu0
        %707 = vmatprep.mubr.f32.mxu0 0.0
        %v708 = vand.u32 %v317, 4294901760
        %v709 = vsub.f32 %v317, %v708
        %v710 = vand.u32 %v709, 4294901760
        %711 = vmatmul.mubr.f32.gmra.mxu0 %v710
        %v712 = vpop.f32.mrf.mxu0
        %v713 = vadd.f32 %v615, %v712
        %v714 = vpop.f32.mrf.mxu0
        %715 = vmatprep.mubr.f32.mxu0 0.0
        %v716 = vand.u32 %v320, 4294901760
        %v717 = vsub.f32 %v320, %v716
        %v718 = vand.u32 %v717, 4294901760
        %719 = vmatmul.mubr.f32.gmra.mxu0 %v718
        %v720 = vpop.f32.mrf.mxu0
        %v721 = vadd.f32 %v622, %v720
        %v722 = vpop.f32.mrf.mxu0
        %723 = vdwg.mxu0
        %724 = vmatprep.subr.mxu0 0.0
        %725 = vmatpush1.msra.mxu0 0.0
        %726 = vmatprep.subr.mxu0 0.0
        %727 = vmatpush1.msra.mxu0 0.0
        %728 = vmatprep.subr.mxu0 0.0
        %729 = vmatpush1.msra.mxu0 0.0
        %730 = vmatprep.subr.mxu0 0.0
        %731 = vmatpush1.msra.mxu0 0.0
        %732 = vmatprep.subr.mxu0 0.0
        %733 = vmatpush1.msra.mxu0 0.0
        %734 = vmatprep.subr.mxu0 0.0
        %735 = vmatpush1.msra.mxu0 0.0
        %736 = vmatprep.subr.mxu0 0.0
        %737 = vmatpush1.msra.mxu0 0.0
        %738 = vmatprep.subr.mxu0 0.0
        %739 = vmatpush1.msra.mxu0 0.0
        %740 = vmatprep.subr.mxu0 0.0
        %741 = vmatpush1.msra.mxu0 0.0
        %742 = vmatprep.subr.mxu0 0.0
        %743 = vmatpush1.msra.mxu0 0.0
        %744 = vmatprep.subr.mxu0 0.0
        %745 = vmatpush1.msra.mxu0 0.0
        %746 = vmatprep.subr.mxu0 0.0
        %747 = vmatpush1.msra.mxu0 0.0
        %748 = vmatprep.subr.mxu0 0.0
        %749 = vmatpush1.msra.mxu0 0.0
        %750 = vmatprep.subr.mxu0 0.0
        %751 = vmatpush1.msra.mxu0 0.0
        %752 = vmatprep.subr.mxu0 0.0
        %v753 = vand.u32 %v303, 4294901760
        %v754 = vsub.f32 %v303, %v753
        %v755 = vand.u32 %v754, 4294901760
        %756 = vmatpush1.msra.mxu0 %v755
        %757 = vmatprep.subr.mxu0 0.0
        %v758 = vand.u32 %v292, 4294901760
        %v759 = vsub.f32 %v292, %v758
        %v760 = vand.u32 %v759, 4294901760
        %761 = vmatpush1.msra.mxu0 %v760
        %762 = vmatprep.subr.mxu0 0.0
        %763 = vmatpush2.msra.mxu0 0.0
        %764 = vmatprep.subr.mxu0 0.0
        %765 = vmatpush2.msra.mxu0 0.0
        %766 = vmatprep.subr.mxu0 0.0
        %767 = vmatpush2.msra.mxu0 0.0
        %768 = vmatprep.subr.mxu0 0.0
        %769 = vmatpush2.msra.mxu0 0.0
        %770 = vmatprep.subr.mxu0 0.0
        %771 = vmatpush2.msra.mxu0 0.0
        %772 = vmatprep.subr.mxu0 0.0
        %773 = vmatpush2.msra.mxu0 0.0
        %774 = vmatprep.subr.mxu0 0.0
        %775 = vmatpush2.msra.mxu0 0.0
        %776 = vmatprep.subr.mxu0 0.0
        %777 = vmatpush2.msra.mxu0 0.0
        %778 = vmatprep.subr.mxu0 0.0
        %779 = vmatpush2.msra.mxu0 0.0
        %780 = vmatprep.subr.mxu0 0.0
        %781 = vmatpush2.msra.mxu0 0.0
        %782 = vmatprep.subr.mxu0 0.0
        %783 = vmatpush2.msra.mxu0 0.0
        %784 = vmatprep.subr.mxu0 0.0
        %785 = vmatpush2.msra.mxu0 0.0
        %786 = vmatprep.subr.mxu0 0.0
        %787 = vmatpush2.msra.mxu0 0.0
        %788 = vmatprep.subr.mxu0 0.0
        %789 = vmatpush2.msra.mxu0 0.0
        %790 = vmatprep.subr.mxu0 0.0
        %791 = vmatpush2.msra.mxu0 0.0
        %792 = vmatprep.subr.mxu0 0.0
        %793 = vmatpush2.msra.mxu0 0.0
        %794 = vmatprep.mubr.f32.mxu0 0.0
        %v795 = vand.u32 %v311, 4294901760
        %796 = vmatmul.mubr.f32.gmra.mxu0 %v795
        %v797 = vpop.f32.mrf.mxu0
        %v798 = vadd.f32 %v697, %v797
        %v799 = vpop.f32.mrf.mxu0
        %800 = vmatprep.mubr.f32.mxu0 0.0
        %v801 = vand.u32 %v314, 4294901760
        %802 = vmatmul.mubr.f32.gmra.mxu0 %v801
        %v803 = vpop.f32.mrf.mxu0
        %v804 = vadd.f32 %v705, %v803
        %v805 = vpop.f32.mrf.mxu0
        %806 = vmatprep.mubr.f32.mxu0 0.0
        %v807 = vand.u32 %v317, 4294901760
        %808 = vmatmul.mubr.f32.gmra.mxu0 %v807
        %v809 = vpop.f32.mrf.mxu0
        %v810 = vadd.f32 %v713, %v809
        %v811 = vpop.f32.mrf.mxu0
        %812 = vmatprep.mubr.f32.mxu0 0.0
        %v813 = vand.u32 %v320, 4294901760
        %814 = vmatmul.mubr.f32.gmra.mxu0 %v813
        %v815 = vpop.f32.mrf.mxu0
        %v816 = vadd.f32 %v721, %v815
        %v817 = vpop.f32.mrf.mxu0
        %818 = vdwg.mxu0
        %819 = vmatprep.subr.mxu0 0.0
        %820 = vmatpush1.msra.mxu0 0.0
        %821 = vmatprep.subr.mxu0 0.0
        %822 = vmatpush1.msra.mxu0 0.0
        %823 = vmatprep.subr.mxu0 0.0
        %824 = vmatpush1.msra.mxu0 0.0
        %825 = vmatprep.subr.mxu0 0.0
        %826 = vmatpush1.msra.mxu0 0.0
        %827 = vmatprep.subr.mxu0 0.0
        %828 = vmatpush1.msra.mxu0 0.0
        %829 = vmatprep.subr.mxu0 0.0
        %830 = vmatpush1.msra.mxu0 0.0
        %831 = vmatprep.subr.mxu0 0.0
        %832 = vmatpush1.msra.mxu0 0.0
        %833 = vmatprep.subr.mxu0 0.0
        %834 = vmatpush1.msra.mxu0 0.0
        %835 = vmatprep.subr.mxu0 0.0
        %836 = vmatpush1.msra.mxu0 0.0
        %837 = vmatprep.subr.mxu0 0.0
        %838 = vmatpush1.msra.mxu0 0.0
        %839 = vmatprep.subr.mxu0 0.0
        %840 = vmatpush1.msra.mxu0 0.0
        %841 = vmatprep.subr.mxu0 0.0
        %842 = vmatpush1.msra.mxu0 0.0
        %843 = vmatprep.subr.mxu0 0.0
        %844 = vmatpush1.msra.mxu0 0.0
        %845 = vmatprep.subr.mxu0 0.0
        %846 = vmatpush1.msra.mxu0 0.0
        %847 = vmatprep.subr.mxu0 0.0
        %v848 = vand.u32 %v303, 4294901760
        %849 = vmatpush1.msra.mxu0 %v848
        %850 = vmatprep.subr.mxu0 0.0
        %v851 = vand.u32 %v292, 4294901760
        %852 = vmatpush1.msra.mxu0 %v851
        %853 = vmatprep.subr.mxu0 0.0
        %854 = vmatpush2.msra.mxu0 0.0
        %855 = vmatprep.subr.mxu0 0.0
        %856 = vmatpush2.msra.mxu0 0.0
        %857 = vmatprep.subr.mxu0 0.0
        %858 = vmatpush2.msra.mxu0 0.0
        %859 = vmatprep.subr.mxu0 0.0
        %860 = vmatpush2.msra.mxu0 0.0
        %861 = vmatprep.subr.mxu0 0.0
        %862 = vmatpush2.msra.mxu0 0.0
        %863 = vmatprep.subr.mxu0 0.0
        %864 = vmatpush2.msra.mxu0 0.0
        %865 = vmatprep.subr.mxu0 0.0
        %866 = vmatpush2.msra.mxu0 0.0
        %867 = vmatprep.subr.mxu0 0.0
        %868 = vmatpush2.msra.mxu0 0.0
        %869 = vmatprep.subr.mxu0 0.0
        %870 = vmatpush2.msra.mxu0 0.0
        %871 = vmatprep.subr.mxu0 0.0
        %872 = vmatpush2.msra.mxu0 0.0
        %873 = vmatprep.subr.mxu0 0.0
        %874 = vmatpush2.msra.mxu0 0.0
        %875 = vmatprep.subr.mxu0 0.0
        %876 = vmatpush2.msra.mxu0 0.0
        %877 = vmatprep.subr.mxu0 0.0
        %878 = vmatpush2.msra.mxu0 0.0
        %879 = vmatprep.subr.mxu0 0.0
        %880 = vmatpush2.msra.mxu0 0.0
        %881 = vmatprep.subr.mxu0 0.0
        %882 = vmatpush2.msra.mxu0 0.0
        %883 = vmatprep.subr.mxu0 0.0
        %884 = vmatpush2.msra.mxu0 0.0
        %885 = vmatprep.mubr.f32.mxu0 0.0
        %v886 = vand.u32 %v311, 4294901760
        %887 = vmatmul.mubr.f32.gmra.mxu0 %v886
        %v888 = vpop.f32.mrf.mxu0
        %v889 = vadd.f32 %v798, %v888
        %v890 = vpop.f32.mrf.mxu0
        %891 = vmatprep.mubr.f32.mxu0 0.0
        %v892 = vand.u32 %v314, 4294901760
        %893 = vmatmul.mubr.f32.gmra.mxu0 %v892
        %v894 = vpop.f32.mrf.mxu0
        %v895 = vadd.f32 %v804, %v894
        %v896 = vpop.f32.mrf.mxu0
        %897 = vmatprep.mubr.f32.mxu0 0.0
        %v898 = vand.u32 %v317, 4294901760
        %899 = vmatmul.mubr.f32.gmra.mxu0 %v898
        %v900 = vpop.f32.mrf.mxu0
        %v901 = vadd.f32 %v810, %v900
        %v902 = vpop.f32.mrf.mxu0
        %903 = vmatprep.mubr.f32.mxu0 0.0
        %v904 = vand.u32 %v320, 4294901760
        %905 = vmatmul.mubr.f32.gmra.mxu0 %v904
        %v906 = vpop.f32.mrf.mxu0
        %v907 = vadd.f32 %v816, %v906
        %v908 = vpop.f32.mrf.mxu0
        %909 = vdwg.mxu0
        %v910 = vtanh.pop %v889
        %v911 = vtanh.pop %v895
        %v912 = vxor.u32 %v901, 2147483648
        %v913 = vxor.u32 %v907, 2147483648
        %v914 = vmul.f32 %v912, 1.442695
        %v915 = vpow.pop %v914
        %v916 = vmul.f32 %v913, 1.442695
        %v917 = vpow.pop %v916
        %v918 = vadd.f32 %v915, 1.0
        %v919 = vadd.f32 %v917, 1.0
        %v920 = vrcp.pop %v918
        %v921 = vmul.f32 1.0, %v920
        %v922 = vrcp.pop %v919
        %v923 = vmul.f32 1.0, %v922
        %v924 = vmul.f32 %v910, %v921
        %v925 = vmul.f32 %v911, %v923
        %v926 = vld [vmem:[%s3] sm:$0xff]
        %v927 = vld [vmem:[%s3 + $0x8] sm:$0xff]
        %v929 = vsel %vm309, %v926, 0
        %v932 = vsel %vm309, %v927, 0
        %934 = vmatprep.subr.mxu0 0.0
        %935 = vmatpush1.msra.mxu0 0.0
        %936 = vmatprep.subr.mxu0 0.0
        %937 = vmatpush1.msra.mxu0 0.0
        %938 = vmatprep.subr.mxu0 0.0
        %939 = vmatpush1.msra.mxu0 0.0
        %940 = vmatprep.subr.mxu0 0.0
        %941 = vmatpush1.msra.mxu0 0.0
        %942 = vmatprep.subr.mxu0 0.0
        %943 = vmatpush1.msra.mxu0 0.0
        %944 = vmatprep.subr.mxu0 0.0
        %945 = vmatpush1.msra.mxu0 0.0
        %946 = vmatprep.subr.mxu0 0.0
        %947 = vmatpush1.msra.mxu0 0.0
        %948 = vmatprep.subr.mxu0 0.0
        %949 = vmatpush1.msra.mxu0 0.0
        %950 = vmatprep.subr.mxu0 0.0
        %951 = vmatpush1.msra.mxu0 0.0
        %952 = vmatprep.subr.mxu0 0.0
        %953 = vmatpush1.msra.mxu0 0.0
        %954 = vmatprep.subr.mxu0 0.0
        %955 = vmatpush1.msra.mxu0 0.0
        %956 = vmatprep.subr.mxu0 0.0
        %957 = vmatpush1.msra.mxu0 0.0
        %958 = vmatprep.subr.mxu0 0.0
        %959 = vmatpush1.msra.mxu0 0.0
        %960 = vmatprep.subr.mxu0 0.0
        %961 = vmatpush1.msra.mxu0 0.0
        %962 = vmatprep.subr.mxu0 0.0
        %v963 = vand.u32 %v925, 4294901760
        %964 = vmatpush1.msra.mxu0 %v963
        %965 = vmatprep.subr.mxu0 0.0
        %v966 = vand.u32 %v924, 4294901760
        %967 = vmatpush1.msra.mxu0 %v966
        %968 = vmatprep.subr.mxu0 0.0
        %969 = vmatpush2.msra.mxu0 0.0
        %970 = vmatprep.subr.mxu0 0.0
        %971 = vmatpush2.msra.mxu0 0.0
        %972 = vmatprep.subr.mxu0 0.0
        %973 = vmatpush2.msra.mxu0 0.0
        %974 = vmatprep.subr.mxu0 0.0
        %975 = vmatpush2.msra.mxu0 0.0
        %976 = vmatprep.subr.mxu0 0.0
        %977 = vmatpush2.msra.mxu0 0.0
        %978 = vmatprep.subr.mxu0 0.0
        %979 = vmatpush2.msra.mxu0 0.0
        %980 = vmatprep.subr.mxu0 0.0
        %981 = vmatpush2.msra.mxu0 0.0
        %982 = vmatprep.subr.mxu0 0.0
        %983 = vmatpush2.msra.mxu0 0.0
        %984 = vmatprep.subr.mxu0 0.0
        %985 = vmatpush2.msra.mxu0 0.0
        %986 = vmatprep.subr.mxu0 0.0
        %987 = vmatpush2.msra.mxu0 0.0
        %988 = vmatprep.subr.mxu0 0.0
        %989 = vmatpush2.msra.mxu0 0.0
        %990 = vmatprep.subr.mxu0 0.0
        %991 = vmatpush2.msra.mxu0 0.0
        %992 = vmatprep.subr.mxu0 0.0
        %993 = vmatpush2.msra.mxu0 0.0
        %994 = vmatprep.subr.mxu0 0.0
        %995 = vmatpush2.msra.mxu0 0.0
        %996 = vmatprep.subr.mxu0 0.0
        %997 = vmatpush2.msra.mxu0 0.0
        %998 = vmatprep.subr.mxu0 0.0
        %999 = vmatpush2.msra.mxu0 0.0
        %1000 = vmatprep.mubr.f32.mxu0 0.0
        %v1001 = vand.u32 %v929, 4294901760
        %v1002 = vsub.f32 %v929, %v1001
        %v1003 = vand.u32 %v1002, 4294901760
        %v1004 = vsub.f32 %v1002, %v1003
        %v1005 = vand.u32 %v1004, 4294901760
        %1006 = vmatmul.mubr.f32.gmra.mxu0 %v1005
        %v1007 = vpop.f32.mrf.mxu0
        %v1008 = vadd.f32 0.0, %v1007
        %v1009 = vpop.f32.mrf.mxu0
        %1010 = vmatprep.mubr.f32.mxu0 0.0
        %v1011 = vand.u32 %v932, 4294901760
        %v1012 = vsub.f32 %v932, %v1011
        %v1013 = vand.u32 %v1012, 4294901760
        %v1014 = vsub.f32 %v1012, %v1013
        %v1015 = vand.u32 %v1014, 4294901760
        %1016 = vmatmul.mubr.f32.gmra.mxu0 %v1015
        %v1017 = vpop.f32.mrf.mxu0
        %v1018 = vadd.f32 0.0, %v1017
        %v1019 = vpop.f32.mrf.mxu0
        %1020 = vdwg.mxu0
        %1021 = vmatprep.subr.mxu0 0.0
        %1022 = vmatpush1.msra.mxu0 0.0
        %1023 = vmatprep.subr.mxu0 0.0
        %1024 = vmatpush1.msra.mxu0 0.0
        %1025 = vmatprep.subr.mxu0 0.0
        %1026 = vmatpush1.msra.mxu0 0.0
        %1027 = vmatprep.subr.mxu0 0.0
        %1028 = vmatpush1.msra.mxu0 0.0
        %1029 = vmatprep.subr.mxu0 0.0
        %1030 = vmatpush1.msra.mxu0 0.0
        %1031 = vmatprep.subr.mxu0 0.0
        %1032 = vmatpush1.msra.mxu0 0.0
        %1033 = vmatprep.subr.mxu0 0.0
        %1034 = vmatpush1.msra.mxu0 0.0
        %1035 = vmatprep.subr.mxu0 0.0
        %1036 = vmatpush1.msra.mxu0 0.0
        %1037 = vmatprep.subr.mxu0 0.0
        %1038 = vmatpush1.msra.mxu0 0.0
        %1039 = vmatprep.subr.mxu0 0.0
        %1040 = vmatpush1.msra.mxu0 0.0
        %1041 = vmatprep.subr.mxu0 0.0
        %1042 = vmatpush1.msra.mxu0 0.0
        %1043 = vmatprep.subr.mxu0 0.0
        %1044 = vmatpush1.msra.mxu0 0.0
        %1045 = vmatprep.subr.mxu0 0.0
        %1046 = vmatpush1.msra.mxu0 0.0
        %1047 = vmatprep.subr.mxu0 0.0
        %1048 = vmatpush1.msra.mxu0 0.0
        %1049 = vmatprep.subr.mxu0 0.0
        %v1050 = vand.u32 %v925, 4294901760
        %v1051 = vsub.f32 %v925, %v1050
        %v1052 = vand.u32 %v1051, 4294901760
        %v1053 = vsub.f32 %v1051, %v1052
        %v1054 = vand.u32 %v1053, 4294901760
        %1055 = vmatpush1.msra.mxu0 %v1054
        %1056 = vmatprep.subr.mxu0 0.0
        %v1057 = vand.u32 %v924, 4294901760
        %v1058 = vsub.f32 %v924, %v1057
        %v1059 = vand.u32 %v1058, 4294901760
        %v1060 = vsub.f32 %v1058, %v1059
        %v1061 = vand.u32 %v1060, 4294901760
        %1062 = vmatpush1.msra.mxu0 %v1061
        %1063 = vmatprep.subr.mxu0 0.0
        %1064 = vmatpush2.msra.mxu0 0.0
        %1065 = vmatprep.subr.mxu0 0.0
        %1066 = vmatpush2.msra.mxu0 0.0
        %1067 = vmatprep.subr.mxu0 0.0
        %1068 = vmatpush2.msra.mxu0 0.0
        %1069 = vmatprep.subr.mxu0 0.0
        %1070 = vmatpush2.msra.mxu0 0.0
        %1071 = vmatprep.subr.mxu0 0.0
        %1072 = vmatpush2.msra.mxu0 0.0
        %1073 = vmatprep.subr.mxu0 0.0
        %1074 = vmatpush2.msra.mxu0 0.0
        %1075 = vmatprep.subr.mxu0 0.0
        %1076 = vmatpush2.msra.mxu0 0.0
        %1077 = vmatprep.subr.mxu0 0.0
        %1078 = vmatpush2.msra.mxu0 0.0
        %1079 = vmatprep.subr.mxu0 0.0
        %1080 = vmatpush2.msra.mxu0 0.0
        %1081 = vmatprep.subr.mxu0 0.0
        %1082 = vmatpush2.msra.mxu0 0.0
        %1083 = vmatprep.subr.mxu0 0.0
        %1084 = vmatpush2.msra.mxu0 0.0
        %1085 = vmatprep.subr.mxu0 0.0
        %1086 = vmatpush2.msra.mxu0 0.0
        %1087 = vmatprep.subr.mxu0 0.0
        %1088 = vmatpush2.msra.mxu0 0.0
        %1089 = vmatprep.subr.mxu0 0.0
        %1090 = vmatpush2.msra.mxu0 0.0
        %1091 = vmatprep.subr.mxu0 0.0
        %1092 = vmatpush2.msra.mxu0 0.0
        %1093 = vmatprep.subr.mxu0 0.0
        %1094 = vmatpush2.msra.mxu0 0.0
        %1095 = vmatprep.mubr.f32.mxu0 0.0
        %v1096 = vand.u32 %v929, 4294901760
        %1097 = vmatmul.mubr.f32.gmra.mxu0 %v1096
        %v1098 = vpop.f32.mrf.mxu0
        %v1099 = vadd.f32 %v1008, %v1098
        %v1100 = vpop.f32.mrf.mxu0
        %1101 = vmatprep.mubr.f32.mxu0 0.0
        %v1102 = vand.u32 %v932, 4294901760
        %1103 = vmatmul.mubr.f32.gmra.mxu0 %v1102
        %v1104 = vpop.f32.mrf.mxu0
        %v1105 = vadd.f32 %v1018, %v1104
        %v1106 = vpop.f32.mrf.mxu0
        %1107 = vdwg.mxu0
        %1108 = vmatprep.subr.mxu0 0.0
        %1109 = vmatpush1.msra.mxu0 0.0
        %1110 = vmatprep.subr.mxu0 0.0
        %1111 = vmatpush1.msra.mxu0 0.0
        %1112 = vmatprep.subr.mxu0 0.0
        %1113 = vmatpush1.msra.mxu0 0.0
        %1114 = vmatprep.subr.mxu0 0.0
        %1115 = vmatpush1.msra.mxu0 0.0
        %1116 = vmatprep.subr.mxu0 0.0
        %1117 = vmatpush1.msra.mxu0 0.0
        %1118 = vmatprep.subr.mxu0 0.0
        %1119 = vmatpush1.msra.mxu0 0.0
        %1120 = vmatprep.subr.mxu0 0.0
        %1121 = vmatpush1.msra.mxu0 0.0
        %1122 = vmatprep.subr.mxu0 0.0
        %1123 = vmatpush1.msra.mxu0 0.0
        %1124 = vmatprep.subr.mxu0 0.0
        %1125 = vmatpush1.msra.mxu0 0.0
        %1126 = vmatprep.subr.mxu0 0.0
        %1127 = vmatpush1.msra.mxu0 0.0
        %1128 = vmatprep.subr.mxu0 0.0
        %1129 = vmatpush1.msra.mxu0 0.0
        %1130 = vmatprep.subr.mxu0 0.0
        %1131 = vmatpush1.msra.mxu0 0.0
        %1132 = vmatprep.subr.mxu0 0.0
        %1133 = vmatpush1.msra.mxu0 0.0
        %1134 = vmatprep.subr.mxu0 0.0
        %1135 = vmatpush1.msra.mxu0 0.0
        %1136 = vmatprep.subr.mxu0 0.0
        %v1137 = vand.u32 %v925, 4294901760
        %v1138 = vsub.f32 %v925, %v1137
        %1139 = vmatpush1.msra.mxu0 %v1138
        %1140 = vmatprep.subr.mxu0 0.0
        %v1141 = vand.u32 %v924, 4294901760
        %v1142 = vsub.f32 %v924, %v1141
        %1143 = vmatpush1.msra.mxu0 %v1142
        %1144 = vmatprep.subr.mxu0 0.0
        %1145 = vmatpush2.msra.mxu0 0.0
        %1146 = vmatprep.subr.mxu0 0.0
        %1147 = vmatpush2.msra.mxu0 0.0
        %1148 = vmatprep.subr.mxu0 0.0
        %1149 = vmatpush2.msra.mxu0 0.0
        %1150 = vmatprep.subr.mxu0 0.0
        %1151 = vmatpush2.msra.mxu0 0.0
        %1152 = vmatprep.subr.mxu0 0.0
        %1153 = vmatpush2.msra.mxu0 0.0
        %1154 = vmatprep.subr.mxu0 0.0
        %1155 = vmatpush2.msra.mxu0 0.0
        %1156 = vmatprep.subr.mxu0 0.0
        %1157 = vmatpush2.msra.mxu0 0.0
        %1158 = vmatprep.subr.mxu0 0.0
        %1159 = vmatpush2.msra.mxu0 0.0
        %1160 = vmatprep.subr.mxu0 0.0
        %1161 = vmatpush2.msra.mxu0 0.0
        %1162 = vmatprep.subr.mxu0 0.0
        %1163 = vmatpush2.msra.mxu0 0.0
        %1164 = vmatprep.subr.mxu0 0.0
        %1165 = vmatpush2.msra.mxu0 0.0
        %1166 = vmatprep.subr.mxu0 0.0
        %1167 = vmatpush2.msra.mxu0 0.0
        %1168 = vmatprep.subr.mxu0 0.0
        %1169 = vmatpush2.msra.mxu0 0.0
        %1170 = vmatprep.subr.mxu0 0.0
        %1171 = vmatpush2.msra.mxu0 0.0
        %1172 = vmatprep.subr.mxu0 0.0
        %1173 = vmatpush2.msra.mxu0 0.0
        %1174 = vmatprep.subr.mxu0 0.0
        %1175 = vmatpush2.msra.mxu0 0.0
        %1176 = vmatprep.mubr.f32.mxu0 0.0
        %v1177 = vand.u32 %v929, 4294901760
        %v1178 = vsub.f32 %v929, %v1177
        %1179 = vmatmul.mubr.f32.gmra.mxu0 %v1178
        %v1180 = vpop.f32.mrf.mxu0
        %v1181 = vadd.f32 %v1099, %v1180
        %v1182 = vpop.f32.mrf.mxu0
        %1183 = vmatprep.mubr.f32.mxu0 0.0
        %v1184 = vand.u32 %v932, 4294901760
        %v1185 = vsub.f32 %v932, %v1184
        %1186 = vmatmul.mubr.f32.gmra.mxu0 %v1185
        %v1187 = vpop.f32.mrf.mxu0
        %v1188 = vadd.f32 %v1105, %v1187
        %v1189 = vpop.f32.mrf.mxu0
        %1190 = vdwg.mxu0
        %1191 = vmatprep.subr.mxu0 0.0
        %1192 = vmatpush1.msra.mxu0 0.0
        %1193 = vmatprep.subr.mxu0 0.0
        %1194 = vmatpush1.msra.mxu0 0.0
        %1195 = vmatprep.subr.mxu0 0.0
        %1196 = vmatpush1.msra.mxu0 0.0
        %1197 = vmatprep.subr.mxu0 0.0
        %1198 = vmatpush1.msra.mxu0 0.0
        %1199 = vmatprep.subr.mxu0 0.0
        %1200 = vmatpush1.msra.mxu0 0.0
        %1201 = vmatprep.subr.mxu0 0.0
        %1202 = vmatpush1.msra.mxu0 0.0
        %1203 = vmatprep.subr.mxu0 0.0
        %1204 = vmatpush1.msra.mxu0 0.0
        %1205 = vmatprep.subr.mxu0 0.0
        %1206 = vmatpush1.msra.mxu0 0.0
        %1207 = vmatprep.subr.mxu0 0.0
        %1208 = vmatpush1.msra.mxu0 0.0
        %1209 = vmatprep.subr.mxu0 0.0
        %1210 = vmatpush1.msra.mxu0 0.0
        %1211 = vmatprep.subr.mxu0 0.0
        %1212 = vmatpush1.msra.mxu0 0.0
        %1213 = vmatprep.subr.mxu0 0.0
        %1214 = vmatpush1.msra.mxu0 0.0
        %1215 = vmatprep.subr.mxu0 0.0
        %1216 = vmatpush1.msra.mxu0 0.0
        %1217 = vmatprep.subr.mxu0 0.0
        %1218 = vmatpush1.msra.mxu0 0.0
        %1219 = vmatprep.subr.mxu0 0.0
        %v1220 = vand.u32 %v925, 4294901760
        %1221 = vmatpush1.msra.mxu0 %v1220
        %1222 = vmatprep.subr.mxu0 0.0
        %v1223 = vand.u32 %v924, 4294901760
        %1224 = vmatpush1.msra.mxu0 %v1223
        %1225 = vmatprep.subr.mxu0 0.0
        %1226 = vmatpush2.msra.mxu0 0.0
        %1227 = vmatprep.subr.mxu0 0.0
        %1228 = vmatpush2.msra.mxu0 0.0
        %1229 = vmatprep.subr.mxu0 0.0
        %1230 = vmatpush2.msra.mxu0 0.0
        %1231 = vmatprep.subr.mxu0 0.0
        %1232 = vmatpush2.msra.mxu0 0.0
        %1233 = vmatprep.subr.mxu0 0.0
        %1234 = vmatpush2.msra.mxu0 0.0
        %1235 = vmatprep.subr.mxu0 0.0
        %1236 = vmatpush2.msra.mxu0 0.0
        %1237 = vmatprep.subr.mxu0 0.0
        %1238 = vmatpush2.msra.mxu0 0.0
        %1239 = vmatprep.subr.mxu0 0.0
        %1240 = vmatpush2.msra.mxu0 0.0
        %1241 = vmatprep.subr.mxu0 0.0
        %1242 = vmatpush2.msra.mxu0 0.0
        %1243 = vmatprep.subr.mxu0 0.0
        %1244 = vmatpush2.msra.mxu0 0.0
        %1245 = vmatprep.subr.mxu0 0.0
        %1246 = vmatpush2.msra.mxu0 0.0
        %1247 = vmatprep.subr.mxu0 0.0
        %1248 = vmatpush2.msra.mxu0 0.0
        %1249 = vmatprep.subr.mxu0 0.0
        %1250 = vmatpush2.msra.mxu0 0.0
        %1251 = vmatprep.subr.mxu0 0.0
        %1252 = vmatpush2.msra.mxu0 0.0
        %1253 = vmatprep.subr.mxu0 0.0
        %1254 = vmatpush2.msra.mxu0 0.0
        %1255 = vmatprep.subr.mxu0 0.0
        %1256 = vmatpush2.msra.mxu0 0.0
        %1257 = vmatprep.mubr.f32.mxu0 0.0
        %v1258 = vand.u32 %v929, 4294901760
        %v1259 = vsub.f32 %v929, %v1258
        %v1260 = vand.u32 %v1259, 4294901760
        %1261 = vmatmul.mubr.f32.gmra.mxu0 %v1260
        %v1262 = vpop.f32.mrf.mxu0
        %v1263 = vadd.f32 %v1181, %v1262
        %v1264 = vpop.f32.mrf.mxu0
        %1265 = vmatprep.mubr.f32.mxu0 0.0
        %v1266 = vand.u32 %v932, 4294901760
        %v1267 = vsub.f32 %v932, %v1266
        %v1268 = vand.u32 %v1267, 4294901760
        %1269 = vmatmul.mubr.f32.gmra.mxu0 %v1268
        %v1270 = vpop.f32.mrf.mxu0
        %v1271 = vadd.f32 %v1188, %v1270
        %v1272 = vpop.f32.mrf.mxu0
        %1273 = vdwg.mxu0
        %1274 = vmatprep.subr.mxu0 0.0
        %1275 = vmatpush1.msra.mxu0 0.0
        %1276 = vmatprep.subr.mxu0 0.0
        %1277 = vmatpush1.msra.mxu0 0.0
        %1278 = vmatprep.subr.mxu0 0.0
        %1279 = vmatpush1.msra.mxu0 0.0
        %1280 = vmatprep.subr.mxu0 0.0
        %1281 = vmatpush1.msra.mxu0 0.0
        %1282 = vmatprep.subr.mxu0 0.0
        %1283 = vmatpush1.msra.mxu0 0.0
        %1284 = vmatprep.subr.mxu0 0.0
        %1285 = vmatpush1.msra.mxu0 0.0
        %1286 = vmatprep.subr.mxu0 0.0
        %1287 = vmatpush1.msra.mxu0 0.0
        %1288 = vmatprep.subr.mxu0 0.0
        %1289 = vmatpush1.msra.mxu0 0.0
        %1290 = vmatprep.subr.mxu0 0.0
        %1291 = vmatpush1.msra.mxu0 0.0
        %1292 = vmatprep.subr.mxu0 0.0
        %1293 = vmatpush1.msra.mxu0 0.0
        %1294 = vmatprep.subr.mxu0 0.0
        %1295 = vmatpush1.msra.mxu0 0.0
        %1296 = vmatprep.subr.mxu0 0.0
        %1297 = vmatpush1.msra.mxu0 0.0
        %1298 = vmatprep.subr.mxu0 0.0
        %1299 = vmatpush1.msra.mxu0 0.0
        %1300 = vmatprep.subr.mxu0 0.0
        %1301 = vmatpush1.msra.mxu0 0.0
        %1302 = vmatprep.subr.mxu0 0.0
        %v1303 = vand.u32 %v925, 4294901760
        %v1304 = vsub.f32 %v925, %v1303
        %v1305 = vand.u32 %v1304, 4294901760
        %1306 = vmatpush1.msra.mxu0 %v1305
        %1307 = vmatprep.subr.mxu0 0.0
        %v1308 = vand.u32 %v924, 4294901760
        %v1309 = vsub.f32 %v924, %v1308
        %v1310 = vand.u32 %v1309, 4294901760
        %1311 = vmatpush1.msra.mxu0 %v1310
        %1312 = vmatprep.subr.mxu0 0.0
        %1313 = vmatpush2.msra.mxu0 0.0
        %1314 = vmatprep.subr.mxu0 0.0
        %1315 = vmatpush2.msra.mxu0 0.0
        %1316 = vmatprep.subr.mxu0 0.0
        %1317 = vmatpush2.msra.mxu0 0.0
        %1318 = vmatprep.subr.mxu0 0.0
        %1319 = vmatpush2.msra.mxu0 0.0
        %1320 = vmatprep.subr.mxu0 0.0
        %1321 = vmatpush2.msra.mxu0 0.0
        %1322 = vmatprep.subr.mxu0 0.0
        %1323 = vmatpush2.msra.mxu0 0.0
        %1324 = vmatprep.subr.mxu0 0.0
        %1325 = vmatpush2.msra.mxu0 0.0
        %1326 = vmatprep.subr.mxu0 0.0
        %1327 = vmatpush2.msra.mxu0 0.0
        %1328 = vmatprep.subr.mxu0 0.0
        %1329 = vmatpush2.msra.mxu0 0.0
        %1330 = vmatprep.subr.mxu0 0.0
        %1331 = vmatpush2.msra.mxu0 0.0
        %1332 = vmatprep.subr.mxu0 0.0
        %1333 = vmatpush2.msra.mxu0 0.0
        %1334 = vmatprep.subr.mxu0 0.0
        %1335 = vmatpush2.msra.mxu0 0.0
        %1336 = vmatprep.subr.mxu0 0.0
        %1337 = vmatpush2.msra.mxu0 0.0
        %1338 = vmatprep.subr.mxu0 0.0
        %1339 = vmatpush2.msra.mxu0 0.0
        %1340 = vmatprep.subr.mxu0 0.0
        %1341 = vmatpush2.msra.mxu0 0.0
        %1342 = vmatprep.subr.mxu0 0.0
        %1343 = vmatpush2.msra.mxu0 0.0
        %1344 = vmatprep.mubr.f32.mxu0 0.0
        %v1345 = vand.u32 %v929, 4294901760
        %1346 = vmatmul.mubr.f32.gmra.mxu0 %v1345
        %v1347 = vpop.f32.mrf.mxu0
        %v1348 = vadd.f32 %v1263, %v1347
        %v1349 = vpop.f32.mrf.mxu0
        %1350 = vmatprep.mubr.f32.mxu0 0.0
        %v1351 = vand.u32 %v932, 4294901760
        %1352 = vmatmul.mubr.f32.gmra.mxu0 %v1351
        %v1353 = vpop.f32.mrf.mxu0
        %v1354 = vadd.f32 %v1271, %v1353
        %v1355 = vpop.f32.mrf.mxu0
        %1356 = vdwg.mxu0
        %1357 = vmatprep.subr.mxu0 0.0
        %1358 = vmatpush1.msra.mxu0 0.0
        %1359 = vmatprep.subr.mxu0 0.0
        %1360 = vmatpush1.msra.mxu0 0.0
        %1361 = vmatprep.subr.mxu0 0.0
        %1362 = vmatpush1.msra.mxu0 0.0
        %1363 = vmatprep.subr.mxu0 0.0
        %1364 = vmatpush1.msra.mxu0 0.0
        %1365 = vmatprep.subr.mxu0 0.0
        %1366 = vmatpush1.msra.mxu0 0.0
        %1367 = vmatprep.subr.mxu0 0.0
        %1368 = vmatpush1.msra.mxu0 0.0
        %1369 = vmatprep.subr.mxu0 0.0
        %1370 = vmatpush1.msra.mxu0 0.0
        %1371 = vmatprep.subr.mxu0 0.0
        %1372 = vmatpush1.msra.mxu0 0.0
        %1373 = vmatprep.subr.mxu0 0.0
        %1374 = vmatpush1.msra.mxu0 0.0
        %1375 = vmatprep.subr.mxu0 0.0
        %1376 = vmatpush1.msra.mxu0 0.0
        %1377 = vmatprep.subr.mxu0 0.0
        %1378 = vmatpush1.msra.mxu0 0.0
        %1379 = vmatprep.subr.mxu0 0.0
        %1380 = vmatpush1.msra.mxu0 0.0
        %1381 = vmatprep.subr.mxu0 0.0
        %1382 = vmatpush1.msra.mxu0 0.0
        %1383 = vmatprep.subr.mxu0 0.0
        %1384 = vmatpush1.msra.mxu0 0.0
        %1385 = vmatprep.subr.mxu0 0.0
        %v1386 = vand.u32 %v925, 4294901760
        %1387 = vmatpush1.msra.mxu0 %v1386
        %1388 = vmatprep.subr.mxu0 0.0
        %v1389 = vand.u32 %v924, 4294901760
        %1390 = vmatpush1.msra.mxu0 %v1389
        %1391 = vmatprep.subr.mxu0 0.0
        %1392 = vmatpush2.msra.mxu0 0.0
        %1393 = vmatprep.subr.mxu0 0.0
        %1394 = vmatpush2.msra.mxu0 0.0
        %1395 = vmatprep.subr.mxu0 0.0
        %1396 = vmatpush2.msra.mxu0 0.0
        %1397 = vmatprep.subr.mxu0 0.0
        %1398 = vmatpush2.msra.mxu0 0.0
        %1399 = vmatprep.subr.mxu0 0.0
        %1400 = vmatpush2.msra.mxu0 0.0
        %1401 = vmatprep.subr.mxu0 0.0
        %1402 = vmatpush2.msra.mxu0 0.0
        %1403 = vmatprep.subr.mxu0 0.0
        %1404 = vmatpush2.msra.mxu0 0.0
        %1405 = vmatprep.subr.mxu0 0.0
        %1406 = vmatpush2.msra.mxu0 0.0
        %1407 = vmatprep.subr.mxu0 0.0
        %1408 = vmatpush2.msra.mxu0 0.0
        %1409 = vmatprep.subr.mxu0 0.0
        %1410 = vmatpush2.msra.mxu0 0.0
        %1411 = vmatprep.subr.mxu0 0.0
        %1412 = vmatpush2.msra.mxu0 0.0
        %1413 = vmatprep.subr.mxu0 0.0
        %1414 = vmatpush2.msra.mxu0 0.0
        %1415 = vmatprep.subr.mxu0 0.0
        %1416 = vmatpush2.msra.mxu0 0.0
        %1417 = vmatprep.subr.mxu0 0.0
        %1418 = vmatpush2.msra.mxu0 0.0
        %1419 = vmatprep.subr.mxu0 0.0
        %1420 = vmatpush2.msra.mxu0 0.0
        %1421 = vmatprep.subr.mxu0 0.0
        %1422 = vmatpush2.msra.mxu0 0.0
        %1423 = vmatprep.mubr.f32.mxu0 0.0
        %v1424 = vand.u32 %v929, 4294901760
        %1425 = vmatmul.mubr.f32.gmra.mxu0 %v1424
        %v1426 = vpop.f32.mrf.mxu0
        %v1427 = vadd.f32 %v1348, %v1426
        %v1428 = vpop.f32.mrf.mxu0
        %1429 = vmatprep.mubr.f32.mxu0 0.0
        %v1430 = vand.u32 %v932, 4294901760
        %1431 = vmatmul.mubr.f32.gmra.mxu0 %v1430
        %v1432 = vpop.f32.mrf.mxu0
        %v1433 = vadd.f32 %v1354, %v1432
        %v1434 = vpop.f32.mrf.mxu0
        %1435 = vdwg.mxu0
        %v1436 = vadd.f32 %v1427, %v292
        %s1437 = scalar_lea.vmem [#allocation2], 8
        %v1438 = vld [vmem:[%s1437] sm:$0xff]
        %1440 = vrot.lane.b32.xlu0 %v1438, 2
        %v1441 = vpop.permute.xlu0 %1440
        %1444 = vrot.lane.b32.xlu0 %v1436, 2
        %v1445 = vpop.permute.xlu0 %1444
        %vm1447 = vcmask 15360
        %v1448 = vsel %vm1447, %v1441, %v1445
        %1449 = vst [vmem:[%s1437] sm:$0xff] %v1436
        %s1450 = scalar_lea.vmem %s2, 32
        %v1451 = vld [vmem:[%s1450] sm:$0xff]
        %v1452 = vld [vmem:[%s1450 + $0x8] sm:$0xff]
        %v1453 = vld [vmem:[%s1450 + $0x10] sm:$0xff]
        %v1454 = vld [vmem:[%s1450 + $0x18] sm:$0xff]
        %v1456 = vsel %vm309, %v1451, 0
        %v1459 = vsel %vm309, %v1452, 0
        %v1462 = vsel %vm309, %v1453, 0
        %v1465 = vsel %vm309, %v1454, 0
        %1467 = vmatprep.subr.mxu0 0.0
        %1468 = vmatpush1.msra.mxu0 0.0
        %1469 = vmatprep.subr.mxu0 0.0
        %1470 = vmatpush1.msra.mxu0 0.0
        %1471 = vmatprep.subr.mxu0 0.0
        %1472 = vmatpush1.msra.mxu0 0.0
        %1473 = vmatprep.subr.mxu0 0.0
        %1474 = vmatpush1.msra.mxu0 0.0
        %1475 = vmatprep.subr.mxu0 0.0
        %1476 = vmatpush1.msra.mxu0 0.0
        %1477 = vmatprep.subr.mxu0 0.0
        %1478 = vmatpush1.msra.mxu0 0.0
        %1479 = vmatprep.subr.mxu0 0.0
        %1480 = vmatpush1.msra.mxu0 0.0
        %1481 = vmatprep.subr.mxu0 0.0
        %1482 = vmatpush1.msra.mxu0 0.0
        %1483 = vmatprep.subr.mxu0 0.0
        %1484 = vmatpush1.msra.mxu0 0.0
        %1485 = vmatprep.subr.mxu0 0.0
        %1486 = vmatpush1.msra.mxu0 0.0
        %1487 = vmatprep.subr.mxu0 0.0
        %1488 = vmatpush1.msra.mxu0 0.0
        %1489 = vmatprep.subr.mxu0 0.0
        %1490 = vmatpush1.msra.mxu0 0.0
        %1491 = vmatprep.subr.mxu0 0.0
        %1492 = vmatpush1.msra.mxu0 0.0
        %1493 = vmatprep.subr.mxu0 0.0
        %1494 = vmatpush1.msra.mxu0 0.0
        %1495 = vmatprep.subr.mxu0 0.0
        %v1496 = vand.u32 %v1448, 4294901760
        %1497 = vmatpush1.msra.mxu0 %v1496
        %1498 = vmatprep.subr.mxu0 0.0
        %v1499 = vand.u32 %v1436, 4294901760
        %1500 = vmatpush1.msra.mxu0 %v1499
        %1501 = vmatprep.subr.mxu0 0.0
        %1502 = vmatpush2.msra.mxu0 0.0
        %1503 = vmatprep.subr.mxu0 0.0
        %1504 = vmatpush2.msra.mxu0 0.0
        %1505 = vmatprep.subr.mxu0 0.0
        %1506 = vmatpush2.msra.mxu0 0.0
        %1507 = vmatprep.subr.mxu0 0.0
        %1508 = vmatpush2.msra.mxu0 0.0
        %1509 = vmatprep.subr.mxu0 0.0
        %1510 = vmatpush2.msra.mxu0 0.0
        %1511 = vmatprep.subr.mxu0 0.0
        %1512 = vmatpush2.msra.mxu0 0.0
        %1513 = vmatprep.subr.mxu0 0.0
        %1514 = vmatpush2.msra.mxu0 0.0
        %1515 = vmatprep.subr.mxu0 0.0
        %1516 = vmatpush2.msra.mxu0 0.0
        %1517 = vmatprep.subr.mxu0 0.0
        %1518 = vmatpush2.msra.mxu0 0.0
        %1519 = vmatprep.subr.mxu0 0.0
        %1520 = vmatpush2.msra.mxu0 0.0
        %1521 = vmatprep.subr.mxu0 0.0
        %1522 = vmatpush2.msra.mxu0 0.0
        %1523 = vmatprep.subr.mxu0 0.0
        %1524 = vmatpush2.msra.mxu0 0.0
        %1525 = vmatprep.subr.mxu0 0.0
        %1526 = vmatpush2.msra.mxu0 0.0
        %1527 = vmatprep.subr.mxu0 0.0
        %1528 = vmatpush2.msra.mxu0 0.0
        %1529 = vmatprep.subr.mxu0 0.0
        %1530 = vmatpush2.msra.mxu0 0.0
        %1531 = vmatprep.subr.mxu0 0.0
        %1532 = vmatpush2.msra.mxu0 0.0
        %1533 = vmatprep.mubr.f32.mxu0 0.0
        %v1534 = vand.u32 %v1456, 4294901760
        %v1535 = vsub.f32 %v1456, %v1534
        %v1536 = vand.u32 %v1535, 4294901760
        %v1537 = vsub.f32 %v1535, %v1536
        %v1538 = vand.u32 %v1537, 4294901760
        %1539 = vmatmul.mubr.f32.gmra.mxu0 %v1538
        %v1540 = vpop.f32.mrf.mxu0
        %v1541 = vadd.f32 0.0, %v1540
        %v1542 = vpop.f32.mrf.mxu0
        %1543 = vmatprep.mubr.f32.mxu0 0.0
        %v1544 = vand.u32 %v1459, 4294901760
        %v1545 = vsub.f32 %v1459, %v1544
        %v1546 = vand.u32 %v1545, 4294901760
        %v1547 = vsub.f32 %v1545, %v1546
        %v1548 = vand.u32 %v1547, 4294901760
        %1549 = vmatmul.mubr.f32.gmra.mxu0 %v1548
        %v1550 = vpop.f32.mrf.mxu0
        %v1551 = vadd.f32 0.0, %v1550
        %v1552 = vpop.f32.mrf.mxu0
        %1553 = vmatprep.mubr.f32.mxu0 0.0
        %v1554 = vand.u32 %v1462, 4294901760
        %v1555 = vsub.f32 %v1462, %v1554
        %v1556 = vand.u32 %v1555, 4294901760
        %v1557 = vsub.f32 %v1555, %v1556
        %v1558 = vand.u32 %v1557, 4294901760
        %1559 = vmatmul.mubr.f32.gmra.mxu0 %v1558
        %v1560 = vpop.f32.mrf.mxu0
        %v1561 = vadd.f32 0.0, %v1560
        %v1562 = vpop.f32.mrf.mxu0
        %1563 = vmatprep.mubr.f32.mxu0 0.0
        %v1564 = vand.u32 %v1465, 4294901760
        %v1565 = vsub.f32 %v1465, %v1564
        %v1566 = vand.u32 %v1565, 4294901760
        %v1567 = vsub.f32 %v1565, %v1566
        %v1568 = vand.u32 %v1567, 4294901760
        %1569 = vmatmul.mubr.f32.gmra.mxu0 %v1568
        %v1570 = vpop.f32.mrf.mxu0
        %v1571 = vadd.f32 0.0, %v1570
        %v1572 = vpop.f32.mrf.mxu0
        %1573 = vdwg.mxu0
        %1574 = vmatprep.subr.mxu0 0.0
        %1575 = vmatpush1.msra.mxu0 0.0
        %1576 = vmatprep.subr.mxu0 0.0
        %1577 = vmatpush1.msra.mxu0 0.0
        %1578 = vmatprep.subr.mxu0 0.0
        %1579 = vmatpush1.msra.mxu0 0.0
        %1580 = vmatprep.subr.mxu0 0.0
        %1581 = vmatpush1.msra.mxu0 0.0
        %1582 = vmatprep.subr.mxu0 0.0
        %1583 = vmatpush1.msra.mxu0 0.0
        %1584 = vmatprep.subr.mxu0 0.0
        %1585 = vmatpush1.msra.mxu0 0.0
        %1586 = vmatprep.subr.mxu0 0.0
        %1587 = vmatpush1.msra.mxu0 0.0
        %1588 = vmatprep.subr.mxu0 0.0
        %1589 = vmatpush1.msra.mxu0 0.0
        %1590 = vmatprep.subr.mxu0 0.0
        %1591 = vmatpush1.msra.mxu0 0.0
        %1592 = vmatprep.subr.mxu0 0.0
        %1593 = vmatpush1.msra.mxu0 0.0
        %1594 = vmatprep.subr.mxu0 0.0
        %1595 = vmatpush1.msra.mxu0 0.0
        %1596 = vmatprep.subr.mxu0 0.0
        %1597 = vmatpush1.msra.mxu0 0.0
        %1598 = vmatprep.subr.mxu0 0.0
        %1599 = vmatpush1.msra.mxu0 0.0
        %1600 = vmatprep.subr.mxu0 0.0
        %1601 = vmatpush1.msra.mxu0 0.0
        %1602 = vmatprep.subr.mxu0 0.0
        %v1603 = vand.u32 %v1448, 4294901760
        %v1604 = vsub.f32 %v1448, %v1603
        %v1605 = vand.u32 %v1604, 4294901760
        %v1606 = vsub.f32 %v1604, %v1605
        %v1607 = vand.u32 %v1606, 4294901760
        %1608 = vmatpush1.msra.mxu0 %v1607
        %1609 = vmatprep.subr.mxu0 0.0
        %v1610 = vand.u32 %v1436, 4294901760
        %v1611 = vsub.f32 %v1436, %v1610
        %v1612 = vand.u32 %v1611, 4294901760
        %v1613 = vsub.f32 %v1611, %v1612
        %v1614 = vand.u32 %v1613, 4294901760
        %1615 = vmatpush1.msra.mxu0 %v1614
        %1616 = vmatprep.subr.mxu0 0.0
        %1617 = vmatpush2.msra.mxu0 0.0
        %1618 = vmatprep.subr.mxu0 0.0
        %1619 = vmatpush2.msra.mxu0 0.0
        %1620 = vmatprep.subr.mxu0 0.0
        %1621 = vmatpush2.msra.mxu0 0.0
        %1622 = vmatprep.subr.mxu0 0.0
        %1623 = vmatpush2.msra.mxu0 0.0
        %1624 = vmatprep.subr.mxu0 0.0
        %1625 = vmatpush2.msra.mxu0 0.0
        %1626 = vmatprep.subr.mxu0 0.0
        %1627 = vmatpush2.msra.mxu0 0.0
        %1628 = vmatprep.subr.mxu0 0.0
        %1629 = vmatpush2.msra.mxu0 0.0
        %1630 = vmatprep.subr.mxu0 0.0
        %1631 = vmatpush2.msra.mxu0 0.0
        %1632 = vmatprep.subr.mxu0 0.0
        %1633 = vmatpush2.msra.mxu0 0.0
        %1634 = vmatprep.subr.mxu0 0.0
        %1635 = vmatpush2.msra.mxu0 0.0
        %1636 = vmatprep.subr.mxu0 0.0
        %1637 = vmatpush2.msra.mxu0 0.0
        %1638 = vmatprep.subr.mxu0 0.0
        %1639 = vmatpush2.msra.mxu0 0.0
        %1640 = vmatprep.subr.mxu0 0.0
        %1641 = vmatpush2.msra.mxu0 0.0
        %1642 = vmatprep.subr.mxu0 0.0
        %1643 = vmatpush2.msra.mxu0 0.0
        %1644 = vmatprep.subr.mxu0 0.0
        %1645 = vmatpush2.msra.mxu0 0.0
        %1646 = vmatprep.subr.mxu0 0.0
        %1647 = vmatpush2.msra.mxu0 0.0
        %1648 = vmatprep.mubr.f32.mxu0 0.0
        %v1649 = vand.u32 %v1456, 4294901760
        %1650 = vmatmul.mubr.f32.gmra.mxu0 %v1649
        %v1651 = vpop.f32.mrf.mxu0
        %v1652 = vadd.f32 %v1541, %v1651
        %v1653 = vpop.f32.mrf.mxu0
        %1654 = vmatprep.mubr.f32.mxu0 0.0
        %v1655 = vand.u32 %v1459, 4294901760
        %1656 = vmatmul.mubr.f32.gmra.mxu0 %v1655
        %v1657 = vpop.f32.mrf.mxu0
        %v1658 = vadd.f32 %v1551, %v1657
        %v1659 = vpop.f32.mrf.mxu0
        %1660 = vmatprep.mubr.f32.mxu0 0.0
        %v1661 = vand.u32 %v1462, 4294901760
        %1662 = vmatmul.mubr.f32.gmra.mxu0 %v1661
        %v1663 = vpop.f32.mrf.mxu0
        %v1664 = vadd.f32 %v1561, %v1663
        %v1665 = vpop.f32.mrf.mxu0
        %1666 = vmatprep.mubr.f32.mxu0 0.0
        %v1667 = vand.u32 %v1465, 4294901760
        %1668 = vmatmul.mubr.f32.gmra.mxu0 %v1667
        %v1669 = vpop.f32.mrf.mxu0
        %v1670 = vadd.f32 %v1571, %v1669
        %v1671 = vpop.f32.mrf.mxu0
        %1672 = vdwg.mxu0
        %1673 = vmatprep.subr.mxu0 0.0
        %1674 = vmatpush1.msra.mxu0 0.0
        %1675 = vmatprep.subr.mxu0 0.0
        %1676 = vmatpush1.msra.mxu0 0.0
        %1677 = vmatprep.subr.mxu0 0.0
        %1678 = vmatpush1.msra.mxu0 0.0
        %1679 = vmatprep.subr.mxu0 0.0
        %1680 = vmatpush1.msra.mxu0 0.0
        %1681 = vmatprep.subr.mxu0 0.0
        %1682 = vmatpush1.msra.mxu0 0.0
        %1683 = vmatprep.subr.mxu0 0.0
        %1684 = vmatpush1.msra.mxu0 0.0
        %1685 = vmatprep.subr.mxu0 0.0
        %1686 = vmatpush1.msra.mxu0 0.0
        %1687 = vmatprep.subr.mxu0 0.0
        %1688 = vmatpush1.msra.mxu0 0.0
        %1689 = vmatprep.subr.mxu0 0.0
        %1690 = vmatpush1.msra.mxu0 0.0
        %1691 = vmatprep.subr.mxu0 0.0
        %1692 = vmatpush1.msra.mxu0 0.0
        %1693 = vmatprep.subr.mxu0 0.0
        %1694 = vmatpush1.msra.mxu0 0.0
        %1695 = vmatprep.subr.mxu0 0.0
        %1696 = vmatpush1.msra.mxu0 0.0
        %1697 = vmatprep.subr.mxu0 0.0
        %1698 = vmatpush1.msra.mxu0 0.0
        %1699 = vmatprep.subr.mxu0 0.0
        %1700 = vmatpush1.msra.mxu0 0.0
        %1701 = vmatprep.subr.mxu0 0.0
        %v1702 = vand.u32 %v1448, 4294901760
        %v1703 = vsub.f32 %v1448, %v1702
        %1704 = vmatpush1.msra.mxu0 %v1703
        %1705 = vmatprep.subr.mxu0 0.0
        %v1706 = vand.u32 %v1436, 4294901760
        %v1707 = vsub.f32 %v1436, %v1706
        %1708 = vmatpush1.msra.mxu0 %v1707
        %1709 = vmatprep.subr.mxu0 0.0
        %1710 = vmatpush2.msra.mxu0 0.0
        %1711 = vmatprep.subr.mxu0 0.0
        %1712 = vmatpush2.msra.mxu0 0.0
        %1713 = vmatprep.subr.mxu0 0.0
        %1714 = vmatpush2.msra.mxu0 0.0
        %1715 = vmatprep.subr.mxu0 0.0
        %1716 = vmatpush2.msra.mxu0 0.0
        %1717 = vmatprep.subr.mxu0 0.0
        %1718 = vmatpush2.msra.mxu0 0.0
        %1719 = vmatprep.subr.mxu0 0.0
        %1720 = vmatpush2.msra.mxu0 0.0
        %1721 = vmatprep.subr.mxu0 0.0
        %1722 = vmatpush2.msra.mxu0 0.0
        %1723 = vmatprep.subr.mxu0 0.0
        %1724 = vmatpush2.msra.mxu0 0.0
        %1725 = vmatprep.subr.mxu0 0.0
        %1726 = vmatpush2.msra.mxu0 0.0
        %1727 = vmatprep.subr.mxu0 0.0
        %1728 = vmatpush2.msra.mxu0 0.0
        %1729 = vmatprep.subr.mxu0 0.0
        %1730 = vmatpush2.msra.mxu0 0.0
        %1731 = vmatprep.subr.mxu0 0.0
        %1732 = vmatpush2.msra.mxu0 0.0
        %1733 = vmatprep.subr.mxu0 0.0
        %1734 = vmatpush2.msra.mxu0 0.0
        %1735 = vmatprep.subr.mxu0 0.0
        %1736 = vmatpush2.msra.mxu0 0.0
        %1737 = vmatprep.subr.mxu0 0.0
        %1738 = vmatpush2.msra.mxu0 0.0
        %1739 = vmatprep.subr.mxu0 0.0
        %1740 = vmatpush2.msra.mxu0 0.0
        %1741 = vmatprep.mubr.f32.mxu0 0.0
        %v1742 = vand.u32 %v1456, 4294901760
        %v1743 = vsub.f32 %v1456, %v1742
        %1744 = vmatmul.mubr.f32.gmra.mxu0 %v1743
        %v1745 = vpop.f32.mrf.mxu0
        %v1746 = vadd.f32 %v1652, %v1745
        %v1747 = vpop.f32.mrf.mxu0
        %1748 = vmatprep.mubr.f32.mxu0 0.0
        %v1749 = vand.u32 %v1459, 4294901760
        %v1750 = vsub.f32 %v1459, %v1749
        %1751 = vmatmul.mubr.f32.gmra.mxu0 %v1750
        %v1752 = vpop.f32.mrf.mxu0
        %v1753 = vadd.f32 %v1658, %v1752
        %v1754 = vpop.f32.mrf.mxu0
        %1755 = vmatprep.mubr.f32.mxu0 0.0
        %v1756 = vand.u32 %v1462, 4294901760
        %v1757 = vsub.f32 %v1462, %v1756
        %1758 = vmatmul.mubr.f32.gmra.mxu0 %v1757
        %v1759 = vpop.f32.mrf.mxu0
        %v1760 = vadd.f32 %v1664, %v1759
        %v1761 = vpop.f32.mrf.mxu0
        %1762 = vmatprep.mubr.f32.mxu0 0.0
        %v1763 = vand.u32 %v1465, 4294901760
        %v1764 = vsub.f32 %v1465, %v1763
        %1765 = vmatmul.mubr.f32.gmra.mxu0 %v1764
        %v1766 = vpop.f32.mrf.mxu0
        %v1767 = vadd.f32 %v1670, %v1766
        %v1768 = vpop.f32.mrf.mxu0
        %1769 = vdwg.mxu0
        %1770 = vmatprep.subr.mxu0 0.0
        %1771 = vmatpush1.msra.mxu0 0.0
        %1772 = vmatprep.subr.mxu0 0.0
        %1773 = vmatpush1.msra.mxu0 0.0
        %1774 = vmatprep.subr.mxu0 0.0
        %1775 = vmatpush1.msra.mxu0 0.0
        %1776 = vmatprep.subr.mxu0 0.0
        %1777 = vmatpush1.msra.mxu0 0.0
        %1778 = vmatprep.subr.mxu0 0.0
        %1779 = vmatpush1.msra.mxu0 0.0
        %1780 = vmatprep.subr.mxu0 0.0
        %1781 = vmatpush1.msra.mxu0 0.0
        %1782 = vmatprep.subr.mxu0 0.0
        %1783 = vmatpush1.msra.mxu0 0.0
        %1784 = vmatprep.subr.mxu0 0.0
        %1785 = vmatpush1.msra.mxu0 0.0
        %1786 = vmatprep.subr.mxu0 0.0
        %1787 = vmatpush1.msra.mxu0 0.0
        %1788 = vmatprep.subr.mxu0 0.0
        %1789 = vmatpush1.msra.mxu0 0.0
        %1790 = vmatprep.subr.mxu0 0.0
        %1791 = vmatpush1.msra.mxu0 0.0
        %1792 = vmatprep.subr.mxu0 0.0
        %1793 = vmatpush1.msra.mxu0 0.0
        %1794 = vmatprep.subr.mxu0 0.0
        %1795 = vmatpush1.msra.mxu0 0.0
        %1796 = vmatprep.subr.mxu0 0.0
        %1797 = vmatpush1.msra.mxu0 0.0
        %1798 = vmatprep.subr.mxu0 0.0
        %v1799 = vand.u32 %v1448, 4294901760
        %1800 = vmatpush1.msra.mxu0 %v1799
        %1801 = vmatprep.subr.mxu0 0.0
        %v1802 = vand.u32 %v1436, 4294901760
        %1803 = vmatpush1.msra.mxu0 %v1802
        %1804 = vmatprep.subr.mxu0 0.0
        %1805 = vmatpush2.msra.mxu0 0.0
        %1806 = vmatprep.subr.mxu0 0.0
        %1807 = vmatpush2.msra.mxu0 0.0
        %1808 = vmatprep.subr.mxu0 0.0
        %1809 = vmatpush2.msra.mxu0 0.0
        %1810 = vmatprep.subr.mxu0 0.0
        %1811 = vmatpush2.msra.mxu0 0.0
        %1812 = vmatprep.subr.mxu0 0.0
        %1813 = vmatpush2.msra.mxu0 0.0
        %1814 = vmatprep.subr.mxu0 0.0
        %1815 = vmatpush2.msra.mxu0 0.0
        %1816 = vmatprep.subr.mxu0 0.0
        %1817 = vmatpush2.msra.mxu0 0.0
        %1818 = vmatprep.subr.mxu0 0.0
        %1819 = vmatpush2.msra.mxu0 0.0
        %1820 = vmatprep.subr.mxu0 0.0
        %1821 = vmatpush2.msra.mxu0 0.0
        %1822 = vmatprep.subr.mxu0 0.0
        %1823 = vmatpush2.msra.mxu0 0.0
        %1824 = vmatprep.subr.mxu0 0.0
        %1825 = vmatpush2.msra.mxu0 0.0
        %1826 = vmatprep.subr.mxu0 0.0
        %1827 = vmatpush2.msra.mxu0 0.0
        %1828 = vmatprep.subr.mxu0 0.0
        %1829 = vmatpush2.msra.mxu0 0.0
        %1830 = vmatprep.subr.mxu0 0.0
        %1831 = vmatpush2.msra.mxu0 0.0
        %1832 = vmatprep.subr.mxu0 0.0
        %1833 = vmatpush2.msra.mxu0 0.0
        %1834 = vmatprep.subr.mxu0 0.0
        %1835 = vmatpush2.msra.mxu0 0.0
        %1836 = vmatprep.mubr.f32.mxu0 0.0
        %v1837 = vand.u32 %v1456, 4294901760
        %v1838 = vsub.f32 %v1456, %v1837
        %v1839 = vand.u32 %v1838, 4294901760
        %1840 = vmatmul.mubr.f32.gmra.mxu0 %v1839
        %v1841 = vpop.f32.mrf.mxu0
        %v1842 = vadd.f32 %v1746, %v1841
        %v1843 = vpop.f32.mrf.mxu0
        %1844 = vmatprep.mubr.f32.mxu0 0.0
        %v1845 = vand.u32 %v1459, 4294901760
        %v1846 = vsub.f32 %v1459, %v1845
        %v1847 = vand.u32 %v1846, 4294901760
        %1848 = vmatmul.mubr.f32.gmra.mxu0 %v1847
        %v1849 = vpop.f32.mrf.mxu0
        %v1850 = vadd.f32 %v1753, %v1849
        %v1851 = vpop.f32.mrf.mxu0
        %1852 = vmatprep.mubr.f32.mxu0 0.0
        %v1853 = vand.u32 %v1462, 4294901760
        %v1854 = vsub.f32 %v1462, %v1853
        %v1855 = vand.u32 %v1854, 4294901760
        %1856 = vmatmul.mubr.f32.gmra.mxu0 %v1855
        %v1857 = vpop.f32.mrf.mxu0
        %v1858 = vadd.f32 %v1760, %v1857
        %v1859 = vpop.f32.mrf.mxu0
        %1860 = vmatprep.mubr.f32.mxu0 0.0
        %v1861 = vand.u32 %v1465, 4294901760
        %v1862 = vsub.f32 %v1465, %v1861
        %v1863 = vand.u32 %v1862, 4294901760
        %1864 = vmatmul.mubr.f32.gmra.mxu0 %v1863
        %v1865 = vpop.f32.mrf.mxu0
        %v1866 = vadd.f32 %v1767, %v1865
        %v1867 = vpop.f32.mrf.mxu0
        %1868 = vdwg.mxu0
        %1869 = vmatprep.subr.mxu0 0.0
        %1870 = vmatpush1.msra.mxu0 0.0
        %1871 = vmatprep.subr.mxu0 0.0
        %1872 = vmatpush1.msra.mxu0 0.0
        %1873 = vmatprep.subr.mxu0 0.0
        %1874 = vmatpush1.msra.mxu0 0.0
        %1875 = vmatprep.subr.mxu0 0.0
        %1876 = vmatpush1.msra.mxu0 0.0
        %1877 = vmatprep.subr.mxu0 0.0
        %1878 = vmatpush1.msra.mxu0 0.0
        %1879 = vmatprep.subr.mxu0 0.0
        %1880 = vmatpush1.msra.mxu0 0.0
        %1881 = vmatprep.subr.mxu0 0.0
        %1882 = vmatpush1.msra.mxu0 0.0
        %1883 = vmatprep.subr.mxu0 0.0
        %1884 = vmatpush1.msra.mxu0 0.0
        %1885 = vmatprep.subr.mxu0 0.0
        %1886 = vmatpush1.msra.mxu0 0.0
        %1887 = vmatprep.subr.mxu0 0.0
        %1888 = vmatpush1.msra.mxu0 0.0
        %1889 = vmatprep.subr.mxu0 0.0
        %1890 = vmatpush1.msra.mxu0 0.0
        %1891 = vmatprep.subr.mxu0 0.0
        %1892 = vmatpush1.msra.mxu0 0.0
        %1893 = vmatprep.subr.mxu0 0.0
        %1894 = vmatpush1.msra.mxu0 0.0
        %1895 = vmatprep.subr.mxu0 0.0
        %1896 = vmatpush1.msra.mxu0 0.0
        %1897 = vmatprep.subr.mxu0 0.0
        %v1898 = vand.u32 %v1448, 4294901760
        %v1899 = vsub.f32 %v1448, %v1898
        %v1900 = vand.u32 %v1899, 4294901760
        %1901 = vmatpush1.msra.mxu0 %v1900
        %1902 = vmatprep.subr.mxu0 0.0
        %v1903 = vand.u32 %v1436, 4294901760
        %v1904 = vsub.f32 %v1436, %v1903
        %v1905 = vand.u32 %v1904, 4294901760
        %1906 = vmatpush1.msra.mxu0 %v1905
        %1907 = vmatprep.subr.mxu0 0.0
        %1908 = vmatpush2.msra.mxu0 0.0
        %1909 = vmatprep.subr.mxu0 0.0
        %1910 = vmatpush2.msra.mxu0 0.0
        %1911 = vmatprep.subr.mxu0 0.0
        %1912 = vmatpush2.msra.mxu0 0.0
        %1913 = vmatprep.subr.mxu0 0.0
        %1914 = vmatpush2.msra.mxu0 0.0
        %1915 = vmatprep.subr.mxu0 0.0
        %1916 = vmatpush2.msra.mxu0 0.0
        %1917 = vmatprep.subr.mxu0 0.0
        %1918 = vmatpush2.msra.mxu0 0.0
        %1919 = vmatprep.subr.mxu0 0.0
        %1920 = vmatpush2.msra.mxu0 0.0
        %1921 = vmatprep.subr.mxu0 0.0
        %1922 = vmatpush2.msra.mxu0 0.0
        %1923 = vmatprep.subr.mxu0 0.0
        %1924 = vmatpush2.msra.mxu0 0.0
        %1925 = vmatprep.subr.mxu0 0.0
        %1926 = vmatpush2.msra.mxu0 0.0
        %1927 = vmatprep.subr.mxu0 0.0
        %1928 = vmatpush2.msra.mxu0 0.0
        %1929 = vmatprep.subr.mxu0 0.0
        %1930 = vmatpush2.msra.mxu0 0.0
        %1931 = vmatprep.subr.mxu0 0.0
        %1932 = vmatpush2.msra.mxu0 0.0
        %1933 = vmatprep.subr.mxu0 0.0
        %1934 = vmatpush2.msra.mxu0 0.0
        %1935 = vmatprep.subr.mxu0 0.0
        %1936 = vmatpush2.msra.mxu0 0.0
        %1937 = vmatprep.subr.mxu0 0.0
        %1938 = vmatpush2.msra.mxu0 0.0
        %1939 = vmatprep.mubr.f32.mxu0 0.0
        %v1940 = vand.u32 %v1456, 4294901760
        %1941 = vmatmul.mubr.f32.gmra.mxu0 %v1940
        %v1942 = vpop.f32.mrf.mxu0
        %v1943 = vadd.f32 %v1842, %v1942
        %v1944 = vpop.f32.mrf.mxu0
        %1945 = vmatprep.mubr.f32.mxu0 0.0
        %v1946 = vand.u32 %v1459, 4294901760
        %1947 = vmatmul.mubr.f32.gmra.mxu0 %v1946
        %v1948 = vpop.f32.mrf.mxu0
        %v1949 = vadd.f32 %v1850, %v1948
        %v1950 = vpop.f32.mrf.mxu0
        %1951 = vmatprep.mubr.f32.mxu0 0.0
        %v1952 = vand.u32 %v1462, 4294901760
        %1953 = vmatmul.mubr.f32.gmra.mxu0 %v1952
        %v1954 = vpop.f32.mrf.mxu0
        %v1955 = vadd.f32 %v1858, %v1954
        %v1956 = vpop.f32.mrf.mxu0
        %1957 = vmatprep.mubr.f32.mxu0 0.0
        %v1958 = vand.u32 %v1465, 4294901760
        %1959 = vmatmul.mubr.f32.gmra.mxu0 %v1958
        %v1960 = vpop.f32.mrf.mxu0
        %v1961 = vadd.f32 %v1866, %v1960
        %v1962 = vpop.f32.mrf.mxu0
        %1963 = vdwg.mxu0
        %1964 = vmatprep.subr.mxu0 0.0
        %1965 = vmatpush1.msra.mxu0 0.0
        %1966 = vmatprep.subr.mxu0 0.0
        %1967 = vmatpush1.msra.mxu0 0.0
        %1968 = vmatprep.subr.mxu0 0.0
        %1969 = vmatpush1.msra.mxu0 0.0
        %1970 = vmatprep.subr.mxu0 0.0
        %1971 = vmatpush1.msra.mxu0 0.0
        %1972 = vmatprep.subr.mxu0 0.0
        %1973 = vmatpush1.msra.mxu0 0.0
        %1974 = vmatprep.subr.mxu0 0.0
        %1975 = vmatpush1.msra.mxu0 0.0
        %1976 = vmatprep.subr.mxu0 0.0
        %1977 = vmatpush1.msra.mxu0 0.0
        %1978 = vmatprep.subr.mxu0 0.0
        %1979 = vmatpush1.msra.mxu0 0.0
        %1980 = vmatprep.subr.mxu0 0.0
        %1981 = vmatpush1.msra.mxu0 0.0
        %1982 = vmatprep.subr.mxu0 0.0
        %1983 = vmatpush1.msra.mxu0 0.0
        %1984 = vmatprep.subr.mxu0 0.0
        %1985 = vmatpush1.msra.mxu0 0.0
        %1986 = vmatprep.subr.mxu0 0.0
        %1987 = vmatpush1.msra.mxu0 0.0
        %1988 = vmatprep.subr.mxu0 0.0
        %1989 = vmatpush1.msra.mxu0 0.0
        %1990 = vmatprep.subr.mxu0 0.0
        %1991 = vmatpush1.msra.mxu0 0.0
        %1992 = vmatprep.subr.mxu0 0.0
        %v1993 = vand.u32 %v1448, 4294901760
        %1994 = vmatpush1.msra.mxu0 %v1993
        %1995 = vmatprep.subr.mxu0 0.0
        %v1996 = vand.u32 %v1436, 4294901760
        %1997 = vmatpush1.msra.mxu0 %v1996
        %1998 = vmatprep.subr.mxu0 0.0
        %1999 = vmatpush2.msra.mxu0 0.0
        %2000 = vmatprep.subr.mxu0 0.0
        %2001 = vmatpush2.msra.mxu0 0.0
        %2002 = vmatprep.subr.mxu0 0.0
        %2003 = vmatpush2.msra.mxu0 0.0
        %2004 = vmatprep.subr.mxu0 0.0
        %2005 = vmatpush2.msra.mxu0 0.0
        %2006 = vmatprep.subr.mxu0 0.0
        %2007 = vmatpush2.msra.mxu0 0.0
        %2008 = vmatprep.subr.mxu0 0.0
        %2009 = vmatpush2.msra.mxu0 0.0
        %2010 = vmatprep.subr.mxu0 0.0
        %2011 = vmatpush2.msra.mxu0 0.0
        %2012 = vmatprep.subr.mxu0 0.0
        %2013 = vmatpush2.msra.mxu0 0.0
        %2014 = vmatprep.subr.mxu0 0.0
        %2015 = vmatpush2.msra.mxu0 0.0
        %2016 = vmatprep.subr.mxu0 0.0
        %2017 = vmatpush2.msra.mxu0 0.0
        %2018 = vmatprep.subr.mxu0 0.0
        %2019 = vmatpush2.msra.mxu0 0.0
        %2020 = vmatprep.subr.mxu0 0.0
        %2021 = vmatpush2.msra.mxu0 0.0
        %2022 = vmatprep.subr.mxu0 0.0
        %2023 = vmatpush2.msra.mxu0 0.0
        %2024 = vmatprep.subr.mxu0 0.0
        %2025 = vmatpush2.msra.mxu0 0.0
        %2026 = vmatprep.subr.mxu0 0.0
        %2027 = vmatpush2.msra.mxu0 0.0
        %2028 = vmatprep.subr.mxu0 0.0
        %2029 = vmatpush2.msra.mxu0 0.0
        %2030 = vmatprep.mubr.f32.mxu0 0.0
        %v2031 = vand.u32 %v1456, 4294901760
        %2032 = vmatmul.mubr.f32.gmra.mxu0 %v2031
        %v2033 = vpop.f32.mrf.mxu0
        %v2034 = vadd.f32 %v1943, %v2033
        %v2035 = vpop.f32.mrf.mxu0
        %2036 = vmatprep.mubr.f32.mxu0 0.0
        %v2037 = vand.u32 %v1459, 4294901760
        %2038 = vmatmul.mubr.f32.gmra.mxu0 %v2037
        %v2039 = vpop.f32.mrf.mxu0
        %v2040 = vadd.f32 %v1949, %v2039
        %v2041 = vpop.f32.mrf.mxu0
        %2042 = vmatprep.mubr.f32.mxu0 0.0
        %v2043 = vand.u32 %v1462, 4294901760
        %2044 = vmatmul.mubr.f32.gmra.mxu0 %v2043
        %v2045 = vpop.f32.mrf.mxu0
        %v2046 = vadd.f32 %v1955, %v2045
        %v2047 = vpop.f32.mrf.mxu0
        %2048 = vmatprep.mubr.f32.mxu0 0.0
        %v2049 = vand.u32 %v1465, 4294901760
        %2050 = vmatmul.mubr.f32.gmra.mxu0 %v2049
        %v2051 = vpop.f32.mrf.mxu0
        %v2052 = vadd.f32 %v1961, %v2051
        %v2053 = vpop.f32.mrf.mxu0
        %2054 = vdwg.mxu0
        %v2055 = vtanh.pop %v2034
        %v2056 = vtanh.pop %v2040
        %v2057 = vxor.u32 %v2046, 2147483648
        %v2058 = vxor.u32 %v2052, 2147483648
        %v2059 = vmul.f32 %v2057, 1.442695
        %v2060 = vpow.pop %v2059
        %v2061 = vmul.f32 %v2058, 1.442695
        %v2062 = vpow.pop %v2061
        %v2063 = vadd.f32 %v2060, 1.0
        %v2064 = vadd.f32 %v2062, 1.0
        %v2065 = vrcp.pop %v2063
        %v2066 = vmul.f32 1.0, %v2065
        %v2067 = vrcp.pop %v2064
        %v2068 = vmul.f32 1.0, %v2067
        %v2069 = vmul.f32 %v2055, %v2066
        %v2070 = vmul.f32 %v2056, %v2068
        %s2071 = scalar_lea.vmem %s3, 16
        %v2072 = vld [vmem:[%s2071] sm:$0xff]
        %v2073 = vld [vmem:[%s2071 + $0x8] sm:$0xff]
        %v2075 = vsel %vm309, %v2072, 0
        %v2078 = vsel %vm309, %v2073, 0
        %2080 = vmatprep.subr.mxu0 0.0
        %2081 = vmatpush1.msra.mxu0 0.0
        %2082 = vmatprep.subr.mxu0 0.0
        %2083 = vmatpush1.msra.mxu0 0.0
        %2084 = vmatprep.subr.mxu0 0.0
        %2085 = vmatpush1.msra.mxu0 0.0
        %2086 = vmatprep.subr.mxu0 0.0
        %2087 = vmatpush1.msra.mxu0 0.0
        %2088 = vmatprep.subr.mxu0 0.0
        %2089 = vmatpush1.msra.mxu0 0.0
        %2090 = vmatprep.subr.mxu0 0.0
        %2091 = vmatpush1.msra.mxu0 0.0
        %2092 = vmatprep.subr.mxu0 0.0
        %2093 = vmatpush1.msra.mxu0 0.0
        %2094 = vmatprep.subr.mxu0 0.0
        %2095 = vmatpush1.msra.mxu0 0.0
        %2096 = vmatprep.subr.mxu0 0.0
        %2097 = vmatpush1.msra.mxu0 0.0
        %2098 = vmatprep.subr.mxu0 0.0
        %2099 = vmatpush1.msra.mxu0 0.0
        %2100 = vmatprep.subr.mxu0 0.0
        %2101 = vmatpush1.msra.mxu0 0.0
        %2102 = vmatprep.subr.mxu0 0.0
        %2103 = vmatpush1.msra.mxu0 0.0
        %2104 = vmatprep.subr.mxu0 0.0
        %2105 = vmatpush1.msra.mxu0 0.0
        %2106 = vmatprep.subr.mxu0 0.0
        %2107 = vmatpush1.msra.mxu0 0.0
        %2108 = vmatprep.subr.mxu0 0.0
        %v2109 = vand.u32 %v2070, 4294901760
        %2110 = vmatpush1.msra.mxu0 %v2109
        %2111 = vmatprep.subr.mxu0 0.0
        %v2112 = vand.u32 %v2069, 4294901760
        %2113 = vmatpush1.msra.mxu0 %v2112
        %2114 = vmatprep.subr.mxu0 0.0
        %2115 = vmatpush2.msra.mxu0 0.0
        %2116 = vmatprep.subr.mxu0 0.0
        %2117 = vmatpush2.msra.mxu0 0.0
        %2118 = vmatprep.subr.mxu0 0.0
        %2119 = vmatpush2.msra.mxu0 0.0
        %2120 = vmatprep.subr.mxu0 0.0
        %2121 = vmatpush2.msra.mxu0 0.0
        %2122 = vmatprep.subr.mxu0 0.0
        %2123 = vmatpush2.msra.mxu0 0.0
        %2124 = vmatprep.subr.mxu0 0.0
        %2125 = vmatpush2.msra.mxu0 0.0
        %2126 = vmatprep.subr.mxu0 0.0
        %2127 = vmatpush2.msra.mxu0 0.0
        %2128 = vmatprep.subr.mxu0 0.0
        %2129 = vmatpush2.msra.mxu0 0.0
        %2130 = vmatprep.subr.mxu0 0.0
        %2131 = vmatpush2.msra.mxu0 0.0
        %2132 = vmatprep.subr.mxu0 0.0
        %2133 = vmatpush2.msra.mxu0 0.0
        %2134 = vmatprep.subr.mxu0 0.0
        %2135 = vmatpush2.msra.mxu0 0.0
        %2136 = vmatprep.subr.mxu0 0.0
        %2137 = vmatpush2.msra.mxu0 0.0
        %2138 = vmatprep.subr.mxu0 0.0
        %2139 = vmatpush2.msra.mxu0 0.0
        %2140 = vmatprep.subr.mxu0 0.0
        %2141 = vmatpush2.msra.mxu0 0.0
        %2142 = vmatprep.subr.mxu0 0.0
        %2143 = vmatpush2.msra.mxu0 0.0
        %2144 = vmatprep.subr.mxu0 0.0
        %2145 = vmatpush2.msra.mxu0 0.0
        %2146 = vmatprep.mubr.f32.mxu0 0.0
        %v2147 = vand.u32 %v2075, 4294901760
        %v2148 = vsub.f32 %v2075, %v2147
        %v2149 = vand.u32 %v2148, 4294901760
        %v2150 = vsub.f32 %v2148, %v2149
        %v2151 = vand.u32 %v2150, 4294901760
        %2152 = vmatmul.mubr.f32.gmra.mxu0 %v2151
        %v2153 = vpop.f32.mrf.mxu0
        %v2154 = vadd.f32 0.0, %v2153
        %v2155 = vpop.f32.mrf.mxu0
        %2156 = vmatprep.mubr.f32.mxu0 0.0
        %v2157 = vand.u32 %v2078, 4294901760
        %v2158 = vsub.f32 %v2078, %v2157
        %v2159 = vand.u32 %v2158, 4294901760
        %v2160 = vsub.f32 %v2158, %v2159
        %v2161 = vand.u32 %v2160, 4294901760
        %2162 = vmatmul.mubr.f32.gmra.mxu0 %v2161
        %v2163 = vpop.f32.mrf.mxu0
        %v2164 = vadd.f32 0.0, %v2163
        %v2165 = vpop.f32.mrf.mxu0
        %2166 = vdwg.mxu0
        %2167 = vmatprep.subr.mxu0 0.0
        %2168 = vmatpush1.msra.mxu0 0.0
        %2169 = vmatprep.subr.mxu0 0.0
        %2170 = vmatpush1.msra.mxu0 0.0
        %2171 = vmatprep.subr.mxu0 0.0
        %2172 = vmatpush1.msra.mxu0 0.0
        %2173 = vmatprep.subr.mxu0 0.0
        %2174 = vmatpush1.msra.mxu0 0.0
        %2175 = vmatprep.subr.mxu0 0.0
        %2176 = vmatpush1.msra.mxu0 0.0
        %2177 = vmatprep.subr.mxu0 0.0
        %2178 = vmatpush1.msra.mxu0 0.0
        %2179 = vmatprep.subr.mxu0 0.0
        %2180 = vmatpush1.msra.mxu0 0.0
        %2181 = vmatprep.subr.mxu0 0.0
        %2182 = vmatpush1.msra.mxu0 0.0
        %2183 = vmatprep.subr.mxu0 0.0
        %2184 = vmatpush1.msra.mxu0 0.0
        %2185 = vmatprep.subr.mxu0 0.0
        %2186 = vmatpush1.msra.mxu0 0.0
        %2187 = vmatprep.subr.mxu0 0.0
        %2188 = vmatpush1.msra.mxu0 0.0
        %2189 = vmatprep.subr.mxu0 0.0
        %2190 = vmatpush1.msra.mxu0 0.0
        %2191 = vmatprep.subr.mxu0 0.0
        %2192 = vmatpush1.msra.mxu0 0.0
        %2193 = vmatprep.subr.mxu0 0.0
        %2194 = vmatpush1.msra.mxu0 0.0
        %2195 = vmatprep.subr.mxu0 0.0
        %v2196 = vand.u32 %v2070, 4294901760
        %v2197 = vsub.f32 %v2070, %v2196
        %v2198 = vand.u32 %v2197, 4294901760
        %v2199 = vsub.f32 %v2197, %v2198
        %v2200 = vand.u32 %v2199, 4294901760
        %2201 = vmatpush1.msra.mxu0 %v2200
        %2202 = vmatprep.subr.mxu0 0.0
        %v2203 = vand.u32 %v2069, 4294901760
        %v2204 = vsub.f32 %v2069, %v2203
        %v2205 = vand.u32 %v2204, 4294901760
        %v2206 = vsub.f32 %v2204, %v2205
        %v2207 = vand.u32 %v2206, 4294901760
        %2208 = vmatpush1.msra.mxu0 %v2207
        %2209 = vmatprep.subr.mxu0 0.0
        %2210 = vmatpush2.msra.mxu0 0.0
        %2211 = vmatprep.subr.mxu0 0.0
        %2212 = vmatpush2.msra.mxu0 0.0
        %2213 = vmatprep.subr.mxu0 0.0
        %2214 = vmatpush2.msra.mxu0 0.0
        %2215 = vmatprep.subr.mxu0 0.0
        %2216 = vmatpush2.msra.mxu0 0.0
        %2217 = vmatprep.subr.mxu0 0.0
        %2218 = vmatpush2.msra.mxu0 0.0
        %2219 = vmatprep.subr.mxu0 0.0
        %2220 = vmatpush2.msra.mxu0 0.0
        %2221 = vmatprep.subr.mxu0 0.0
        %2222 = vmatpush2.msra.mxu0 0.0
        %2223 = vmatprep.subr.mxu0 0.0
        %2224 = vmatpush2.msra.mxu0 0.0
        %2225 = vmatprep.subr.mxu0 0.0
        %2226 = vmatpush2.msra.mxu0 0.0
        %2227 = vmatprep.subr.mxu0 0.0
        %2228 = vmatpush2.msra.mxu0 0.0
        %2229 = vmatprep.subr.mxu0 0.0
        %2230 = vmatpush2.msra.mxu0 0.0
        %2231 = vmatprep.subr.mxu0 0.0
        %2232 = vmatpush2.msra.mxu0 0.0
        %2233 = vmatprep.subr.mxu0 0.0
        %2234 = vmatpush2.msra.mxu0 0.0
        %2235 = vmatprep.subr.mxu0 0.0
        %2236 = vmatpush2.msra.mxu0 0.0
        %2237 = vmatprep.subr.mxu0 0.0
        %2238 = vmatpush2.msra.mxu0 0.0
        %2239 = vmatprep.subr.mxu0 0.0
        %2240 = vmatpush2.msra.mxu0 0.0
        %2241 = vmatprep.mubr.f32.mxu0 0.0
        %v2242 = vand.u32 %v2075, 4294901760
        %2243 = vmatmul.mubr.f32.gmra.mxu0 %v2242
        %v2244 = vpop.f32.mrf.mxu0
        %v2245 = vadd.f32 %v2154, %v2244
        %v2246 = vpop.f32.mrf.mxu0
        %2247 = vmatprep.mubr.f32.mxu0 0.0
        %v2248 = vand.u32 %v2078, 4294901760
        %2249 = vmatmul.mubr.f32.gmra.mxu0 %v2248
        %v2250 = vpop.f32.mrf.mxu0
        %v2251 = vadd.f32 %v2164, %v2250
        %v2252 = vpop.f32.mrf.mxu0
        %2253 = vdwg.mxu0
        %2254 = vmatprep.subr.mxu0 0.0
        %2255 = vmatpush1.msra.mxu0 0.0
        %2256 = vmatprep.subr.mxu0 0.0
        %2257 = vmatpush1.msra.mxu0 0.0
        %2258 = vmatprep.subr.mxu0 0.0
        %2259 = vmatpush1.msra.mxu0 0.0
        %2260 = vmatprep.subr.mxu0 0.0
        %2261 = vmatpush1.msra.mxu0 0.0
        %2262 = vmatprep.subr.mxu0 0.0
        %2263 = vmatpush1.msra.mxu0 0.0
        %2264 = vmatprep.subr.mxu0 0.0
        %2265 = vmatpush1.msra.mxu0 0.0
        %2266 = vmatprep.subr.mxu0 0.0
        %2267 = vmatpush1.msra.mxu0 0.0
        %2268 = vmatprep.subr.mxu0 0.0
        %2269 = vmatpush1.msra.mxu0 0.0
        %2270 = vmatprep.subr.mxu0 0.0
        %2271 = vmatpush1.msra.mxu0 0.0
        %2272 = vmatprep.subr.mxu0 0.0
        %2273 = vmatpush1.msra.mxu0 0.0
        %2274 = vmatprep.subr.mxu0 0.0
        %2275 = vmatpush1.msra.mxu0 0.0
        %2276 = vmatprep.subr.mxu0 0.0
        %2277 = vmatpush1.msra.mxu0 0.0
        %2278 = vmatprep.subr.mxu0 0.0
        %2279 = vmatpush1.msra.mxu0 0.0
        %2280 = vmatprep.subr.mxu0 0.0
        %2281 = vmatpush1.msra.mxu0 0.0
        %2282 = vmatprep.subr.mxu0 0.0
        %v2283 = vand.u32 %v2070, 4294901760
        %v2284 = vsub.f32 %v2070, %v2283
        %2285 = vmatpush1.msra.mxu0 %v2284
        %2286 = vmatprep.subr.mxu0 0.0
        %v2287 = vand.u32 %v2069, 4294901760
        %v2288 = vsub.f32 %v2069, %v2287
        %2289 = vmatpush1.msra.mxu0 %v2288
        %2290 = vmatprep.subr.mxu0 0.0
        %2291 = vmatpush2.msra.mxu0 0.0
        %2292 = vmatprep.subr.mxu0 0.0
        %2293 = vmatpush2.msra.mxu0 0.0
        %2294 = vmatprep.subr.mxu0 0.0
        %2295 = vmatpush2.msra.mxu0 0.0
        %2296 = vmatprep.subr.mxu0 0.0
        %2297 = vmatpush2.msra.mxu0 0.0
        %2298 = vmatprep.subr.mxu0 0.0
        %2299 = vmatpush2.msra.mxu0 0.0
        %2300 = vmatprep.subr.mxu0 0.0
        %2301 = vmatpush2.msra.mxu0 0.0
        %2302 = vmatprep.subr.mxu0 0.0
        %2303 = vmatpush2.msra.mxu0 0.0
        %2304 = vmatprep.subr.mxu0 0.0
        %2305 = vmatpush2.msra.mxu0 0.0
        %2306 = vmatprep.subr.mxu0 0.0
        %2307 = vmatpush2.msra.mxu0 0.0
        %2308 = vmatprep.subr.mxu0 0.0
        %2309 = vmatpush2.msra.mxu0 0.0
        %2310 = vmatprep.subr.mxu0 0.0
        %2311 = vmatpush2.msra.mxu0 0.0
        %2312 = vmatprep.subr.mxu0 0.0
        %2313 = vmatpush2.msra.mxu0 0.0
        %2314 = vmatprep.subr.mxu0 0.0
        %2315 = vmatpush2.msra.mxu0 0.0
        %2316 = vmatprep.subr.mxu0 0.0
        %2317 = vmatpush2.msra.mxu0 0.0
        %2318 = vmatprep.subr.mxu0 0.0
        %2319 = vmatpush2.msra.mxu0 0.0
        %2320 = vmatprep.subr.mxu0 0.0
        %2321 = vmatpush2.msra.mxu0 0.0
        %2322 = vmatprep.mubr.f32.mxu0 0.0
        %v2323 = vand.u32 %v2075, 4294901760
        %v2324 = vsub.f32 %v2075, %v2323
        %2325 = vmatmul.mubr.f32.gmra.mxu0 %v2324
        %v2326 = vpop.f32.mrf.mxu0
        %v2327 = vadd.f32 %v2245, %v2326
        %v2328 = vpop.f32.mrf.mxu0
        %2329 = vmatprep.mubr.f32.mxu0 0.0
        %v2330 = vand.u32 %v2078, 4294901760
        %v2331 = vsub.f32 %v2078, %v2330
        %2332 = vmatmul.mubr.f32.gmra.mxu0 %v2331
        %v2333 = vpop.f32.mrf.mxu0
        %v2334 = vadd.f32 %v2251, %v2333
        %v2335 = vpop.f32.mrf.mxu0
        %2336 = vdwg.mxu0
        %2337 = vmatprep.subr.mxu0 0.0
        %2338 = vmatpush1.msra.mxu0 0.0
        %2339 = vmatprep.subr.mxu0 0.0
        %2340 = vmatpush1.msra.mxu0 0.0
        %2341 = vmatprep.subr.mxu0 0.0
        %2342 = vmatpush1.msra.mxu0 0.0
        %2343 = vmatprep.subr.mxu0 0.0
        %2344 = vmatpush1.msra.mxu0 0.0
        %2345 = vmatprep.subr.mxu0 0.0
        %2346 = vmatpush1.msra.mxu0 0.0
        %2347 = vmatprep.subr.mxu0 0.0
        %2348 = vmatpush1.msra.mxu0 0.0
        %2349 = vmatprep.subr.mxu0 0.0
        %2350 = vmatpush1.msra.mxu0 0.0
        %2351 = vmatprep.subr.mxu0 0.0
        %2352 = vmatpush1.msra.mxu0 0.0
        %2353 = vmatprep.subr.mxu0 0.0
        %2354 = vmatpush1.msra.mxu0 0.0
        %2355 = vmatprep.subr.mxu0 0.0
        %2356 = vmatpush1.msra.mxu0 0.0
        %2357 = vmatprep.subr.mxu0 0.0
        %2358 = vmatpush1.msra.mxu0 0.0
        %2359 = vmatprep.subr.mxu0 0.0
        %2360 = vmatpush1.msra.mxu0 0.0
        %2361 = vmatprep.subr.mxu0 0.0
        %2362 = vmatpush1.msra.mxu0 0.0
        %2363 = vmatprep.subr.mxu0 0.0
        %2364 = vmatpush1.msra.mxu0 0.0
        %2365 = vmatprep.subr.mxu0 0.0
        %v2366 = vand.u32 %v2070, 4294901760
        %2367 = vmatpush1.msra.mxu0 %v2366
        %2368 = vmatprep.subr.mxu0 0.0
        %v2369 = vand.u32 %v2069, 4294901760
        %2370 = vmatpush1.msra.mxu0 %v2369
        %2371 = vmatprep.subr.mxu0 0.0
        %2372 = vmatpush2.msra.mxu0 0.0
        %2373 = vmatprep.subr.mxu0 0.0
        %2374 = vmatpush2.msra.mxu0 0.0
        %2375 = vmatprep.subr.mxu0 0.0
        %2376 = vmatpush2.msra.mxu0 0.0
        %2377 = vmatprep.subr.mxu0 0.0
        %2378 = vmatpush2.msra.mxu0 0.0
        %2379 = vmatprep.subr.mxu0 0.0
        %2380 = vmatpush2.msra.mxu0 0.0
        %2381 = vmatprep.subr.mxu0 0.0
        %2382 = vmatpush2.msra.mxu0 0.0
        %2383 = vmatprep.subr.mxu0 0.0
        %2384 = vmatpush2.msra.mxu0 0.0
        %2385 = vmatprep.subr.mxu0 0.0
        %2386 = vmatpush2.msra.mxu0 0.0
        %2387 = vmatprep.subr.mxu0 0.0
        %2388 = vmatpush2.msra.mxu0 0.0
        %2389 = vmatprep.subr.mxu0 0.0
        %2390 = vmatpush2.msra.mxu0 0.0
        %2391 = vmatprep.subr.mxu0 0.0
        %2392 = vmatpush2.msra.mxu0 0.0
        %2393 = vmatprep.subr.mxu0 0.0
        %2394 = vmatpush2.msra.mxu0 0.0
        %2395 = vmatprep.subr.mxu0 0.0
        %2396 = vmatpush2.msra.mxu0 0.0
        %2397 = vmatprep.subr.mxu0 0.0
        %2398 = vmatpush2.msra.mxu0 0.0
        %2399 = vmatprep.subr.mxu0 0.0
        %2400 = vmatpush2.msra.mxu0 0.0
        %2401 = vmatprep.subr.mxu0 0.0
        %2402 = vmatpush2.msra.mxu0 0.0
        %2403 = vmatprep.mubr.f32.mxu0 0.0
        %v2404 = vand.u32 %v2075, 4294901760
        %v2405 = vsub.f32 %v2075, %v2404
        %v2406 = vand.u32 %v2405, 4294901760
        %2407 = vmatmul.mubr.f32.gmra.mxu0 %v2406
        %v2408 = vpop.f32.mrf.mxu0
        %v2409 = vadd.f32 %v2327, %v2408
        %v2410 = vpop.f32.mrf.mxu0
        %2411 = vmatprep.mubr.f32.mxu0 0.0
        %v2412 = vand.u32 %v2078, 4294901760
        %v2413 = vsub.f32 %v2078, %v2412
        %v2414 = vand.u32 %v2413, 4294901760
        %2415 = vmatmul.mubr.f32.gmra.mxu0 %v2414
        %v2416 = vpop.f32.mrf.mxu0
        %v2417 = vadd.f32 %v2334, %v2416
        %v2418 = vpop.f32.mrf.mxu0
        %2419 = vdwg.mxu0
        %2420 = vmatprep.subr.mxu0 0.0
        %2421 = vmatpush1.msra.mxu0 0.0
        %2422 = vmatprep.subr.mxu0 0.0
        %2423 = vmatpush1.msra.mxu0 0.0
        %2424 = vmatprep.subr.mxu0 0.0
        %2425 = vmatpush1.msra.mxu0 0.0
        %2426 = vmatprep.subr.mxu0 0.0
        %2427 = vmatpush1.msra.mxu0 0.0
        %2428 = vmatprep.subr.mxu0 0.0
        %2429 = vmatpush1.msra.mxu0 0.0
        %2430 = vmatprep.subr.mxu0 0.0
        %2431 = vmatpush1.msra.mxu0 0.0
        %2432 = vmatprep.subr.mxu0 0.0
        %2433 = vmatpush1.msra.mxu0 0.0
        %2434 = vmatprep.subr.mxu0 0.0
        %2435 = vmatpush1.msra.mxu0 0.0
        %2436 = vmatprep.subr.mxu0 0.0
        %2437 = vmatpush1.msra.mxu0 0.0
        %2438 = vmatprep.subr.mxu0 0.0
        %2439 = vmatpush1.msra.mxu0 0.0
        %2440 = vmatprep.subr.mxu0 0.0
        %2441 = vmatpush1.msra.mxu0 0.0
        %2442 = vmatprep.subr.mxu0 0.0
        %2443 = vmatpush1.msra.mxu0 0.0
        %2444 = vmatprep.subr.mxu0 0.0
        %2445 = vmatpush1.msra.mxu0 0.0
        %2446 = vmatprep.subr.mxu0 0.0
        %2447 = vmatpush1.msra.mxu0 0.0
        %2448 = vmatprep.subr.mxu0 0.0
        %v2449 = vand.u32 %v2070, 4294901760
        %v2450 = vsub.f32 %v2070, %v2449
        %v2451 = vand.u32 %v2450, 4294901760
        %2452 = vmatpush1.msra.mxu0 %v2451
        %2453 = vmatprep.subr.mxu0 0.0
        %v2454 = vand.u32 %v2069, 4294901760
        %v2455 = vsub.f32 %v2069, %v2454
        %v2456 = vand.u32 %v2455, 4294901760
        %2457 = vmatpush1.msra.mxu0 %v2456
        %2458 = vmatprep.subr.mxu0 0.0
        %2459 = vmatpush2.msra.mxu0 0.0
        %2460 = vmatprep.subr.mxu0 0.0
        %2461 = vmatpush2.msra.mxu0 0.0
        %2462 = vmatprep.subr.mxu0 0.0
        %2463 = vmatpush2.msra.mxu0 0.0
        %2464 = vmatprep.subr.mxu0 0.0
        %2465 = vmatpush2.msra.mxu0 0.0
        %2466 = vmatprep.subr.mxu0 0.0
        %2467 = vmatpush2.msra.mxu0 0.0
        %2468 = vmatprep.subr.mxu0 0.0
        %2469 = vmatpush2.msra.mxu0 0.0
        %2470 = vmatprep.subr.mxu0 0.0
        %2471 = vmatpush2.msra.mxu0 0.0
        %2472 = vmatprep.subr.mxu0 0.0
        %2473 = vmatpush2.msra.mxu0 0.0
        %2474 = vmatprep.subr.mxu0 0.0
        %2475 = vmatpush2.msra.mxu0 0.0
        %2476 = vmatprep.subr.mxu0 0.0
        %2477 = vmatpush2.msra.mxu0 0.0
        %2478 = vmatprep.subr.mxu0 0.0
        %2479 = vmatpush2.msra.mxu0 0.0
        %2480 = vmatprep.subr.mxu0 0.0
        %2481 = vmatpush2.msra.mxu0 0.0
        %2482 = vmatprep.subr.mxu0 0.0
        %2483 = vmatpush2.msra.mxu0 0.0
        %2484 = vmatprep.subr.mxu0 0.0
        %2485 = vmatpush2.msra.mxu0 0.0
        %2486 = vmatprep.subr.mxu0 0.0
        %2487 = vmatpush2.msra.mxu0 0.0
        %2488 = vmatprep.subr.mxu0 0.0
        %2489 = vmatpush2.msra.mxu0 0.0
        %2490 = vmatprep.mubr.f32.mxu0 0.0
        %v2491 = vand.u32 %v2075, 4294901760
        %2492 = vmatmul.mubr.f32.gmra.mxu0 %v2491
        %v2493 = vpop.f32.mrf.mxu0
        %v2494 = vadd.f32 %v2409, %v2493
        %v2495 = vpop.f32.mrf.mxu0
        %2496 = vmatprep.mubr.f32.mxu0 0.0
        %v2497 = vand.u32 %v2078, 4294901760
        %2498 = vmatmul.mubr.f32.gmra.mxu0 %v2497
        %v2499 = vpop.f32.mrf.mxu0
        %v2500 = vadd.f32 %v2417, %v2499
        %v2501 = vpop.f32.mrf.mxu0
        %2502 = vdwg.mxu0
        %2503 = vmatprep.subr.mxu0 0.0
        %2504 = vmatpush1.msra.mxu0 0.0
        %2505 = vmatprep.subr.mxu0 0.0
        %2506 = vmatpush1.msra.mxu0 0.0
        %2507 = vmatprep.subr.mxu0 0.0
        %2508 = vmatpush1.msra.mxu0 0.0
        %2509 = vmatprep.subr.mxu0 0.0
        %2510 = vmatpush1.msra.mxu0 0.0
        %2511 = vmatprep.subr.mxu0 0.0
        %2512 = vmatpush1.msra.mxu0 0.0
        %2513 = vmatprep.subr.mxu0 0.0
        %2514 = vmatpush1.msra.mxu0 0.0
        %2515 = vmatprep.subr.mxu0 0.0
        %2516 = vmatpush1.msra.mxu0 0.0
        %2517 = vmatprep.subr.mxu0 0.0
        %2518 = vmatpush1.msra.mxu0 0.0
        %2519 = vmatprep.subr.mxu0 0.0
        %2520 = vmatpush1.msra.mxu0 0.0
        %2521 = vmatprep.subr.mxu0 0.0
        %2522 = vmatpush1.msra.mxu0 0.0
        %2523 = vmatprep.subr.mxu0 0.0
        %2524 = vmatpush1.msra.mxu0 0.0
        %2525 = vmatprep.subr.mxu0 0.0
        %2526 = vmatpush1.msra.mxu0 0.0
        %2527 = vmatprep.subr.mxu0 0.0
        %2528 = vmatpush1.msra.mxu0 0.0
        %2529 = vmatprep.subr.mxu0 0.0
        %2530 = vmatpush1.msra.mxu0 0.0
        %2531 = vmatprep.subr.mxu0 0.0
        %v2532 = vand.u32 %v2070, 4294901760
        %2533 = vmatpush1.msra.mxu0 %v2532
        %2534 = vmatprep.subr.mxu0 0.0
        %v2535 = vand.u32 %v2069, 4294901760
        %2536 = vmatpush1.msra.mxu0 %v2535
        %2537 = vmatprep.subr.mxu0 0.0
        %2538 = vmatpush2.msra.mxu0 0.0
        %2539 = vmatprep.subr.mxu0 0.0
        %2540 = vmatpush2.msra.mxu0 0.0
        %2541 = vmatprep.subr.mxu0 0.0
        %2542 = vmatpush2.msra.mxu0 0.0
        %2543 = vmatprep.subr.mxu0 0.0
        %2544 = vmatpush2.msra.mxu0 0.0
        %2545 = vmatprep.subr.mxu0 0.0
        %2546 = vmatpush2.msra.mxu0 0.0
        %2547 = vmatprep.subr.mxu0 0.0
        %2548 = vmatpush2.msra.mxu0 0.0
        %2549 = vmatprep.subr.mxu0 0.0
        %2550 = vmatpush2.msra.mxu0 0.0
        %2551 = vmatprep.subr.mxu0 0.0
        %2552 = vmatpush2.msra.mxu0 0.0
        %2553 = vmatprep.subr.mxu0 0.0
        %2554 = vmatpush2.msra.mxu0 0.0
        %2555 = vmatprep.subr.mxu0 0.0
        %2556 = vmatpush2.msra.mxu0 0.0
        %2557 = vmatprep.subr.mxu0 0.0
        %2558 = vmatpush2.msra.mxu0 0.0
        %2559 = vmatprep.subr.mxu0 0.0
        %2560 = vmatpush2.msra.mxu0 0.0
        %2561 = vmatprep.subr.mxu0 0.0
        %2562 = vmatpush2.msra.mxu0 0.0
        %2563 = vmatprep.subr.mxu0 0.0
        %2564 = vmatpush2.msra.mxu0 0.0
        %2565 = vmatprep.subr.mxu0 0.0
        %2566 = vmatpush2.msra.mxu0 0.0
        %2567 = vmatprep.subr.mxu0 0.0
        %2568 = vmatpush2.msra.mxu0 0.0
        %2569 = vmatprep.mubr.f32.mxu0 0.0
        %v2570 = vand.u32 %v2075, 4294901760
        %2571 = vmatmul.mubr.f32.gmra.mxu0 %v2570
        %v2572 = vpop.f32.mrf.mxu0
        %v2573 = vadd.f32 %v2494, %v2572
        %v2574 = vpop.f32.mrf.mxu0
        %2575 = vmatprep.mubr.f32.mxu0 0.0
        %v2576 = vand.u32 %v2078, 4294901760
        %2577 = vmatmul.mubr.f32.gmra.mxu0 %v2576
        %v2578 = vpop.f32.mrf.mxu0
        %v2579 = vadd.f32 %v2500, %v2578
        %v2580 = vpop.f32.mrf.mxu0
        %2581 = vdwg.mxu0
        %v2582 = vadd.f32 %v2573, %v1436
        %v2583 = vadd.f32 %v1433, %v2579
        %s2584 = scalar_lea.vmem [#allocation2], 16
        %v2585 = vld [vmem:[%s2584] sm:$0xff]
        %2587 = vrot.lane.b32.xlu0 %v2585, 1
        %v2588 = vpop.permute.xlu0 %2587
        %2591 = vrot.lane.b32.xlu0 %v2582, 1
        %v2592 = vpop.permute.xlu0 %2591
        %v2594 = vsel %vm302, %v2588, %v2592
        %2595 = vst [vmem:[%s2584] sm:$0xff] %v2582
        %s2596 = scalar_lea.vmem %s2, 64
        %v2597 = vld [vmem:[%s2596] sm:$0xff]
        %v2598 = vld [vmem:[%s2596 + $0x8] sm:$0xff]
        %v2599 = vld [vmem:[%s2596 + $0x10] sm:$0xff]
        %v2600 = vld [vmem:[%s2596 + $0x18] sm:$0xff]
        %v2602 = vsel %vm309, %v2597, 0
        %v2605 = vsel %vm309, %v2598, 0
        %v2608 = vsel %vm309, %v2599, 0
        %v2611 = vsel %vm309, %v2600, 0
        %2613 = vmatprep.subr.mxu0 0.0
        %2614 = vmatpush1.msra.mxu0 0.0
        %2615 = vmatprep.subr.mxu0 0.0
        %2616 = vmatpush1.msra.mxu0 0.0
        %2617 = vmatprep.subr.mxu0 0.0
        %2618 = vmatpush1.msra.mxu0 0.0
        %2619 = vmatprep.subr.mxu0 0.0
        %2620 = vmatpush1.msra.mxu0 0.0
        %2621 = vmatprep.subr.mxu0 0.0
        %2622 = vmatpush1.msra.mxu0 0.0
        %2623 = vmatprep.subr.mxu0 0.0
        %2624 = vmatpush1.msra.mxu0 0.0
        %2625 = vmatprep.subr.mxu0 0.0
        %2626 = vmatpush1.msra.mxu0 0.0
        %2627 = vmatprep.subr.mxu0 0.0
        %2628 = vmatpush1.msra.mxu0 0.0
        %2629 = vmatprep.subr.mxu0 0.0
        %2630 = vmatpush1.msra.mxu0 0.0
        %2631 = vmatprep.subr.mxu0 0.0
        %2632 = vmatpush1.msra.mxu0 0.0
        %2633 = vmatprep.subr.mxu0 0.0
        %2634 = vmatpush1.msra.mxu0 0.0
        %2635 = vmatprep.subr.mxu0 0.0
        %2636 = vmatpush1.msra.mxu0 0.0
        %2637 = vmatprep.subr.mxu0 0.0
        %2638 = vmatpush1.msra.mxu0 0.0
        %2639 = vmatprep.subr.mxu0 0.0
        %2640 = vmatpush1.msra.mxu0 0.0
        %2641 = vmatprep.subr.mxu0 0.0
        %v2642 = vand.u32 %v2594, 4294901760
        %2643 = vmatpush1.msra.mxu0 %v2642
        %2644 = vmatprep.subr.mxu0 0.0
        %v2645 = vand.u32 %v2582, 4294901760
        %2646 = vmatpush1.msra.mxu0 %v2645
        %2647 = vmatprep.subr.mxu0 0.0
        %2648 = vmatpush2.msra.mxu0 0.0
        %2649 = vmatprep.subr.mxu0 0.0
        %2650 = vmatpush2.msra.mxu0 0.0
        %2651 = vmatprep.subr.mxu0 0.0
        %2652 = vmatpush2.msra.mxu0 0.0
        %2653 = vmatprep.subr.mxu0 0.0
        %2654 = vmatpush2.msra.mxu0 0.0
        %2655 = vmatprep.subr.mxu0 0.0
        %2656 = vmatpush2.msra.mxu0 0.0
        %2657 = vmatprep.subr.mxu0 0.0
        %2658 = vmatpush2.msra.mxu0 0.0
        %2659 = vmatprep.subr.mxu0 0.0
        %2660 = vmatpush2.msra.mxu0 0.0
        %2661 = vmatprep.subr.mxu0 0.0
        %2662 = vmatpush2.msra.mxu0 0.0
        %2663 = vmatprep.subr.mxu0 0.0
        %2664 = vmatpush2.msra.mxu0 0.0
        %2665 = vmatprep.subr.mxu0 0.0
        %2666 = vmatpush2.msra.mxu0 0.0
        %2667 = vmatprep.subr.mxu0 0.0
        %2668 = vmatpush2.msra.mxu0 0.0
        %2669 = vmatprep.subr.mxu0 0.0
        %2670 = vmatpush2.msra.mxu0 0.0
        %2671 = vmatprep.subr.mxu0 0.0
        %2672 = vmatpush2.msra.mxu0 0.0
        %2673 = vmatprep.subr.mxu0 0.0
        %2674 = vmatpush2.msra.mxu0 0.0
        %2675 = vmatprep.subr.mxu0 0.0
        %2676 = vmatpush2.msra.mxu0 0.0
        %2677 = vmatprep.subr.mxu0 0.0
        %2678 = vmatpush2.msra.mxu0 0.0
        %2679 = vmatprep.mubr.f32.mxu0 0.0
        %v2680 = vand.u32 %v2602, 4294901760
        %v2681 = vsub.f32 %v2602, %v2680
        %v2682 = vand.u32 %v2681, 4294901760
        %v2683 = vsub.f32 %v2681, %v2682
        %v2684 = vand.u32 %v2683, 4294901760
        %2685 = vmatmul.mubr.f32.gmra.mxu0 %v2684
        %v2686 = vpop.f32.mrf.mxu0
        %v2687 = vadd.f32 0.0, %v2686
        %v2688 = vpop.f32.mrf.mxu0
        %2689 = vmatprep.mubr.f32.mxu0 0.0
        %v2690 = vand.u32 %v2605, 4294901760
        %v2691 = vsub.f32 %v2605, %v2690
        %v2692 = vand.u32 %v2691, 4294901760
        %v2693 = vsub.f32 %v2691, %v2692
        %v2694 = vand.u32 %v2693, 4294901760
        %2695 = vmatmul.mubr.f32.gmra.mxu0 %v2694
        %v2696 = vpop.f32.mrf.mxu0
        %v2697 = vadd.f32 0.0, %v2696
        %v2698 = vpop.f32.mrf.mxu0
        %2699 = vmatprep.mubr.f32.mxu0 0.0
        %v2700 = vand.u32 %v2608, 4294901760
        %v2701 = vsub.f32 %v2608, %v2700
        %v2702 = vand.u32 %v2701, 4294901760
        %v2703 = vsub.f32 %v2701, %v2702
        %v2704 = vand.u32 %v2703, 4294901760
        %2705 = vmatmul.mubr.f32.gmra.mxu0 %v2704
        %v2706 = vpop.f32.mrf.mxu0
        %v2707 = vadd.f32 0.0, %v2706
        %v2708 = vpop.f32.mrf.mxu0
        %2709 = vmatprep.mubr.f32.mxu0 0.0
        %v2710 = vand.u32 %v2611, 4294901760
        %v2711 = vsub.f32 %v2611, %v2710
        %v2712 = vand.u32 %v2711, 4294901760
        %v2713 = vsub.f32 %v2711, %v2712
        %v2714 = vand.u32 %v2713, 4294901760
        %2715 = vmatmul.mubr.f32.gmra.mxu0 %v2714
        %v2716 = vpop.f32.mrf.mxu0
        %v2717 = vadd.f32 0.0, %v2716
        %v2718 = vpop.f32.mrf.mxu0
        %2719 = vdwg.mxu0
        %2720 = vmatprep.subr.mxu0 0.0
        %2721 = vmatpush1.msra.mxu0 0.0
        %2722 = vmatprep.subr.mxu0 0.0
        %2723 = vmatpush1.msra.mxu0 0.0
        %2724 = vmatprep.subr.mxu0 0.0
        %2725 = vmatpush1.msra.mxu0 0.0
        %2726 = vmatprep.subr.mxu0 0.0
        %2727 = vmatpush1.msra.mxu0 0.0
        %2728 = vmatprep.subr.mxu0 0.0
        %2729 = vmatpush1.msra.mxu0 0.0
        %2730 = vmatprep.subr.mxu0 0.0
        %2731 = vmatpush1.msra.mxu0 0.0
        %2732 = vmatprep.subr.mxu0 0.0
        %2733 = vmatpush1.msra.mxu0 0.0
        %2734 = vmatprep.subr.mxu0 0.0
        %2735 = vmatpush1.msra.mxu0 0.0
        %2736 = vmatprep.subr.mxu0 0.0
        %2737 = vmatpush1.msra.mxu0 0.0
        %2738 = vmatprep.subr.mxu0 0.0
        %2739 = vmatpush1.msra.mxu0 0.0
        %2740 = vmatprep.subr.mxu0 0.0
        %2741 = vmatpush1.msra.mxu0 0.0
        %2742 = vmatprep.subr.mxu0 0.0
        %2743 = vmatpush1.msra.mxu0 0.0
        %2744 = vmatprep.subr.mxu0 0.0
        %2745 = vmatpush1.msra.mxu0 0.0
        %2746 = vmatprep.subr.mxu0 0.0
        %2747 = vmatpush1.msra.mxu0 0.0
        %2748 = vmatprep.subr.mxu0 0.0
        %v2749 = vand.u32 %v2594, 4294901760
        %v2750 = vsub.f32 %v2594, %v2749
        %v2751 = vand.u32 %v2750, 4294901760
        %v2752 = vsub.f32 %v2750, %v2751
        %v2753 = vand.u32 %v2752, 4294901760
        %2754 = vmatpush1.msra.mxu0 %v2753
        %2755 = vmatprep.subr.mxu0 0.0
        %v2756 = vand.u32 %v2582, 4294901760
        %v2757 = vsub.f32 %v2582, %v2756
        %v2758 = vand.u32 %v2757, 4294901760
        %v2759 = vsub.f32 %v2757, %v2758
        %v2760 = vand.u32 %v2759, 4294901760
        %2761 = vmatpush1.msra.mxu0 %v2760
        %2762 = vmatprep.subr.mxu0 0.0
        %2763 = vmatpush2.msra.mxu0 0.0
        %2764 = vmatprep.subr.mxu0 0.0
        %2765 = vmatpush2.msra.mxu0 0.0
        %2766 = vmatprep.subr.mxu0 0.0
        %2767 = vmatpush2.msra.mxu0 0.0
        %2768 = vmatprep.subr.mxu0 0.0
        %2769 = vmatpush2.msra.mxu0 0.0
        %2770 = vmatprep.subr.mxu0 0.0
        %2771 = vmatpush2.msra.mxu0 0.0
        %2772 = vmatprep.subr.mxu0 0.0
        %2773 = vmatpush2.msra.mxu0 0.0
        %2774 = vmatprep.subr.mxu0 0.0
        %2775 = vmatpush2.msra.mxu0 0.0
        %2776 = vmatprep.subr.mxu0 0.0
        %2777 = vmatpush2.msra.mxu0 0.0
        %2778 = vmatprep.subr.mxu0 0.0
        %2779 = vmatpush2.msra.mxu0 0.0
        %2780 = vmatprep.subr.mxu0 0.0
        %2781 = vmatpush2.msra.mxu0 0.0
        %2782 = vmatprep.subr.mxu0 0.0
        %2783 = vmatpush2.msra.mxu0 0.0
        %2784 = vmatprep.subr.mxu0 0.0
        %2785 = vmatpush2.msra.mxu0 0.0
        %2786 = vmatprep.subr.mxu0 0.0
        %2787 = vmatpush2.msra.mxu0 0.0
        %2788 = vmatprep.subr.mxu0 0.0
        %2789 = vmatpush2.msra.mxu0 0.0
        %2790 = vmatprep.subr.mxu0 0.0
        %2791 = vmatpush2.msra.mxu0 0.0
        %2792 = vmatprep.subr.mxu0 0.0
        %2793 = vmatpush2.msra.mxu0 0.0
        %2794 = vmatprep.mubr.f32.mxu0 0.0
        %v2795 = vand.u32 %v2602, 4294901760
        %2796 = vmatmul.mubr.f32.gmra.mxu0 %v2795
        %v2797 = vpop.f32.mrf.mxu0
        %v2798 = vadd.f32 %v2687, %v2797
        %v2799 = vpop.f32.mrf.mxu0
        %2800 = vmatprep.mubr.f32.mxu0 0.0
        %v2801 = vand.u32 %v2605, 4294901760
        %2802 = vmatmul.mubr.f32.gmra.mxu0 %v2801
        %v2803 = vpop.f32.mrf.mxu0
        %v2804 = vadd.f32 %v2697, %v2803
        %v2805 = vpop.f32.mrf.mxu0
        %2806 = vmatprep.mubr.f32.mxu0 0.0
        %v2807 = vand.u32 %v2608, 4294901760
        %2808 = vmatmul.mubr.f32.gmra.mxu0 %v2807
        %v2809 = vpop.f32.mrf.mxu0
        %v2810 = vadd.f32 %v2707, %v2809
        %v2811 = vpop.f32.mrf.mxu0
        %2812 = vmatprep.mubr.f32.mxu0 0.0
        %v2813 = vand.u32 %v2611, 4294901760
        %2814 = vmatmul.mubr.f32.gmra.mxu0 %v2813
        %v2815 = vpop.f32.mrf.mxu0
        %v2816 = vadd.f32 %v2717, %v2815
        %v2817 = vpop.f32.mrf.mxu0
        %2818 = vdwg.mxu0
        %2819 = vmatprep.subr.mxu0 0.0
        %2820 = vmatpush1.msra.mxu0 0.0
        %2821 = vmatprep.subr.mxu0 0.0
        %2822 = vmatpush1.msra.mxu0 0.0
        %2823 = vmatprep.subr.mxu0 0.0
        %2824 = vmatpush1.msra.mxu0 0.0
        %2825 = vmatprep.subr.mxu0 0.0
        %2826 = vmatpush1.msra.mxu0 0.0
        %2827 = vmatprep.subr.mxu0 0.0
        %2828 = vmatpush1.msra.mxu0 0.0
        %2829 = vmatprep.subr.mxu0 0.0
        %2830 = vmatpush1.msra.mxu0 0.0
        %2831 = vmatprep.subr.mxu0 0.0
        %2832 = vmatpush1.msra.mxu0 0.0
        %2833 = vmatprep.subr.mxu0 0.0
        %2834 = vmatpush1.msra.mxu0 0.0
        %2835 = vmatprep.subr.mxu0 0.0
        %2836 = vmatpush1.msra.mxu0 0.0
        %2837 = vmatprep.subr.mxu0 0.0
        %2838 = vmatpush1.msra.mxu0 0.0
        %2839 = vmatprep.subr.mxu0 0.0
        %2840 = vmatpush1.msra.mxu0 0.0
        %2841 = vmatprep.subr.mxu0 0.0
        %2842 = vmatpush1.msra.mxu0 0.0
        %2843 = vmatprep.subr.mxu0 0.0
        %2844 = vmatpush1.msra.mxu0 0.0
        %2845 = vmatprep.subr.mxu0 0.0
        %2846 = vmatpush1.msra.mxu0 0.0
        %2847 = vmatprep.subr.mxu0 0.0
        %v2848 = vand.u32 %v2594, 4294901760
        %v2849 = vsub.f32 %v2594, %v2848
        %2850 = vmatpush1.msra.mxu0 %v2849
        %2851 = vmatprep.subr.mxu0 0.0
        %v2852 = vand.u32 %v2582, 4294901760
        %v2853 = vsub.f32 %v2582, %v2852
        %2854 = vmatpush1.msra.mxu0 %v2853
        %2855 = vmatprep.subr.mxu0 0.0
        %2856 = vmatpush2.msra.mxu0 0.0
        %2857 = vmatprep.subr.mxu0 0.0
        %2858 = vmatpush2.msra.mxu0 0.0
        %2859 = vmatprep.subr.mxu0 0.0
        %2860 = vmatpush2.msra.mxu0 0.0
        %2861 = vmatprep.subr.mxu0 0.0
        %2862 = vmatpush2.msra.mxu0 0.0
        %2863 = vmatprep.subr.mxu0 0.0
        %2864 = vmatpush2.msra.mxu0 0.0
        %2865 = vmatprep.subr.mxu0 0.0
        %2866 = vmatpush2.msra.mxu0 0.0
        %2867 = vmatprep.subr.mxu0 0.0
        %2868 = vmatpush2.msra.mxu0 0.0
        %2869 = vmatprep.subr.mxu0 0.0
        %2870 = vmatpush2.msra.mxu0 0.0
        %2871 = vmatprep.subr.mxu0 0.0
        %2872 = vmatpush2.msra.mxu0 0.0
        %2873 = vmatprep.subr.mxu0 0.0
        %2874 = vmatpush2.msra.mxu0 0.0
        %2875 = vmatprep.subr.mxu0 0.0
        %2876 = vmatpush2.msra.mxu0 0.0
        %2877 = vmatprep.subr.mxu0 0.0
        %2878 = vmatpush2.msra.mxu0 0.0
        %2879 = vmatprep.subr.mxu0 0.0
        %2880 = vmatpush2.msra.mxu0 0.0
        %2881 = vmatprep.subr.mxu0 0.0
        %2882 = vmatpush2.msra.mxu0 0.0
        %2883 = vmatprep.subr.mxu0 0.0
        %2884 = vmatpush2.msra.mxu0 0.0
        %2885 = vmatprep.subr.mxu0 0.0
        %2886 = vmatpush2.msra.mxu0 0.0
        %2887 = vmatprep.mubr.f32.mxu0 0.0
        %v2888 = vand.u32 %v2602, 4294901760
        %v2889 = vsub.f32 %v2602, %v2888
        %2890 = vmatmul.mubr.f32.gmra.mxu0 %v2889
        %v2891 = vpop.f32.mrf.mxu0
        %v2892 = vadd.f32 %v2798, %v2891
        %v2893 = vpop.f32.mrf.mxu0
        %2894 = vmatprep.mubr.f32.mxu0 0.0
        %v2895 = vand.u32 %v2605, 4294901760
        %v2896 = vsub.f32 %v2605, %v2895
        %2897 = vmatmul.mubr.f32.gmra.mxu0 %v2896
        %v2898 = vpop.f32.mrf.mxu0
        %v2899 = vadd.f32 %v2804, %v2898
        %v2900 = vpop.f32.mrf.mxu0
        %2901 = vmatprep.mubr.f32.mxu0 0.0
        %v2902 = vand.u32 %v2608, 4294901760
        %v2903 = vsub.f32 %v2608, %v2902
        %2904 = vmatmul.mubr.f32.gmra.mxu0 %v2903
        %v2905 = vpop.f32.mrf.mxu0
        %v2906 = vadd.f32 %v2810, %v2905
        %v2907 = vpop.f32.mrf.mxu0
        %2908 = vmatprep.mubr.f32.mxu0 0.0
        %v2909 = vand.u32 %v2611, 4294901760
        %v2910 = vsub.f32 %v2611, %v2909
        %2911 = vmatmul.mubr.f32.gmra.mxu0 %v2910
        %v2912 = vpop.f32.mrf.mxu0
        %v2913 = vadd.f32 %v2816, %v2912
        %v2914 = vpop.f32.mrf.mxu0
        %2915 = vdwg.mxu0
        %2916 = vmatprep.subr.mxu0 0.0
        %2917 = vmatpush1.msra.mxu0 0.0
        %2918 = vmatprep.subr.mxu0 0.0
        %2919 = vmatpush1.msra.mxu0 0.0
        %2920 = vmatprep.subr.mxu0 0.0
        %2921 = vmatpush1.msra.mxu0 0.0
        %2922 = vmatprep.subr.mxu0 0.0
        %2923 = vmatpush1.msra.mxu0 0.0
        %2924 = vmatprep.subr.mxu0 0.0
        %2925 = vmatpush1.msra.mxu0 0.0
        %2926 = vmatprep.subr.mxu0 0.0
        %2927 = vmatpush1.msra.mxu0 0.0
        %2928 = vmatprep.subr.mxu0 0.0
        %2929 = vmatpush1.msra.mxu0 0.0
        %2930 = vmatprep.subr.mxu0 0.0
        %2931 = vmatpush1.msra.mxu0 0.0
        %2932 = vmatprep.subr.mxu0 0.0
        %2933 = vmatpush1.msra.mxu0 0.0
        %2934 = vmatprep.subr.mxu0 0.0
        %2935 = vmatpush1.msra.mxu0 0.0
        %2936 = vmatprep.subr.mxu0 0.0
        %2937 = vmatpush1.msra.mxu0 0.0
        %2938 = vmatprep.subr.mxu0 0.0
        %2939 = vmatpush1.msra.mxu0 0.0
        %2940 = vmatprep.subr.mxu0 0.0
        %2941 = vmatpush1.msra.mxu0 0.0
        %2942 = vmatprep.subr.mxu0 0.0
        %2943 = vmatpush1.msra.mxu0 0.0
        %2944 = vmatprep.subr.mxu0 0.0
        %v2945 = vand.u32 %v2594, 4294901760
        %2946 = vmatpush1.msra.mxu0 %v2945
        %2947 = vmatprep.subr.mxu0 0.0
        %v2948 = vand.u32 %v2582, 4294901760
        %2949 = vmatpush1.msra.mxu0 %v2948
        %2950 = vmatprep.subr.mxu0 0.0
        %2951 = vmatpush2.msra.mxu0 0.0
        %2952 = vmatprep.subr.mxu0 0.0
        %2953 = vmatpush2.msra.mxu0 0.0
        %2954 = vmatprep.subr.mxu0 0.0
        %2955 = vmatpush2.msra.mxu0 0.0
        %2956 = vmatprep.subr.mxu0 0.0
        %2957 = vmatpush2.msra.mxu0 0.0
        %2958 = vmatprep.subr.mxu0 0.0
        %2959 = vmatpush2.msra.mxu0 0.0
        %2960 = vmatprep.subr.mxu0 0.0
        %2961 = vmatpush2.msra.mxu0 0.0
        %2962 = vmatprep.subr.mxu0 0.0
        %2963 = vmatpush2.msra.mxu0 0.0
        %2964 = vmatprep.subr.mxu0 0.0
        %2965 = vmatpush2.msra.mxu0 0.0
        %2966 = vmatprep.subr.mxu0 0.0
        %2967 = vmatpush2.msra.mxu0 0.0
        %2968 = vmatprep.subr.mxu0 0.0
        %2969 = vmatpush2.msra.mxu0 0.0
        %2970 = vmatprep.subr.mxu0 0.0
        %2971 = vmatpush2.msra.mxu0 0.0
        %2972 = vmatprep.subr.mxu0 0.0
        %2973 = vmatpush2.msra.mxu0 0.0
        %2974 = vmatprep.subr.mxu0 0.0
        %2975 = vmatpush2.msra.mxu0 0.0
        %2976 = vmatprep.subr.mxu0 0.0
        %2977 = vmatpush2.msra.mxu0 0.0
        %2978 = vmatprep.subr.mxu0 0.0
        %2979 = vmatpush2.msra.mxu0 0.0
        %2980 = vmatprep.subr.mxu0 0.0
        %2981 = vmatpush2.msra.mxu0 0.0
        %2982 = vmatprep.mubr.f32.mxu0 0.0
        %v2983 = vand.u32 %v2602, 4294901760
        %v2984 = vsub.f32 %v2602, %v2983
        %v2985 = vand.u32 %v2984, 4294901760
        %2986 = vmatmul.mubr.f32.gmra.mxu0 %v2985
        %v2987 = vpop.f32.mrf.mxu0
        %v2988 = vadd.f32 %v2892, %v2987
        %v2989 = vpop.f32.mrf.mxu0
        %2990 = vmatprep.mubr.f32.mxu0 0.0
        %v2991 = vand.u32 %v2605, 4294901760
        %v2992 = vsub.f32 %v2605, %v2991
        %v2993 = vand.u32 %v2992, 4294901760
        %2994 = vmatmul.mubr.f32.gmra.mxu0 %v2993
        %v2995 = vpop.f32.mrf.mxu0
        %v2996 = vadd.f32 %v2899, %v2995
        %v2997 = vpop.f32.mrf.mxu0
        %2998 = vmatprep.mubr.f32.mxu0 0.0
        %v2999 = vand.u32 %v2608, 4294901760
        %v3000 = vsub.f32 %v2608, %v2999
        %v3001 = vand.u32 %v3000, 4294901760
        %3002 = vmatmul.mubr.f32.gmra.mxu0 %v3001
        %v3003 = vpop.f32.mrf.mxu0
        %v3004 = vadd.f32 %v2906, %v3003
        %v3005 = vpop.f32.mrf.mxu0
        %3006 = vmatprep.mubr.f32.mxu0 0.0
        %v3007 = vand.u32 %v2611, 4294901760
        %v3008 = vsub.f32 %v2611, %v3007
        %v3009 = vand.u32 %v3008, 4294901760
        %3010 = vmatmul.mubr.f32.gmra.mxu0 %v3009
        %v3011 = vpop.f32.mrf.mxu0
        %v3012 = vadd.f32 %v2913, %v3011
        %v3013 = vpop.f32.mrf.mxu0
        %3014 = vdwg.mxu0
        %3015 = vmatprep.subr.mxu0 0.0
        %3016 = vmatpush1.msra.mxu0 0.0
        %3017 = vmatprep.subr.mxu0 0.0
        %3018 = vmatpush1.msra.mxu0 0.0
        %3019 = vmatprep.subr.mxu0 0.0
        %3020 = vmatpush1.msra.mxu0 0.0
        %3021 = vmatprep.subr.mxu0 0.0
        %3022 = vmatpush1.msra.mxu0 0.0
        %3023 = vmatprep.subr.mxu0 0.0
        %3024 = vmatpush1.msra.mxu0 0.0
        %3025 = vmatprep.subr.mxu0 0.0
        %3026 = vmatpush1.msra.mxu0 0.0
        %3027 = vmatprep.subr.mxu0 0.0
        %3028 = vmatpush1.msra.mxu0 0.0
        %3029 = vmatprep.subr.mxu0 0.0
        %3030 = vmatpush1.msra.mxu0 0.0
        %3031 = vmatprep.subr.mxu0 0.0
        %3032 = vmatpush1.msra.mxu0 0.0
        %3033 = vmatprep.subr.mxu0 0.0
        %3034 = vmatpush1.msra.mxu0 0.0
        %3035 = vmatprep.subr.mxu0 0.0
        %3036 = vmatpush1.msra.mxu0 0.0
        %3037 = vmatprep.subr.mxu0 0.0
        %3038 = vmatpush1.msra.mxu0 0.0
        %3039 = vmatprep.subr.mxu0 0.0
        %3040 = vmatpush1.msra.mxu0 0.0
        %3041 = vmatprep.subr.mxu0 0.0
        %3042 = vmatpush1.msra.mxu0 0.0
        %3043 = vmatprep.subr.mxu0 0.0
        %v3044 = vand.u32 %v2594, 4294901760
        %v3045 = vsub.f32 %v2594, %v3044
        %v3046 = vand.u32 %v3045, 4294901760
        %3047 = vmatpush1.msra.mxu0 %v3046
        %3048 = vmatprep.subr.mxu0 0.0
        %v3049 = vand.u32 %v2582, 4294901760
        %v3050 = vsub.f32 %v2582, %v3049
        %v3051 = vand.u32 %v3050, 4294901760
        %3052 = vmatpush1.msra.mxu0 %v3051
        %3053 = vmatprep.subr.mxu0 0.0
        %3054 = vmatpush2.msra.mxu0 0.0
        %3055 = vmatprep.subr.mxu0 0.0
        %3056 = vmatpush2.msra.mxu0 0.0
        %3057 = vmatprep.subr.mxu0 0.0
        %3058 = vmatpush2.msra.mxu0 0.0
        %3059 = vmatprep.subr.mxu0 0.0
        %3060 = vmatpush2.msra.mxu0 0.0
        %3061 = vmatprep.subr.mxu0 0.0
        %3062 = vmatpush2.msra.mxu0 0.0
        %3063 = vmatprep.subr.mxu0 0.0
        %3064 = vmatpush2.msra.mxu0 0.0
        %3065 = vmatprep.subr.mxu0 0.0
        %3066 = vmatpush2.msra.mxu0 0.0
        %3067 = vmatprep.subr.mxu0 0.0
        %3068 = vmatpush2.msra.mxu0 0.0
        %3069 = vmatprep.subr.mxu0 0.0
        %3070 = vmatpush2.msra.mxu0 0.0
        %3071 = vmatprep.subr.mxu0 0.0
        %3072 = vmatpush2.msra.mxu0 0.0
        %3073 = vmatprep.subr.mxu0 0.0
        %3074 = vmatpush2.msra.mxu0 0.0
        %3075 = vmatprep.subr.mxu0 0.0
        %3076 = vmatpush2.msra.mxu0 0.0
        %3077 = vmatprep.subr.mxu0 0.0
        %3078 = vmatpush2.msra.mxu0 0.0
        %3079 = vmatprep.subr.mxu0 0.0
        %3080 = vmatpush2.msra.mxu0 0.0
        %3081 = vmatprep.subr.mxu0 0.0
        %3082 = vmatpush2.msra.mxu0 0.0
        %3083 = vmatprep.subr.mxu0 0.0
        %3084 = vmatpush2.msra.mxu0 0.0
        %3085 = vmatprep.mubr.f32.mxu0 0.0
        %v3086 = vand.u32 %v2602, 4294901760
        %3087 = vmatmul.mubr.f32.gmra.mxu0 %v3086
        %v3088 = vpop.f32.mrf.mxu0
        %v3089 = vadd.f32 %v2988, %v3088
        %v3090 = vpop.f32.mrf.mxu0
        %3091 = vmatprep.mubr.f32.mxu0 0.0
        %v3092 = vand.u32 %v2605, 4294901760
        %3093 = vmatmul.mubr.f32.gmra.mxu0 %v3092
        %v3094 = vpop.f32.mrf.mxu0
        %v3095 = vadd.f32 %v2996, %v3094
        %v3096 = vpop.f32.mrf.mxu0
        %3097 = vmatprep.mubr.f32.mxu0 0.0
        %v3098 = vand.u32 %v2608, 4294901760
        %3099 = vmatmul.mubr.f32.gmra.mxu0 %v3098
        %v3100 = vpop.f32.mrf.mxu0
        %v3101 = vadd.f32 %v3004, %v3100
        %v3102 = vpop.f32.mrf.mxu0
        %3103 = vmatprep.mubr.f32.mxu0 0.0
        %v3104 = vand.u32 %v2611, 4294901760
        %3105 = vmatmul.mubr.f32.gmra.mxu0 %v3104
        %v3106 = vpop.f32.mrf.mxu0
        %v3107 = vadd.f32 %v3012, %v3106
        %v3108 = vpop.f32.mrf.mxu0
        %3109 = vdwg.mxu0
        %3110 = vmatprep.subr.mxu0 0.0
        %3111 = vmatpush1.msra.mxu0 0.0
        %3112 = vmatprep.subr.mxu0 0.0
        %3113 = vmatpush1.msra.mxu0 0.0
        %3114 = vmatprep.subr.mxu0 0.0
        %3115 = vmatpush1.msra.mxu0 0.0
        %3116 = vmatprep.subr.mxu0 0.0
        %3117 = vmatpush1.msra.mxu0 0.0
        %3118 = vmatprep.subr.mxu0 0.0
        %3119 = vmatpush1.msra.mxu0 0.0
        %3120 = vmatprep.subr.mxu0 0.0
        %3121 = vmatpush1.msra.mxu0 0.0
        %3122 = vmatprep.subr.mxu0 0.0
        %3123 = vmatpush1.msra.mxu0 0.0
        %3124 = vmatprep.subr.mxu0 0.0
        %3125 = vmatpush1.msra.mxu0 0.0
        %3126 = vmatprep.subr.mxu0 0.0
        %3127 = vmatpush1.msra.mxu0 0.0
        %3128 = vmatprep.subr.mxu0 0.0
        %3129 = vmatpush1.msra.mxu0 0.0
        %3130 = vmatprep.subr.mxu0 0.0
        %3131 = vmatpush1.msra.mxu0 0.0
        %3132 = vmatprep.subr.mxu0 0.0
        %3133 = vmatpush1.msra.mxu0 0.0
        %3134 = vmatprep.subr.mxu0 0.0
        %3135 = vmatpush1.msra.mxu0 0.0
        %3136 = vmatprep.subr.mxu0 0.0
        %3137 = vmatpush1.msra.mxu0 0.0
        %3138 = vmatprep.subr.mxu0 0.0
        %v3139 = vand.u32 %v2594, 4294901760
        %3140 = vmatpush1.msra.mxu0 %v3139
        %3141 = vmatprep.subr.mxu0 0.0
        %v3142 = vand.u32 %v2582, 4294901760
        %3143 = vmatpush1.msra.mxu0 %v3142
        %3144 = vmatprep.subr.mxu0 0.0
        %3145 = vmatpush2.msra.mxu0 0.0
        %3146 = vmatprep.subr.mxu0 0.0
        %3147 = vmatpush2.msra.mxu0 0.0
        %3148 = vmatprep.subr.mxu0 0.0
        %3149 = vmatpush2.msra.mxu0 0.0
        %3150 = vmatprep.subr.mxu0 0.0
        %3151 = vmatpush2.msra.mxu0 0.0
        %3152 = vmatprep.subr.mxu0 0.0
        %3153 = vmatpush2.msra.mxu0 0.0
        %3154 = vmatprep.subr.mxu0 0.0
        %3155 = vmatpush2.msra.mxu0 0.0
        %3156 = vmatprep.subr.mxu0 0.0
        %3157 = vmatpush2.msra.mxu0 0.0
        %3158 = vmatprep.subr.mxu0 0.0
        %3159 = vmatpush2.msra.mxu0 0.0
        %3160 = vmatprep.subr.mxu0 0.0
        %3161 = vmatpush2.msra.mxu0 0.0
        %3162 = vmatprep.subr.mxu0 0.0
        %3163 = vmatpush2.msra.mxu0 0.0
        %3164 = vmatprep.subr.mxu0 0.0
        %3165 = vmatpush2.msra.mxu0 0.0
        %3166 = vmatprep.subr.mxu0 0.0
        %3167 = vmatpush2.msra.mxu0 0.0
        %3168 = vmatprep.subr.mxu0 0.0
        %3169 = vmatpush2.msra.mxu0 0.0
        %3170 = vmatprep.subr.mxu0 0.0
        %3171 = vmatpush2.msra.mxu0 0.0
        %3172 = vmatprep.subr.mxu0 0.0
        %3173 = vmatpush2.msra.mxu0 0.0
        %3174 = vmatprep.subr.mxu0 0.0
        %3175 = vmatpush2.msra.mxu0 0.0
        %3176 = vmatprep.mubr.f32.mxu0 0.0
        %v3177 = vand.u32 %v2602, 4294901760
        %3178 = vmatmul.mubr.f32.gmra.mxu0 %v3177
        %v3179 = vpop.f32.mrf.mxu0
        %v3180 = vadd.f32 %v3089, %v3179
        %v3181 = vpop.f32.mrf.mxu0
        %3182 = vmatprep.mubr.f32.mxu0 0.0
        %v3183 = vand.u32 %v2605, 4294901760
        %3184 = vmatmul.mubr.f32.gmra.mxu0 %v3183
        %v3185 = vpop.f32.mrf.mxu0
        %v3186 = vadd.f32 %v3095, %v3185
        %v3187 = vpop.f32.mrf.mxu0
        %3188 = vmatprep.mubr.f32.mxu0 0.0
        %v3189 = vand.u32 %v2608, 4294901760
        %3190 = vmatmul.mubr.f32.gmra.mxu0 %v3189
        %v3191 = vpop.f32.mrf.mxu0
        %v3192 = vadd.f32 %v3101, %v3191
        %v3193 = vpop.f32.mrf.mxu0
        %3194 = vmatprep.mubr.f32.mxu0 0.0
        %v3195 = vand.u32 %v2611, 4294901760
        %3196 = vmatmul.mubr.f32.gmra.mxu0 %v3195
        %v3197 = vpop.f32.mrf.mxu0
        %v3198 = vadd.f32 %v3107, %v3197
        %v3199 = vpop.f32.mrf.mxu0
        %3200 = vdwg.mxu0
        %v3201 = vtanh.pop %v3180
        %v3202 = vtanh.pop %v3186
        %v3203 = vxor.u32 %v3192, 2147483648
        %v3204 = vxor.u32 %v3198, 2147483648
        %v3205 = vmul.f32 %v3203, 1.442695
        %v3206 = vpow.pop %v3205
        %v3207 = vmul.f32 %v3204, 1.442695
        %v3208 = vpow.pop %v3207
        %v3209 = vadd.f32 %v3206, 1.0
        %v3210 = vadd.f32 %v3208, 1.0
        %v3211 = vrcp.pop %v3209
        %v3212 = vmul.f32 1.0, %v3211
        %v3213 = vrcp.pop %v3210
        %v3214 = vmul.f32 1.0, %v3213
        %v3215 = vmul.f32 %v3201, %v3212
        %v3216 = vmul.f32 %v3202, %v3214
        %s3217 = scalar_lea.vmem %s3, 32
        %v3218 = vld [vmem:[%s3217] sm:$0xff]
        %v3219 = vld [vmem:[%s3217 + $0x8] sm:$0xff]
        %v3221 = vsel %vm309, %v3218, 0
        %v3224 = vsel %vm309, %v3219, 0
        %3226 = vmatprep.subr.mxu0 0.0
        %3227 = vmatpush1.msra.mxu0 0.0
        %3228 = vmatprep.subr.mxu0 0.0
        %3229 = vmatpush1.msra.mxu0 0.0
        %3230 = vmatprep.subr.mxu0 0.0
        %3231 = vmatpush1.msra.mxu0 0.0
        %3232 = vmatprep.subr.mxu0 0.0
        %3233 = vmatpush1.msra.mxu0 0.0
        %3234 = vmatprep.subr.mxu0 0.0
        %3235 = vmatpush1.msra.mxu0 0.0
        %3236 = vmatprep.subr.mxu0 0.0
        %3237 = vmatpush1.msra.mxu0 0.0
        %3238 = vmatprep.subr.mxu0 0.0
        %3239 = vmatpush1.msra.mxu0 0.0
        %3240 = vmatprep.subr.mxu0 0.0
        %3241 = vmatpush1.msra.mxu0 0.0
        %3242 = vmatprep.subr.mxu0 0.0
        %3243 = vmatpush1.msra.mxu0 0.0
        %3244 = vmatprep.subr.mxu0 0.0
        %3245 = vmatpush1.msra.mxu0 0.0
        %3246 = vmatprep.subr.mxu0 0.0
        %3247 = vmatpush1.msra.mxu0 0.0
        %3248 = vmatprep.subr.mxu0 0.0
        %3249 = vmatpush1.msra.mxu0 0.0
        %3250 = vmatprep.subr.mxu0 0.0
        %3251 = vmatpush1.msra.mxu0 0.0
        %3252 = vmatprep.subr.mxu0 0.0
        %3253 = vmatpush1.msra.mxu0 0.0
        %3254 = vmatprep.subr.mxu0 0.0
        %v3255 = vand.u32 %v3216, 4294901760
        %3256 = vmatpush1.msra.mxu0 %v3255
        %3257 = vmatprep.subr.mxu0 0.0
        %v3258 = vand.u32 %v3215, 4294901760
        %3259 = vmatpush1.msra.mxu0 %v3258
        %3260 = vmatprep.subr.mxu0 0.0
        %3261 = vmatpush2.msra.mxu0 0.0
        %3262 = vmatprep.subr.mxu0 0.0
        %3263 = vmatpush2.msra.mxu0 0.0
        %3264 = vmatprep.subr.mxu0 0.0
        %3265 = vmatpush2.msra.mxu0 0.0
        %3266 = vmatprep.subr.mxu0 0.0
        %3267 = vmatpush2.msra.mxu0 0.0
        %3268 = vmatprep.subr.mxu0 0.0
        %3269 = vmatpush2.msra.mxu0 0.0
        %3270 = vmatprep.subr.mxu0 0.0
        %3271 = vmatpush2.msra.mxu0 0.0
        %3272 = vmatprep.subr.mxu0 0.0
        %3273 = vmatpush2.msra.mxu0 0.0
        %3274 = vmatprep.subr.mxu0 0.0
        %3275 = vmatpush2.msra.mxu0 0.0
        %3276 = vmatprep.subr.mxu0 0.0
        %3277 = vmatpush2.msra.mxu0 0.0
        %3278 = vmatprep.subr.mxu0 0.0
        %3279 = vmatpush2.msra.mxu0 0.0
        %3280 = vmatprep.subr.mxu0 0.0
        %3281 = vmatpush2.msra.mxu0 0.0
        %3282 = vmatprep.subr.mxu0 0.0
        %3283 = vmatpush2.msra.mxu0 0.0
        %3284 = vmatprep.subr.mxu0 0.0
        %3285 = vmatpush2.msra.mxu0 0.0
        %3286 = vmatprep.subr.mxu0 0.0
        %3287 = vmatpush2.msra.mxu0 0.0
        %3288 = vmatprep.subr.mxu0 0.0
        %3289 = vmatpush2.msra.mxu0 0.0
        %3290 = vmatprep.subr.mxu0 0.0
        %3291 = vmatpush2.msra.mxu0 0.0
        %3292 = vmatprep.mubr.f32.mxu0 0.0
        %v3293 = vand.u32 %v3221, 4294901760
        %v3294 = vsub.f32 %v3221, %v3293
        %v3295 = vand.u32 %v3294, 4294901760
        %v3296 = vsub.f32 %v3294, %v3295
        %v3297 = vand.u32 %v3296, 4294901760
        %3298 = vmatmul.mubr.f32.gmra.mxu0 %v3297
        %v3299 = vpop.f32.mrf.mxu0
        %v3300 = vadd.f32 0.0, %v3299
        %v3301 = vpop.f32.mrf.mxu0
        %3302 = vmatprep.mubr.f32.mxu0 0.0
        %v3303 = vand.u32 %v3224, 4294901760
        %v3304 = vsub.f32 %v3224, %v3303
        %v3305 = vand.u32 %v3304, 4294901760
        %v3306 = vsub.f32 %v3304, %v3305
        %v3307 = vand.u32 %v3306, 4294901760
        %3308 = vmatmul.mubr.f32.gmra.mxu0 %v3307
        %v3309 = vpop.f32.mrf.mxu0
        %v3310 = vadd.f32 0.0, %v3309
        %v3311 = vpop.f32.mrf.mxu0
        %3312 = vdwg.mxu0
        %3313 = vmatprep.subr.mxu0 0.0
        %3314 = vmatpush1.msra.mxu0 0.0
        %3315 = vmatprep.subr.mxu0 0.0
        %3316 = vmatpush1.msra.mxu0 0.0
        %3317 = vmatprep.subr.mxu0 0.0
        %3318 = vmatpush1.msra.mxu0 0.0
        %3319 = vmatprep.subr.mxu0 0.0
        %3320 = vmatpush1.msra.mxu0 0.0
        %3321 = vmatprep.subr.mxu0 0.0
        %3322 = vmatpush1.msra.mxu0 0.0
        %3323 = vmatprep.subr.mxu0 0.0
        %3324 = vmatpush1.msra.mxu0 0.0
        %3325 = vmatprep.subr.mxu0 0.0
        %3326 = vmatpush1.msra.mxu0 0.0
        %3327 = vmatprep.subr.mxu0 0.0
        %3328 = vmatpush1.msra.mxu0 0.0
        %3329 = vmatprep.subr.mxu0 0.0
        %3330 = vmatpush1.msra.mxu0 0.0
        %3331 = vmatprep.subr.mxu0 0.0
        %3332 = vmatpush1.msra.mxu0 0.0
        %3333 = vmatprep.subr.mxu0 0.0
        %3334 = vmatpush1.msra.mxu0 0.0
        %3335 = vmatprep.subr.mxu0 0.0
        %3336 = vmatpush1.msra.mxu0 0.0
        %3337 = vmatprep.subr.mxu0 0.0
        %3338 = vmatpush1.msra.mxu0 0.0
        %3339 = vmatprep.subr.mxu0 0.0
        %3340 = vmatpush1.msra.mxu0 0.0
        %3341 = vmatprep.subr.mxu0 0.0
        %v3342 = vand.u32 %v3216, 4294901760
        %v3343 = vsub.f32 %v3216, %v3342
        %v3344 = vand.u32 %v3343, 4294901760
        %v3345 = vsub.f32 %v3343, %v3344
        %v3346 = vand.u32 %v3345, 4294901760
        %3347 = vmatpush1.msra.mxu0 %v3346
        %3348 = vmatprep.subr.mxu0 0.0
        %v3349 = vand.u32 %v3215, 4294901760
        %v3350 = vsub.f32 %v3215, %v3349
        %v3351 = vand.u32 %v3350, 4294901760
        %v3352 = vsub.f32 %v3350, %v3351
        %v3353 = vand.u32 %v3352, 4294901760
        %3354 = vmatpush1.msra.mxu0 %v3353
        %3355 = vmatprep.subr.mxu0 0.0
        %3356 = vmatpush2.msra.mxu0 0.0
        %3357 = vmatprep.subr.mxu0 0.0
        %3358 = vmatpush2.msra.mxu0 0.0
        %3359 = vmatprep.subr.mxu0 0.0
        %3360 = vmatpush2.msra.mxu0 0.0
        %3361 = vmatprep.subr.mxu0 0.0
        %3362 = vmatpush2.msra.mxu0 0.0
        %3363 = vmatprep.subr.mxu0 0.0
        %3364 = vmatpush2.msra.mxu0 0.0
        %3365 = vmatprep.subr.mxu0 0.0
        %3366 = vmatpush2.msra.mxu0 0.0
        %3367 = vmatprep.subr.mxu0 0.0
        %3368 = vmatpush2.msra.mxu0 0.0
        %3369 = vmatprep.subr.mxu0 0.0
        %3370 = vmatpush2.msra.mxu0 0.0
        %3371 = vmatprep.subr.mxu0 0.0
        %3372 = vmatpush2.msra.mxu0 0.0
        %3373 = vmatprep.subr.mxu0 0.0
        %3374 = vmatpush2.msra.mxu0 0.0
        %3375 = vmatprep.subr.mxu0 0.0
        %3376 = vmatpush2.msra.mxu0 0.0
        %3377 = vmatprep.subr.mxu0 0.0
        %3378 = vmatpush2.msra.mxu0 0.0
        %3379 = vmatprep.subr.mxu0 0.0
        %3380 = vmatpush2.msra.mxu0 0.0
        %3381 = vmatprep.subr.mxu0 0.0
        %3382 = vmatpush2.msra.mxu0 0.0
        %3383 = vmatprep.subr.mxu0 0.0
        %3384 = vmatpush2.msra.mxu0 0.0
        %3385 = vmatprep.subr.mxu0 0.0
        %3386 = vmatpush2.msra.mxu0 0.0
        %3387 = vmatprep.mubr.f32.mxu0 0.0
        %v3388 = vand.u32 %v3221, 4294901760
        %3389 = vmatmul.mubr.f32.gmra.mxu0 %v3388
        %v3390 = vpop.f32.mrf.mxu0
        %v3391 = vadd.f32 %v3300, %v3390
        %v3392 = vpop.f32.mrf.mxu0
        %3393 = vmatprep.mubr.f32.mxu0 0.0
        %v3394 = vand.u32 %v3224, 4294901760
        %3395 = vmatmul.mubr.f32.gmra.mxu0 %v3394
        %v3396 = vpop.f32.mrf.mxu0
        %v3397 = vadd.f32 %v3310, %v3396
        %v3398 = vpop.f32.mrf.mxu0
        %3399 = vdwg.mxu0
        %3400 = vmatprep.subr.mxu0 0.0
        %3401 = vmatpush1.msra.mxu0 0.0
        %3402 = vmatprep.subr.mxu0 0.0
        %3403 = vmatpush1.msra.mxu0 0.0
        %3404 = vmatprep.subr.mxu0 0.0
        %3405 = vmatpush1.msra.mxu0 0.0
        %3406 = vmatprep.subr.mxu0 0.0
        %3407 = vmatpush1.msra.mxu0 0.0
        %3408 = vmatprep.subr.mxu0 0.0
        %3409 = vmatpush1.msra.mxu0 0.0
        %3410 = vmatprep.subr.mxu0 0.0
        %3411 = vmatpush1.msra.mxu0 0.0
        %3412 = vmatprep.subr.mxu0 0.0
        %3413 = vmatpush1.msra.mxu0 0.0
        %3414 = vmatprep.subr.mxu0 0.0
        %3415 = vmatpush1.msra.mxu0 0.0
        %3416 = vmatprep.subr.mxu0 0.0
        %3417 = vmatpush1.msra.mxu0 0.0
        %3418 = vmatprep.subr.mxu0 0.0
        %3419 = vmatpush1.msra.mxu0 0.0
        %3420 = vmatprep.subr.mxu0 0.0
        %3421 = vmatpush1.msra.mxu0 0.0
        %3422 = vmatprep.subr.mxu0 0.0
        %3423 = vmatpush1.msra.mxu0 0.0
        %3424 = vmatprep.subr.mxu0 0.0
        %3425 = vmatpush1.msra.mxu0 0.0
        %3426 = vmatprep.subr.mxu0 0.0
        %3427 = vmatpush1.msra.mxu0 0.0
        %3428 = vmatprep.subr.mxu0 0.0
        %v3429 = vand.u32 %v3216, 4294901760
        %v3430 = vsub.f32 %v3216, %v3429
        %3431 = vmatpush1.msra.mxu0 %v3430
        %3432 = vmatprep.subr.mxu0 0.0
        %v3433 = vand.u32 %v3215, 4294901760
        %v3434 = vsub.f32 %v3215, %v3433
        %3435 = vmatpush1.msra.mxu0 %v3434
        %3436 = vmatprep.subr.mxu0 0.0
        %3437 = vmatpush2.msra.mxu0 0.0
        %3438 = vmatprep.subr.mxu0 0.0
        %3439 = vmatpush2.msra.mxu0 0.0
        %3440 = vmatprep.subr.mxu0 0.0
        %3441 = vmatpush2.msra.mxu0 0.0
        %3442 = vmatprep.subr.mxu0 0.0
        %3443 = vmatpush2.msra.mxu0 0.0
        %3444 = vmatprep.subr.mxu0 0.0
        %3445 = vmatpush2.msra.mxu0 0.0
        %3446 = vmatprep.subr.mxu0 0.0
        %3447 = vmatpush2.msra.mxu0 0.0
        %3448 = vmatprep.subr.mxu0 0.0
        %3449 = vmatpush2.msra.mxu0 0.0
        %3450 = vmatprep.subr.mxu0 0.0
        %3451 = vmatpush2.msra.mxu0 0.0
        %3452 = vmatprep.subr.mxu0 0.0
        %3453 = vmatpush2.msra.mxu0 0.0
        %3454 = vmatprep.subr.mxu0 0.0
        %3455 = vmatpush2.msra.mxu0 0.0
        %3456 = vmatprep.subr.mxu0 0.0
        %3457 = vmatpush2.msra.mxu0 0.0
        %3458 = vmatprep.subr.mxu0 0.0
        %3459 = vmatpush2.msra.mxu0 0.0
        %3460 = vmatprep.subr.mxu0 0.0
        %3461 = vmatpush2.msra.mxu0 0.0
        %3462 = vmatprep.subr.mxu0 0.0
        %3463 = vmatpush2.msra.mxu0 0.0
        %3464 = vmatprep.subr.mxu0 0.0
        %3465 = vmatpush2.msra.mxu0 0.0
        %3466 = vmatprep.subr.mxu0 0.0
        %3467 = vmatpush2.msra.mxu0 0.0
        %3468 = vmatprep.mubr.f32.mxu0 0.0
        %v3469 = vand.u32 %v3221, 4294901760
        %v3470 = vsub.f32 %v3221, %v3469
        %3471 = vmatmul.mubr.f32.gmra.mxu0 %v3470
        %v3472 = vpop.f32.mrf.mxu0
        %v3473 = vadd.f32 %v3391, %v3472
        %v3474 = vpop.f32.mrf.mxu0
        %3475 = vmatprep.mubr.f32.mxu0 0.0
        %v3476 = vand.u32 %v3224, 4294901760
        %v3477 = vsub.f32 %v3224, %v3476
        %3478 = vmatmul.mubr.f32.gmra.mxu0 %v3477
        %v3479 = vpop.f32.mrf.mxu0
        %v3480 = vadd.f32 %v3397, %v3479
        %v3481 = vpop.f32.mrf.mxu0
        %3482 = vdwg.mxu0
        %3483 = vmatprep.subr.mxu0 0.0
        %3484 = vmatpush1.msra.mxu0 0.0
        %3485 = vmatprep.subr.mxu0 0.0
        %3486 = vmatpush1.msra.mxu0 0.0
        %3487 = vmatprep.subr.mxu0 0.0
        %3488 = vmatpush1.msra.mxu0 0.0
        %3489 = vmatprep.subr.mxu0 0.0
        %3490 = vmatpush1.msra.mxu0 0.0
        %3491 = vmatprep.subr.mxu0 0.0
        %3492 = vmatpush1.msra.mxu0 0.0
        %3493 = vmatprep.subr.mxu0 0.0
        %3494 = vmatpush1.msra.mxu0 0.0
        %3495 = vmatprep.subr.mxu0 0.0
        %3496 = vmatpush1.msra.mxu0 0.0
        %3497 = vmatprep.subr.mxu0 0.0
        %3498 = vmatpush1.msra.mxu0 0.0
        %3499 = vmatprep.subr.mxu0 0.0
        %3500 = vmatpush1.msra.mxu0 0.0
        %3501 = vmatprep.subr.mxu0 0.0
        %3502 = vmatpush1.msra.mxu0 0.0
        %3503 = vmatprep.subr.mxu0 0.0
        %3504 = vmatpush1.msra.mxu0 0.0
        %3505 = vmatprep.subr.mxu0 0.0
        %3506 = vmatpush1.msra.mxu0 0.0
        %3507 = vmatprep.subr.mxu0 0.0
        %3508 = vmatpush1.msra.mxu0 0.0
        %3509 = vmatprep.subr.mxu0 0.0
        %3510 = vmatpush1.msra.mxu0 0.0
        %3511 = vmatprep.subr.mxu0 0.0
        %v3512 = vand.u32 %v3216, 4294901760
        %3513 = vmatpush1.msra.mxu0 %v3512
        %3514 = vmatprep.subr.mxu0 0.0
        %v3515 = vand.u32 %v3215, 4294901760
        %3516 = vmatpush1.msra.mxu0 %v3515
        %3517 = vmatprep.subr.mxu0 0.0
        %3518 = vmatpush2.msra.mxu0 0.0
        %3519 = vmatprep.subr.mxu0 0.0
        %3520 = vmatpush2.msra.mxu0 0.0
        %3521 = vmatprep.subr.mxu0 0.0
        %3522 = vmatpush2.msra.mxu0 0.0
        %3523 = vmatprep.subr.mxu0 0.0
        %3524 = vmatpush2.msra.mxu0 0.0
        %3525 = vmatprep.subr.mxu0 0.0
        %3526 = vmatpush2.msra.mxu0 0.0
        %3527 = vmatprep.subr.mxu0 0.0
        %3528 = vmatpush2.msra.mxu0 0.0
        %3529 = vmatprep.subr.mxu0 0.0
        %3530 = vmatpush2.msra.mxu0 0.0
        %3531 = vmatprep.subr.mxu0 0.0
        %3532 = vmatpush2.msra.mxu0 0.0
        %3533 = vmatprep.subr.mxu0 0.0
        %3534 = vmatpush2.msra.mxu0 0.0
        %3535 = vmatprep.subr.mxu0 0.0
        %3536 = vmatpush2.msra.mxu0 0.0
        %3537 = vmatprep.subr.mxu0 0.0
        %3538 = vmatpush2.msra.mxu0 0.0
        %3539 = vmatprep.subr.mxu0 0.0
        %3540 = vmatpush2.msra.mxu0 0.0
        %3541 = vmatprep.subr.mxu0 0.0
        %3542 = vmatpush2.msra.mxu0 0.0
        %3543 = vmatprep.subr.mxu0 0.0
        %3544 = vmatpush2.msra.mxu0 0.0
        %3545 = vmatprep.subr.mxu0 0.0
        %3546 = vmatpush2.msra.mxu0 0.0
        %3547 = vmatprep.subr.mxu0 0.0
        %3548 = vmatpush2.msra.mxu0 0.0
        %3549 = vmatprep.mubr.f32.mxu0 0.0
        %v3550 = vand.u32 %v3221, 4294901760
        %v3551 = vsub.f32 %v3221, %v3550
        %v3552 = vand.u32 %v3551, 4294901760
        %3553 = vmatmul.mubr.f32.gmra.mxu0 %v3552
        %v3554 = vpop.f32.mrf.mxu0
        %v3555 = vadd.f32 %v3473, %v3554
        %v3556 = vpop.f32.mrf.mxu0
        %3557 = vmatprep.mubr.f32.mxu0 0.0
        %v3558 = vand.u32 %v3224, 4294901760
        %v3559 = vsub.f32 %v3224, %v3558
        %v3560 = vand.u32 %v3559, 4294901760
        %3561 = vmatmul.mubr.f32.gmra.mxu0 %v3560
        %v3562 = vpop.f32.mrf.mxu0
        %v3563 = vadd.f32 %v3480, %v3562
        %v3564 = vpop.f32.mrf.mxu0
        %3565 = vdwg.mxu0
        %3566 = vmatprep.subr.mxu0 0.0
        %3567 = vmatpush1.msra.mxu0 0.0
        %3568 = vmatprep.subr.mxu0 0.0
        %3569 = vmatpush1.msra.mxu0 0.0
        %3570 = vmatprep.subr.mxu0 0.0
        %3571 = vmatpush1.msra.mxu0 0.0
        %3572 = vmatprep.subr.mxu0 0.0
        %3573 = vmatpush1.msra.mxu0 0.0
        %3574 = vmatprep.subr.mxu0 0.0
        %3575 = vmatpush1.msra.mxu0 0.0
        %3576 = vmatprep.subr.mxu0 0.0
        %3577 = vmatpush1.msra.mxu0 0.0
        %3578 = vmatprep.subr.mxu0 0.0
        %3579 = vmatpush1.msra.mxu0 0.0
        %3580 = vmatprep.subr.mxu0 0.0
        %3581 = vmatpush1.msra.mxu0 0.0
        %3582 = vmatprep.subr.mxu0 0.0
        %3583 = vmatpush1.msra.mxu0 0.0
        %3584 = vmatprep.subr.mxu0 0.0
        %3585 = vmatpush1.msra.mxu0 0.0
        %3586 = vmatprep.subr.mxu0 0.0
        %3587 = vmatpush1.msra.mxu0 0.0
        %3588 = vmatprep.subr.mxu0 0.0
        %3589 = vmatpush1.msra.mxu0 0.0
        %3590 = vmatprep.subr.mxu0 0.0
        %3591 = vmatpush1.msra.mxu0 0.0
        %3592 = vmatprep.subr.mxu0 0.0
        %3593 = vmatpush1.msra.mxu0 0.0
        %3594 = vmatprep.subr.mxu0 0.0
        %v3595 = vand.u32 %v3216, 4294901760
        %v3596 = vsub.f32 %v3216, %v3595
        %v3597 = vand.u32 %v3596, 4294901760
        %3598 = vmatpush1.msra.mxu0 %v3597
        %3599 = vmatprep.subr.mxu0 0.0
        %v3600 = vand.u32 %v3215, 4294901760
        %v3601 = vsub.f32 %v3215, %v3600
        %v3602 = vand.u32 %v3601, 4294901760
        %3603 = vmatpush1.msra.mxu0 %v3602
        %3604 = vmatprep.subr.mxu0 0.0
        %3605 = vmatpush2.msra.mxu0 0.0
        %3606 = vmatprep.subr.mxu0 0.0
        %3607 = vmatpush2.msra.mxu0 0.0
        %3608 = vmatprep.subr.mxu0 0.0
        %3609 = vmatpush2.msra.mxu0 0.0
        %3610 = vmatprep.subr.mxu0 0.0
        %3611 = vmatpush2.msra.mxu0 0.0
        %3612 = vmatprep.subr.mxu0 0.0
        %3613 = vmatpush2.msra.mxu0 0.0
        %3614 = vmatprep.subr.mxu0 0.0
        %3615 = vmatpush2.msra.mxu0 0.0
        %3616 = vmatprep.subr.mxu0 0.0
        %3617 = vmatpush2.msra.mxu0 0.0
        %3618 = vmatprep.subr.mxu0 0.0
        %3619 = vmatpush2.msra.mxu0 0.0
        %3620 = vmatprep.subr.mxu0 0.0
        %3621 = vmatpush2.msra.mxu0 0.0
        %3622 = vmatprep.subr.mxu0 0.0
        %3623 = vmatpush2.msra.mxu0 0.0
        %3624 = vmatprep.subr.mxu0 0.0
        %3625 = vmatpush2.msra.mxu0 0.0
        %3626 = vmatprep.subr.mxu0 0.0
        %3627 = vmatpush2.msra.mxu0 0.0
        %3628 = vmatprep.subr.mxu0 0.0
        %3629 = vmatpush2.msra.mxu0 0.0
        %3630 = vmatprep.subr.mxu0 0.0
        %3631 = vmatpush2.msra.mxu0 0.0
        %3632 = vmatprep.subr.mxu0 0.0
        %3633 = vmatpush2.msra.mxu0 0.0
        %3634 = vmatprep.subr.mxu0 0.0
        %3635 = vmatpush2.msra.mxu0 0.0
        %3636 = vmatprep.mubr.f32.mxu0 0.0
        %v3637 = vand.u32 %v3221, 4294901760
        %3638 = vmatmul.mubr.f32.gmra.mxu0 %v3637
        %v3639 = vpop.f32.mrf.mxu0
        %v3640 = vadd.f32 %v3555, %v3639
        %v3641 = vpop.f32.mrf.mxu0
        %3642 = vmatprep.mubr.f32.mxu0 0.0
        %v3643 = vand.u32 %v3224, 4294901760
        %3644 = vmatmul.mubr.f32.gmra.mxu0 %v3643
        %v3645 = vpop.f32.mrf.mxu0
        %v3646 = vadd.f32 %v3563, %v3645
        %v3647 = vpop.f32.mrf.mxu0
        %3648 = vdwg.mxu0
        %3649 = vmatprep.subr.mxu0 0.0
        %3650 = vmatpush1.msra.mxu0 0.0
        %3651 = vmatprep.subr.mxu0 0.0
        %3652 = vmatpush1.msra.mxu0 0.0
        %3653 = vmatprep.subr.mxu0 0.0
        %3654 = vmatpush1.msra.mxu0 0.0
        %3655 = vmatprep.subr.mxu0 0.0
        %3656 = vmatpush1.msra.mxu0 0.0
        %3657 = vmatprep.subr.mxu0 0.0
        %3658 = vmatpush1.msra.mxu0 0.0
        %3659 = vmatprep.subr.mxu0 0.0
        %3660 = vmatpush1.msra.mxu0 0.0
        %3661 = vmatprep.subr.mxu0 0.0
        %3662 = vmatpush1.msra.mxu0 0.0
        %3663 = vmatprep.subr.mxu0 0.0
        %3664 = vmatpush1.msra.mxu0 0.0
        %3665 = vmatprep.subr.mxu0 0.0
        %3666 = vmatpush1.msra.mxu0 0.0
        %3667 = vmatprep.subr.mxu0 0.0
        %3668 = vmatpush1.msra.mxu0 0.0
        %3669 = vmatprep.subr.mxu0 0.0
        %3670 = vmatpush1.msra.mxu0 0.0
        %3671 = vmatprep.subr.mxu0 0.0
        %3672 = vmatpush1.msra.mxu0 0.0
        %3673 = vmatprep.subr.mxu0 0.0
        %3674 = vmatpush1.msra.mxu0 0.0
        %3675 = vmatprep.subr.mxu0 0.0
        %3676 = vmatpush1.msra.mxu0 0.0
        %3677 = vmatprep.subr.mxu0 0.0
        %v3678 = vand.u32 %v3216, 4294901760
        %3679 = vmatpush1.msra.mxu0 %v3678
        %3680 = vmatprep.subr.mxu0 0.0
        %v3681 = vand.u32 %v3215, 4294901760
        %3682 = vmatpush1.msra.mxu0 %v3681
        %3683 = vmatprep.subr.mxu0 0.0
        %3684 = vmatpush2.msra.mxu0 0.0
        %3685 = vmatprep.subr.mxu0 0.0
        %3686 = vmatpush2.msra.mxu0 0.0
        %3687 = vmatprep.subr.mxu0 0.0
        %3688 = vmatpush2.msra.mxu0 0.0
        %3689 = vmatprep.subr.mxu0 0.0
        %3690 = vmatpush2.msra.mxu0 0.0
        %3691 = vmatprep.subr.mxu0 0.0
        %3692 = vmatpush2.msra.mxu0 0.0
        %3693 = vmatprep.subr.mxu0 0.0
        %3694 = vmatpush2.msra.mxu0 0.0
        %3695 = vmatprep.subr.mxu0 0.0
        %3696 = vmatpush2.msra.mxu0 0.0
        %3697 = vmatprep.subr.mxu0 0.0
        %3698 = vmatpush2.msra.mxu0 0.0
        %3699 = vmatprep.subr.mxu0 0.0
        %3700 = vmatpush2.msra.mxu0 0.0
        %3701 = vmatprep.subr.mxu0 0.0
        %3702 = vmatpush2.msra.mxu0 0.0
        %3703 = vmatprep.subr.mxu0 0.0
        %3704 = vmatpush2.msra.mxu0 0.0
        %3705 = vmatprep.subr.mxu0 0.0
        %3706 = vmatpush2.msra.mxu0 0.0
        %3707 = vmatprep.subr.mxu0 0.0
        %3708 = vmatpush2.msra.mxu0 0.0
        %3709 = vmatprep.subr.mxu0 0.0
        %3710 = vmatpush2.msra.mxu0 0.0
        %3711 = vmatprep.subr.mxu0 0.0
        %3712 = vmatpush2.msra.mxu0 0.0
        %3713 = vmatprep.subr.mxu0 0.0
        %3714 = vmatpush2.msra.mxu0 0.0
        %3715 = vmatprep.mubr.f32.mxu0 0.0
        %v3716 = vand.u32 %v3221, 4294901760
        %3717 = vmatmul.mubr.f32.gmra.mxu0 %v3716
        %v3718 = vpop.f32.mrf.mxu0
        %v3719 = vadd.f32 %v3640, %v3718
        %v3720 = vpop.f32.mrf.mxu0
        %3721 = vmatprep.mubr.f32.mxu0 0.0
        %v3722 = vand.u32 %v3224, 4294901760
        %3723 = vmatmul.mubr.f32.gmra.mxu0 %v3722
        %v3724 = vpop.f32.mrf.mxu0
        %v3725 = vadd.f32 %v3646, %v3724
        %v3726 = vpop.f32.mrf.mxu0
        %3727 = vdwg.mxu0
        %v3728 = vadd.f32 %v3719, %v2582
        %v3729 = vadd.f32 %v2583, %v3725
        %s3730 = scalar_lea.vmem [#allocation2], 24
        %v3731 = vld [vmem:[%s3730] sm:$0xff]
        %3733 = vrot.lane.b32.xlu0 %v3731, 2
        %v3734 = vpop.permute.xlu0 %3733
        %3737 = vrot.lane.b32.xlu0 %v3728, 2
        %v3738 = vpop.permute.xlu0 %3737
        %v3740 = vsel %vm1447, %v3734, %v3738
        %3741 = vst [vmem:[%s3730] sm:$0xff] %v3728
        %s3742 = scalar_lea.vmem %s2, 96
        %v3743 = vld [vmem:[%s3742] sm:$0xff]
        %v3744 = vld [vmem:[%s3742 + $0x8] sm:$0xff]
        %v3745 = vld [vmem:[%s3742 + $0x10] sm:$0xff]
        %v3746 = vld [vmem:[%s3742 + $0x18] sm:$0xff]
        %v3748 = vsel %vm309, %v3743, 0
        %v3751 = vsel %vm309, %v3744, 0
        %v3754 = vsel %vm309, %v3745, 0
        %v3757 = vsel %vm309, %v3746, 0
        %3759 = vmatprep.subr.mxu0 0.0
        %3760 = vmatpush1.msra.mxu0 0.0
        %3761 = vmatprep.subr.mxu0 0.0
        %3762 = vmatpush1.msra.mxu0 0.0
        %3763 = vmatprep.subr.mxu0 0.0
        %3764 = vmatpush1.msra.mxu0 0.0
        %3765 = vmatprep.subr.mxu0 0.0
        %3766 = vmatpush1.msra.mxu0 0.0
        %3767 = vmatprep.subr.mxu0 0.0
        %3768 = vmatpush1.msra.mxu0 0.0
        %3769 = vmatprep.subr.mxu0 0.0
        %3770 = vmatpush1.msra.mxu0 0.0
        %3771 = vmatprep.subr.mxu0 0.0
        %3772 = vmatpush1.msra.mxu0 0.0
        %3773 = vmatprep.subr.mxu0 0.0
        %3774 = vmatpush1.msra.mxu0 0.0
        %3775 = vmatprep.subr.mxu0 0.0
        %3776 = vmatpush1.msra.mxu0 0.0
        %3777 = vmatprep.subr.mxu0 0.0
        %3778 = vmatpush1.msra.mxu0 0.0
        %3779 = vmatprep.subr.mxu0 0.0
        %3780 = vmatpush1.msra.mxu0 0.0
        %3781 = vmatprep.subr.mxu0 0.0
        %3782 = vmatpush1.msra.mxu0 0.0
        %3783 = vmatprep.subr.mxu0 0.0
        %3784 = vmatpush1.msra.mxu0 0.0
        %3785 = vmatprep.subr.mxu0 0.0
        %3786 = vmatpush1.msra.mxu0 0.0
        %3787 = vmatprep.subr.mxu0 0.0
        %v3788 = vand.u32 %v3740, 4294901760
        %3789 = vmatpush1.msra.mxu0 %v3788
        %3790 = vmatprep.subr.mxu0 0.0
        %v3791 = vand.u32 %v3728, 4294901760
        %3792 = vmatpush1.msra.mxu0 %v3791
        %3793 = vmatprep.subr.mxu0 0.0
        %3794 = vmatpush2.msra.mxu0 0.0
        %3795 = vmatprep.subr.mxu0 0.0
        %3796 = vmatpush2.msra.mxu0 0.0
        %3797 = vmatprep.subr.mxu0 0.0
        %3798 = vmatpush2.msra.mxu0 0.0
        %3799 = vmatprep.subr.mxu0 0.0
        %3800 = vmatpush2.msra.mxu0 0.0
        %3801 = vmatprep.subr.mxu0 0.0
        %3802 = vmatpush2.msra.mxu0 0.0
        %3803 = vmatprep.subr.mxu0 0.0
        %3804 = vmatpush2.msra.mxu0 0.0
        %3805 = vmatprep.subr.mxu0 0.0
        %3806 = vmatpush2.msra.mxu0 0.0
        %3807 = vmatprep.subr.mxu0 0.0
        %3808 = vmatpush2.msra.mxu0 0.0
        %3809 = vmatprep.subr.mxu0 0.0
        %3810 = vmatpush2.msra.mxu0 0.0
        %3811 = vmatprep.subr.mxu0 0.0
        %3812 = vmatpush2.msra.mxu0 0.0
        %3813 = vmatprep.subr.mxu0 0.0
        %3814 = vmatpush2.msra.mxu0 0.0
        %3815 = vmatprep.subr.mxu0 0.0
        %3816 = vmatpush2.msra.mxu0 0.0
        %3817 = vmatprep.subr.mxu0 0.0
        %3818 = vmatpush2.msra.mxu0 0.0
        %3819 = vmatprep.subr.mxu0 0.0
        %3820 = vmatpush2.msra.mxu0 0.0
        %3821 = vmatprep.subr.mxu0 0.0
        %3822 = vmatpush2.msra.mxu0 0.0
        %3823 = vmatprep.subr.mxu0 0.0
        %3824 = vmatpush2.msra.mxu0 0.0
        %3825 = vmatprep.mubr.f32.mxu0 0.0
        %v3826 = vand.u32 %v3748, 4294901760
        %v3827 = vsub.f32 %v3748, %v3826
        %v3828 = vand.u32 %v3827, 4294901760
        %v3829 = vsub.f32 %v3827, %v3828
        %v3830 = vand.u32 %v3829, 4294901760
        %3831 = vmatmul.mubr.f32.gmra.mxu0 %v3830
        %v3832 = vpop.f32.mrf.mxu0
        %v3833 = vadd.f32 0.0, %v3832
        %v3834 = vpop.f32.mrf.mxu0
        %3835 = vmatprep.mubr.f32.mxu0 0.0
        %v3836 = vand.u32 %v3751, 4294901760
        %v3837 = vsub.f32 %v3751, %v3836
        %v3838 = vand.u32 %v3837, 4294901760
        %v3839 = vsub.f32 %v3837, %v3838
        %v3840 = vand.u32 %v3839, 4294901760
        %3841 = vmatmul.mubr.f32.gmra.mxu0 %v3840
        %v3842 = vpop.f32.mrf.mxu0
        %v3843 = vadd.f32 0.0, %v3842
        %v3844 = vpop.f32.mrf.mxu0
        %3845 = vmatprep.mubr.f32.mxu0 0.0
        %v3846 = vand.u32 %v3754, 4294901760
        %v3847 = vsub.f32 %v3754, %v3846
        %v3848 = vand.u32 %v3847, 4294901760
        %v3849 = vsub.f32 %v3847, %v3848
        %v3850 = vand.u32 %v3849, 4294901760
        %3851 = vmatmul.mubr.f32.gmra.mxu0 %v3850
        %v3852 = vpop.f32.mrf.mxu0
        %v3853 = vadd.f32 0.0, %v3852
        %v3854 = vpop.f32.mrf.mxu0
        %3855 = vmatprep.mubr.f32.mxu0 0.0
        %v3856 = vand.u32 %v3757, 4294901760
        %v3857 = vsub.f32 %v3757, %v3856
        %v3858 = vand.u32 %v3857, 4294901760
        %v3859 = vsub.f32 %v3857, %v3858
        %v3860 = vand.u32 %v3859, 4294901760
        %3861 = vmatmul.mubr.f32.gmra.mxu0 %v3860
        %v3862 = vpop.f32.mrf.mxu0
        %v3863 = vadd.f32 0.0, %v3862
        %v3864 = vpop.f32.mrf.mxu0
        %3865 = vdwg.mxu0
        %3866 = vmatprep.subr.mxu0 0.0
        %3867 = vmatpush1.msra.mxu0 0.0
        %3868 = vmatprep.subr.mxu0 0.0
        %3869 = vmatpush1.msra.mxu0 0.0
        %3870 = vmatprep.subr.mxu0 0.0
        %3871 = vmatpush1.msra.mxu0 0.0
        %3872 = vmatprep.subr.mxu0 0.0
        %3873 = vmatpush1.msra.mxu0 0.0
        %3874 = vmatprep.subr.mxu0 0.0
        %3875 = vmatpush1.msra.mxu0 0.0
        %3876 = vmatprep.subr.mxu0 0.0
        %3877 = vmatpush1.msra.mxu0 0.0
        %3878 = vmatprep.subr.mxu0 0.0
        %3879 = vmatpush1.msra.mxu0 0.0
        %3880 = vmatprep.subr.mxu0 0.0
        %3881 = vmatpush1.msra.mxu0 0.0
        %3882 = vmatprep.subr.mxu0 0.0
        %3883 = vmatpush1.msra.mxu0 0.0
        %3884 = vmatprep.subr.mxu0 0.0
        %3885 = vmatpush1.msra.mxu0 0.0
        %3886 = vmatprep.subr.mxu0 0.0
        %3887 = vmatpush1.msra.mxu0 0.0
        %3888 = vmatprep.subr.mxu0 0.0
        %3889 = vmatpush1.msra.mxu0 0.0
        %3890 = vmatprep.subr.mxu0 0.0
        %3891 = vmatpush1.msra.mxu0 0.0
        %3892 = vmatprep.subr.mxu0 0.0
        %3893 = vmatpush1.msra.mxu0 0.0
        %3894 = vmatprep.subr.mxu0 0.0
        %v3895 = vand.u32 %v3740, 4294901760
        %v3896 = vsub.f32 %v3740, %v3895
        %v3897 = vand.u32 %v3896, 4294901760
        %v3898 = vsub.f32 %v3896, %v3897
        %v3899 = vand.u32 %v3898, 4294901760
        %3900 = vmatpush1.msra.mxu0 %v3899
        %3901 = vmatprep.subr.mxu0 0.0
        %v3902 = vand.u32 %v3728, 4294901760
        %v3903 = vsub.f32 %v3728, %v3902
        %v3904 = vand.u32 %v3903, 4294901760
        %v3905 = vsub.f32 %v3903, %v3904
        %v3906 = vand.u32 %v3905, 4294901760
        %3907 = vmatpush1.msra.mxu0 %v3906
        %3908 = vmatprep.subr.mxu0 0.0
        %3909 = vmatpush2.msra.mxu0 0.0
        %3910 = vmatprep.subr.mxu0 0.0
        %3911 = vmatpush2.msra.mxu0 0.0
        %3912 = vmatprep.subr.mxu0 0.0
        %3913 = vmatpush2.msra.mxu0 0.0
        %3914 = vmatprep.subr.mxu0 0.0
        %3915 = vmatpush2.msra.mxu0 0.0
        %3916 = vmatprep.subr.mxu0 0.0
        %3917 = vmatpush2.msra.mxu0 0.0
        %3918 = vmatprep.subr.mxu0 0.0
        %3919 = vmatpush2.msra.mxu0 0.0
        %3920 = vmatprep.subr.mxu0 0.0
        %3921 = vmatpush2.msra.mxu0 0.0
        %3922 = vmatprep.subr.mxu0 0.0
        %3923 = vmatpush2.msra.mxu0 0.0
        %3924 = vmatprep.subr.mxu0 0.0
        %3925 = vmatpush2.msra.mxu0 0.0
        %3926 = vmatprep.subr.mxu0 0.0
        %3927 = vmatpush2.msra.mxu0 0.0
        %3928 = vmatprep.subr.mxu0 0.0
        %3929 = vmatpush2.msra.mxu0 0.0
        %3930 = vmatprep.subr.mxu0 0.0
        %3931 = vmatpush2.msra.mxu0 0.0
        %3932 = vmatprep.subr.mxu0 0.0
        %3933 = vmatpush2.msra.mxu0 0.0
        %3934 = vmatprep.subr.mxu0 0.0
        %3935 = vmatpush2.msra.mxu0 0.0
        %3936 = vmatprep.subr.mxu0 0.0
        %3937 = vmatpush2.msra.mxu0 0.0
        %3938 = vmatprep.subr.mxu0 0.0
        %3939 = vmatpush2.msra.mxu0 0.0
        %3940 = vmatprep.mubr.f32.mxu0 0.0
        %v3941 = vand.u32 %v3748, 4294901760
        %3942 = vmatmul.mubr.f32.gmra.mxu0 %v3941
        %v3943 = vpop.f32.mrf.mxu0
        %v3944 = vadd.f32 %v3833, %v3943
        %v3945 = vpop.f32.mrf.mxu0
        %3946 = vmatprep.mubr.f32.mxu0 0.0
        %v3947 = vand.u32 %v3751, 4294901760
        %3948 = vmatmul.mubr.f32.gmra.mxu0 %v3947
        %v3949 = vpop.f32.mrf.mxu0
        %v3950 = vadd.f32 %v3843, %v3949
        %v3951 = vpop.f32.mrf.mxu0
        %3952 = vmatprep.mubr.f32.mxu0 0.0
        %v3953 = vand.u32 %v3754, 4294901760
        %3954 = vmatmul.mubr.f32.gmra.mxu0 %v3953
        %v3955 = vpop.f32.mrf.mxu0
        %v3956 = vadd.f32 %v3853, %v3955
        %v3957 = vpop.f32.mrf.mxu0
        %3958 = vmatprep.mubr.f32.mxu0 0.0
        %v3959 = vand.u32 %v3757, 4294901760
        %3960 = vmatmul.mubr.f32.gmra.mxu0 %v3959
        %v3961 = vpop.f32.mrf.mxu0
        %v3962 = vadd.f32 %v3863, %v3961
        %v3963 = vpop.f32.mrf.mxu0
        %3964 = vdwg.mxu0
        %3965 = vmatprep.subr.mxu0 0.0
        %3966 = vmatpush1.msra.mxu0 0.0
        %3967 = vmatprep.subr.mxu0 0.0
        %3968 = vmatpush1.msra.mxu0 0.0
        %3969 = vmatprep.subr.mxu0 0.0
        %3970 = vmatpush1.msra.mxu0 0.0
        %3971 = vmatprep.subr.mxu0 0.0
        %3972 = vmatpush1.msra.mxu0 0.0
        %3973 = vmatprep.subr.mxu0 0.0
        %3974 = vmatpush1.msra.mxu0 0.0
        %3975 = vmatprep.subr.mxu0 0.0
        %3976 = vmatpush1.msra.mxu0 0.0
        %3977 = vmatprep.subr.mxu0 0.0
        %3978 = vmatpush1.msra.mxu0 0.0
        %3979 = vmatprep.subr.mxu0 0.0
        %3980 = vmatpush1.msra.mxu0 0.0
        %3981 = vmatprep.subr.mxu0 0.0
        %3982 = vmatpush1.msra.mxu0 0.0
        %3983 = vmatprep.subr.mxu0 0.0
        %3984 = vmatpush1.msra.mxu0 0.0
        %3985 = vmatprep.subr.mxu0 0.0
        %3986 = vmatpush1.msra.mxu0 0.0
        %3987 = vmatprep.subr.mxu0 0.0
        %3988 = vmatpush1.msra.mxu0 0.0
        %3989 = vmatprep.subr.mxu0 0.0
        %3990 = vmatpush1.msra.mxu0 0.0
        %3991 = vmatprep.subr.mxu0 0.0
        %3992 = vmatpush1.msra.mxu0 0.0
        %3993 = vmatprep.subr.mxu0 0.0
        %v3994 = vand.u32 %v3740, 4294901760
        %v3995 = vsub.f32 %v3740, %v3994
        %3996 = vmatpush1.msra.mxu0 %v3995
        %3997 = vmatprep.subr.mxu0 0.0
        %v3998 = vand.u32 %v3728, 4294901760
        %v3999 = vsub.f32 %v3728, %v3998
        %4000 = vmatpush1.msra.mxu0 %v3999
        %4001 = vmatprep.subr.mxu0 0.0
        %4002 = vmatpush2.msra.mxu0 0.0
        %4003 = vmatprep.subr.mxu0 0.0
        %4004 = vmatpush2.msra.mxu0 0.0
        %4005 = vmatprep.subr.mxu0 0.0
        %4006 = vmatpush2.msra.mxu0 0.0
        %4007 = vmatprep.subr.mxu0 0.0
        %4008 = vmatpush2.msra.mxu0 0.0
        %4009 = vmatprep.subr.mxu0 0.0
        %4010 = vmatpush2.msra.mxu0 0.0
        %4011 = vmatprep.subr.mxu0 0.0
        %4012 = vmatpush2.msra.mxu0 0.0
        %4013 = vmatprep.subr.mxu0 0.0
        %4014 = vmatpush2.msra.mxu0 0.0
        %4015 = vmatprep.subr.mxu0 0.0
        %4016 = vmatpush2.msra.mxu0 0.0
        %4017 = vmatprep.subr.mxu0 0.0
        %4018 = vmatpush2.msra.mxu0 0.0
        %4019 = vmatprep.subr.mxu0 0.0
        %4020 = vmatpush2.msra.mxu0 0.0
        %4021 = vmatprep.subr.mxu0 0.0
        %4022 = vmatpush2.msra.mxu0 0.0
        %4023 = vmatprep.subr.mxu0 0.0
        %4024 = vmatpush2.msra.mxu0 0.0
        %4025 = vmatprep.subr.mxu0 0.0
        %4026 = vmatpush2.msra.mxu0 0.0
        %4027 = vmatprep.subr.mxu0 0.0
        %4028 = vmatpush2.msra.mxu0 0.0
        %4029 = vmatprep.subr.mxu0 0.0
        %4030 = vmatpush2.msra.mxu0 0.0
        %4031 = vmatprep.subr.mxu0 0.0
        %4032 = vmatpush2.msra.mxu0 0.0
        %4033 = vmatprep.mubr.f32.mxu0 0.0
        %v4034 = vand.u32 %v3748, 4294901760
        %v4035 = vsub.f32 %v3748, %v4034
        %4036 = vmatmul.mubr.f32.gmra.mxu0 %v4035
        %v4037 = vpop.f32.mrf.mxu0
        %v4038 = vadd.f32 %v3944, %v4037
        %v4039 = vpop.f32.mrf.mxu0
        %4040 = vmatprep.mubr.f32.mxu0 0.0
        %v4041 = vand.u32 %v3751, 4294901760
        %v4042 = vsub.f32 %v3751, %v4041
        %4043 = vmatmul.mubr.f32.gmra.mxu0 %v4042
        %v4044 = vpop.f32.mrf.mxu0
        %v4045 = vadd.f32 %v3950, %v4044
        %v4046 = vpop.f32.mrf.mxu0
        %4047 = vmatprep.mubr.f32.mxu0 0.0
        %v4048 = vand.u32 %v3754, 4294901760
        %v4049 = vsub.f32 %v3754, %v4048
        %4050 = vmatmul.mubr.f32.gmra.mxu0 %v4049
        %v4051 = vpop.f32.mrf.mxu0
        %v4052 = vadd.f32 %v3956, %v4051
        %v4053 = vpop.f32.mrf.mxu0
        %4054 = vmatprep.mubr.f32.mxu0 0.0
        %v4055 = vand.u32 %v3757, 4294901760
        %v4056 = vsub.f32 %v3757, %v4055
        %4057 = vmatmul.mubr.f32.gmra.mxu0 %v4056
        %v4058 = vpop.f32.mrf.mxu0
        %v4059 = vadd.f32 %v3962, %v4058
        %v4060 = vpop.f32.mrf.mxu0
        %4061 = vdwg.mxu0
        %4062 = vmatprep.subr.mxu0 0.0
        %4063 = vmatpush1.msra.mxu0 0.0
        %4064 = vmatprep.subr.mxu0 0.0
        %4065 = vmatpush1.msra.mxu0 0.0
        %4066 = vmatprep.subr.mxu0 0.0
        %4067 = vmatpush1.msra.mxu0 0.0
        %4068 = vmatprep.subr.mxu0 0.0
        %4069 = vmatpush1.msra.mxu0 0.0
        %4070 = vmatprep.subr.mxu0 0.0
        %4071 = vmatpush1.msra.mxu0 0.0
        %4072 = vmatprep.subr.mxu0 0.0
        %4073 = vmatpush1.msra.mxu0 0.0
        %4074 = vmatprep.subr.mxu0 0.0
        %4075 = vmatpush1.msra.mxu0 0.0
        %4076 = vmatprep.subr.mxu0 0.0
        %4077 = vmatpush1.msra.mxu0 0.0
        %4078 = vmatprep.subr.mxu0 0.0
        %4079 = vmatpush1.msra.mxu0 0.0
        %4080 = vmatprep.subr.mxu0 0.0
        %4081 = vmatpush1.msra.mxu0 0.0
        %4082 = vmatprep.subr.mxu0 0.0
        %4083 = vmatpush1.msra.mxu0 0.0
        %4084 = vmatprep.subr.mxu0 0.0
        %4085 = vmatpush1.msra.mxu0 0.0
        %4086 = vmatprep.subr.mxu0 0.0
        %4087 = vmatpush1.msra.mxu0 0.0
        %4088 = vmatprep.subr.mxu0 0.0
        %4089 = vmatpush1.msra.mxu0 0.0
        %4090 = vmatprep.subr.mxu0 0.0
        %v4091 = vand.u32 %v3740, 4294901760
        %4092 = vmatpush1.msra.mxu0 %v4091
        %4093 = vmatprep.subr.mxu0 0.0
        %v4094 = vand.u32 %v3728, 4294901760
        %4095 = vmatpush1.msra.mxu0 %v4094
        %4096 = vmatprep.subr.mxu0 0.0
        %4097 = vmatpush2.msra.mxu0 0.0
        %4098 = vmatprep.subr.mxu0 0.0
        %4099 = vmatpush2.msra.mxu0 0.0
        %4100 = vmatprep.subr.mxu0 0.0
        %4101 = vmatpush2.msra.mxu0 0.0
        %4102 = vmatprep.subr.mxu0 0.0
        %4103 = vmatpush2.msra.mxu0 0.0
        %4104 = vmatprep.subr.mxu0 0.0
        %4105 = vmatpush2.msra.mxu0 0.0
        %4106 = vmatprep.subr.mxu0 0.0
        %4107 = vmatpush2.msra.mxu0 0.0
        %4108 = vmatprep.subr.mxu0 0.0
        %4109 = vmatpush2.msra.mxu0 0.0
        %4110 = vmatprep.subr.mxu0 0.0
        %4111 = vmatpush2.msra.mxu0 0.0
        %4112 = vmatprep.subr.mxu0 0.0
        %4113 = vmatpush2.msra.mxu0 0.0
        %4114 = vmatprep.subr.mxu0 0.0
        %4115 = vmatpush2.msra.mxu0 0.0
        %4116 = vmatprep.subr.mxu0 0.0
        %4117 = vmatpush2.msra.mxu0 0.0
        %4118 = vmatprep.subr.mxu0 0.0
        %4119 = vmatpush2.msra.mxu0 0.0
        %4120 = vmatprep.subr.mxu0 0.0
        %4121 = vmatpush2.msra.mxu0 0.0
        %4122 = vmatprep.subr.mxu0 0.0
        %4123 = vmatpush2.msra.mxu0 0.0
        %4124 = vmatprep.subr.mxu0 0.0
        %4125 = vmatpush2.msra.mxu0 0.0
        %4126 = vmatprep.subr.mxu0 0.0
        %4127 = vmatpush2.msra.mxu0 0.0
        %4128 = vmatprep.mubr.f32.mxu0 0.0
        %v4129 = vand.u32 %v3748, 4294901760
        %v4130 = vsub.f32 %v3748, %v4129
        %v4131 = vand.u32 %v4130, 4294901760
        %4132 = vmatmul.mubr.f32.gmra.mxu0 %v4131
        %v4133 = vpop.f32.mrf.mxu0
        %v4134 = vadd.f32 %v4038, %v4133
        %v4135 = vpop.f32.mrf.mxu0
        %4136 = vmatprep.mubr.f32.mxu0 0.0
        %v4137 = vand.u32 %v3751, 4294901760
        %v4138 = vsub.f32 %v3751, %v4137
        %v4139 = vand.u32 %v4138, 4294901760
        %4140 = vmatmul.mubr.f32.gmra.mxu0 %v4139
        %v4141 = vpop.f32.mrf.mxu0
        %v4142 = vadd.f32 %v4045, %v4141
        %v4143 = vpop.f32.mrf.mxu0
        %4144 = vmatprep.mubr.f32.mxu0 0.0
        %v4145 = vand.u32 %v3754, 4294901760
        %v4146 = vsub.f32 %v3754, %v4145
        %v4147 = vand.u32 %v4146, 4294901760
        %4148 = vmatmul.mubr.f32.gmra.mxu0 %v4147
        %v4149 = vpop.f32.mrf.mxu0
        %v4150 = vadd.f32 %v4052, %v4149
        %v4151 = vpop.f32.mrf.mxu0
        %4152 = vmatprep.mubr.f32.mxu0 0.0
        %v4153 = vand.u32 %v3757, 4294901760
        %v4154 = vsub.f32 %v3757, %v4153
        %v4155 = vand.u32 %v4154, 4294901760
        %4156 = vmatmul.mubr.f32.gmra.mxu0 %v4155
        %v4157 = vpop.f32.mrf.mxu0
        %v4158 = vadd.f32 %v4059, %v4157
        %v4159 = vpop.f32.mrf.mxu0
        %4160 = vdwg.mxu0
        %4161 = vmatprep.subr.mxu0 0.0
        %4162 = vmatpush1.msra.mxu0 0.0
        %4163 = vmatprep.subr.mxu0 0.0
        %4164 = vmatpush1.msra.mxu0 0.0
        %4165 = vmatprep.subr.mxu0 0.0
        %4166 = vmatpush1.msra.mxu0 0.0
        %4167 = vmatprep.subr.mxu0 0.0
        %4168 = vmatpush1.msra.mxu0 0.0
        %4169 = vmatprep.subr.mxu0 0.0
        %4170 = vmatpush1.msra.mxu0 0.0
        %4171 = vmatprep.subr.mxu0 0.0
        %4172 = vmatpush1.msra.mxu0 0.0
        %4173 = vmatprep.subr.mxu0 0.0
        %4174 = vmatpush1.msra.mxu0 0.0
        %4175 = vmatprep.subr.mxu0 0.0
        %4176 = vmatpush1.msra.mxu0 0.0
        %4177 = vmatprep.subr.mxu0 0.0
        %4178 = vmatpush1.msra.mxu0 0.0
        %4179 = vmatprep.subr.mxu0 0.0
        %4180 = vmatpush1.msra.mxu0 0.0
        %4181 = vmatprep.subr.mxu0 0.0
        %4182 = vmatpush1.msra.mxu0 0.0
        %4183 = vmatprep.subr.mxu0 0.0
        %4184 = vmatpush1.msra.mxu0 0.0
        %4185 = vmatprep.subr.mxu0 0.0
        %4186 = vmatpush1.msra.mxu0 0.0
        %4187 = vmatprep.subr.mxu0 0.0
        %4188 = vmatpush1.msra.mxu0 0.0
        %4189 = vmatprep.subr.mxu0 0.0
        %v4190 = vand.u32 %v3740, 4294901760
        %v4191 = vsub.f32 %v3740, %v4190
        %v4192 = vand.u32 %v4191, 4294901760
        %4193 = vmatpush1.msra.mxu0 %v4192
        %4194 = vmatprep.subr.mxu0 0.0
        %v4195 = vand.u32 %v3728, 4294901760
        %v4196 = vsub.f32 %v3728, %v4195
        %v4197 = vand.u32 %v4196, 4294901760
        %4198 = vmatpush1.msra.mxu0 %v4197
        %4199 = vmatprep.subr.mxu0 0.0
        %4200 = vmatpush2.msra.mxu0 0.0
        %4201 = vmatprep.subr.mxu0 0.0
        %4202 = vmatpush2.msra.mxu0 0.0
        %4203 = vmatprep.subr.mxu0 0.0
        %4204 = vmatpush2.msra.mxu0 0.0
        %4205 = vmatprep.subr.mxu0 0.0
        %4206 = vmatpush2.msra.mxu0 0.0
        %4207 = vmatprep.subr.mxu0 0.0
        %4208 = vmatpush2.msra.mxu0 0.0
        %4209 = vmatprep.subr.mxu0 0.0
        %4210 = vmatpush2.msra.mxu0 0.0
        %4211 = vmatprep.subr.mxu0 0.0
        %4212 = vmatpush2.msra.mxu0 0.0
        %4213 = vmatprep.subr.mxu0 0.0
        %4214 = vmatpush2.msra.mxu0 0.0
        %4215 = vmatprep.subr.mxu0 0.0
        %4216 = vmatpush2.msra.mxu0 0.0
        %4217 = vmatprep.subr.mxu0 0.0
        %4218 = vmatpush2.msra.mxu0 0.0
        %4219 = vmatprep.subr.mxu0 0.0
        %4220 = vmatpush2.msra.mxu0 0.0
        %4221 = vmatprep.subr.mxu0 0.0
        %4222 = vmatpush2.msra.mxu0 0.0
        %4223 = vmatprep.subr.mxu0 0.0
        %4224 = vmatpush2.msra.mxu0 0.0
        %4225 = vmatprep.subr.mxu0 0.0
        %4226 = vmatpush2.msra.mxu0 0.0
        %4227 = vmatprep.subr.mxu0 0.0
        %4228 = vmatpush2.msra.mxu0 0.0
        %4229 = vmatprep.subr.mxu0 0.0
        %4230 = vmatpush2.msra.mxu0 0.0
        %4231 = vmatprep.mubr.f32.mxu0 0.0
        %v4232 = vand.u32 %v3748, 4294901760
        %4233 = vmatmul.mubr.f32.gmra.mxu0 %v4232
        %v4234 = vpop.f32.mrf.mxu0
        %v4235 = vadd.f32 %v4134, %v4234
        %v4236 = vpop.f32.mrf.mxu0
        %4237 = vmatprep.mubr.f32.mxu0 0.0
        %v4238 = vand.u32 %v3751, 4294901760
        %4239 = vmatmul.mubr.f32.gmra.mxu0 %v4238
        %v4240 = vpop.f32.mrf.mxu0
        %v4241 = vadd.f32 %v4142, %v4240
        %v4242 = vpop.f32.mrf.mxu0
        %4243 = vmatprep.mubr.f32.mxu0 0.0
        %v4244 = vand.u32 %v3754, 4294901760
        %4245 = vmatmul.mubr.f32.gmra.mxu0 %v4244
        %v4246 = vpop.f32.mrf.mxu0
        %v4247 = vadd.f32 %v4150, %v4246
        %v4248 = vpop.f32.mrf.mxu0
        %4249 = vmatprep.mubr.f32.mxu0 0.0
        %v4250 = vand.u32 %v3757, 4294901760
        %4251 = vmatmul.mubr.f32.gmra.mxu0 %v4250
        %v4252 = vpop.f32.mrf.mxu0
        %v4253 = vadd.f32 %v4158, %v4252
        %v4254 = vpop.f32.mrf.mxu0
        %4255 = vdwg.mxu0
        %4256 = vmatprep.subr.mxu0 0.0
        %4257 = vmatpush1.msra.mxu0 0.0
        %4258 = vmatprep.subr.mxu0 0.0
        %4259 = vmatpush1.msra.mxu0 0.0
        %4260 = vmatprep.subr.mxu0 0.0
        %4261 = vmatpush1.msra.mxu0 0.0
        %4262 = vmatprep.subr.mxu0 0.0
        %4263 = vmatpush1.msra.mxu0 0.0
        %4264 = vmatprep.subr.mxu0 0.0
        %4265 = vmatpush1.msra.mxu0 0.0
        %4266 = vmatprep.subr.mxu0 0.0
        %4267 = vmatpush1.msra.mxu0 0.0
        %4268 = vmatprep.subr.mxu0 0.0
        %4269 = vmatpush1.msra.mxu0 0.0
        %4270 = vmatprep.subr.mxu0 0.0
        %4271 = vmatpush1.msra.mxu0 0.0
        %4272 = vmatprep.subr.mxu0 0.0
        %4273 = vmatpush1.msra.mxu0 0.0
        %4274 = vmatprep.subr.mxu0 0.0
        %4275 = vmatpush1.msra.mxu0 0.0
        %4276 = vmatprep.subr.mxu0 0.0
        %4277 = vmatpush1.msra.mxu0 0.0
        %4278 = vmatprep.subr.mxu0 0.0
        %4279 = vmatpush1.msra.mxu0 0.0
        %4280 = vmatprep.subr.mxu0 0.0
        %4281 = vmatpush1.msra.mxu0 0.0
        %4282 = vmatprep.subr.mxu0 0.0
        %4283 = vmatpush1.msra.mxu0 0.0
        %4284 = vmatprep.subr.mxu0 0.0
        %v4285 = vand.u32 %v3740, 4294901760
        %4286 = vmatpush1.msra.mxu0 %v4285
        %4287 = vmatprep.subr.mxu0 0.0
        %v4288 = vand.u32 %v3728, 4294901760
        %4289 = vmatpush1.msra.mxu0 %v4288
        %4290 = vmatprep.subr.mxu0 0.0
        %4291 = vmatpush2.msra.mxu0 0.0
        %4292 = vmatprep.subr.mxu0 0.0
        %4293 = vmatpush2.msra.mxu0 0.0
        %4294 = vmatprep.subr.mxu0 0.0
        %4295 = vmatpush2.msra.mxu0 0.0
        %4296 = vmatprep.subr.mxu0 0.0
        %4297 = vmatpush2.msra.mxu0 0.0
        %4298 = vmatprep.subr.mxu0 0.0
        %4299 = vmatpush2.msra.mxu0 0.0
        %4300 = vmatprep.subr.mxu0 0.0
        %4301 = vmatpush2.msra.mxu0 0.0
        %4302 = vmatprep.subr.mxu0 0.0
        %4303 = vmatpush2.msra.mxu0 0.0
        %4304 = vmatprep.subr.mxu0 0.0
        %4305 = vmatpush2.msra.mxu0 0.0
        %4306 = vmatprep.subr.mxu0 0.0
        %4307 = vmatpush2.msra.mxu0 0.0
        %4308 = vmatprep.subr.mxu0 0.0
        %4309 = vmatpush2.msra.mxu0 0.0
        %4310 = vmatprep.subr.mxu0 0.0
        %4311 = vmatpush2.msra.mxu0 0.0
        %4312 = vmatprep.subr.mxu0 0.0
        %4313 = vmatpush2.msra.mxu0 0.0
        %4314 = vmatprep.subr.mxu0 0.0
        %4315 = vmatpush2.msra.mxu0 0.0
        %4316 = vmatprep.subr.mxu0 0.0
        %4317 = vmatpush2.msra.mxu0 0.0
        %4318 = vmatprep.subr.mxu0 0.0
        %4319 = vmatpush2.msra.mxu0 0.0
        %4320 = vmatprep.subr.mxu0 0.0
        %4321 = vmatpush2.msra.mxu0 0.0
        %4322 = vmatprep.mubr.f32.mxu0 0.0
        %v4323 = vand.u32 %v3748, 4294901760
        %4324 = vmatmul.mubr.f32.gmra.mxu0 %v4323
        %v4325 = vpop.f32.mrf.mxu0
        %v4326 = vadd.f32 %v4235, %v4325
        %v4327 = vpop.f32.mrf.mxu0
        %4328 = vmatprep.mubr.f32.mxu0 0.0
        %v4329 = vand.u32 %v3751, 4294901760
        %4330 = vmatmul.mubr.f32.gmra.mxu0 %v4329
        %v4331 = vpop.f32.mrf.mxu0
        %v4332 = vadd.f32 %v4241, %v4331
        %v4333 = vpop.f32.mrf.mxu0
        %4334 = vmatprep.mubr.f32.mxu0 0.0
        %v4335 = vand.u32 %v3754, 4294901760
        %4336 = vmatmul.mubr.f32.gmra.mxu0 %v4335
        %v4337 = vpop.f32.mrf.mxu0
        %v4338 = vadd.f32 %v4247, %v4337
        %v4339 = vpop.f32.mrf.mxu0
        %4340 = vmatprep.mubr.f32.mxu0 0.0
        %v4341 = vand.u32 %v3757, 4294901760
        %4342 = vmatmul.mubr.f32.gmra.mxu0 %v4341
        %v4343 = vpop.f32.mrf.mxu0
        %v4344 = vadd.f32 %v4253, %v4343
        %v4345 = vpop.f32.mrf.mxu0
        %4346 = vdwg.mxu0
        %v4347 = vtanh.pop %v4326
        %v4348 = vtanh.pop %v4332
        %v4349 = vxor.u32 %v4338, 2147483648
        %v4350 = vxor.u32 %v4344, 2147483648
        %v4351 = vmul.f32 %v4349, 1.442695
        %v4352 = vpow.pop %v4351
        %v4353 = vmul.f32 %v4350, 1.442695
        %v4354 = vpow.pop %v4353
        %v4355 = vadd.f32 %v4352, 1.0
        %v4356 = vadd.f32 %v4354, 1.0
        %v4357 = vrcp.pop %v4355
        %v4358 = vmul.f32 1.0, %v4357
        %v4359 = vrcp.pop %v4356
        %v4360 = vmul.f32 1.0, %v4359
        %v4361 = vmul.f32 %v4347, %v4358
        %v4362 = vmul.f32 %v4348, %v4360
        %s4363 = scalar_lea.vmem %s3, 48
        %v4364 = vld [vmem:[%s4363] sm:$0xff]
        %v4365 = vld [vmem:[%s4363 + $0x8] sm:$0xff]
        %v4367 = vsel %vm309, %v4364, 0
        %v4370 = vsel %vm309, %v4365, 0
        %4372 = vmatprep.subr.mxu0 0.0
        %4373 = vmatpush1.msra.mxu0 0.0
        %4374 = vmatprep.subr.mxu0 0.0
        %4375 = vmatpush1.msra.mxu0 0.0
        %4376 = vmatprep.subr.mxu0 0.0
        %4377 = vmatpush1.msra.mxu0 0.0
        %4378 = vmatprep.subr.mxu0 0.0
        %4379 = vmatpush1.msra.mxu0 0.0
        %4380 = vmatprep.subr.mxu0 0.0
        %4381 = vmatpush1.msra.mxu0 0.0
        %4382 = vmatprep.subr.mxu0 0.0
        %4383 = vmatpush1.msra.mxu0 0.0
        %4384 = vmatprep.subr.mxu0 0.0
        %4385 = vmatpush1.msra.mxu0 0.0
        %4386 = vmatprep.subr.mxu0 0.0
        %4387 = vmatpush1.msra.mxu0 0.0
        %4388 = vmatprep.subr.mxu0 0.0
        %4389 = vmatpush1.msra.mxu0 0.0
        %4390 = vmatprep.subr.mxu0 0.0
        %4391 = vmatpush1.msra.mxu0 0.0
        %4392 = vmatprep.subr.mxu0 0.0
        %4393 = vmatpush1.msra.mxu0 0.0
        %4394 = vmatprep.subr.mxu0 0.0
        %4395 = vmatpush1.msra.mxu0 0.0
        %4396 = vmatprep.subr.mxu0 0.0
        %4397 = vmatpush1.msra.mxu0 0.0
        %4398 = vmatprep.subr.mxu0 0.0
        %4399 = vmatpush1.msra.mxu0 0.0
        %4400 = vmatprep.subr.mxu0 0.0
        %v4401 = vand.u32 %v4362, 4294901760
        %4402 = vmatpush1.msra.mxu0 %v4401
        %4403 = vmatprep.subr.mxu0 0.0
        %v4404 = vand.u32 %v4361, 4294901760
        %4405 = vmatpush1.msra.mxu0 %v4404
        %4406 = vmatprep.subr.mxu0 0.0
        %4407 = vmatpush2.msra.mxu0 0.0
        %4408 = vmatprep.subr.mxu0 0.0
        %4409 = vmatpush2.msra.mxu0 0.0
        %4410 = vmatprep.subr.mxu0 0.0
        %4411 = vmatpush2.msra.mxu0 0.0
        %4412 = vmatprep.subr.mxu0 0.0
        %4413 = vmatpush2.msra.mxu0 0.0
        %4414 = vmatprep.subr.mxu0 0.0
        %4415 = vmatpush2.msra.mxu0 0.0
        %4416 = vmatprep.subr.mxu0 0.0
        %4417 = vmatpush2.msra.mxu0 0.0
        %4418 = vmatprep.subr.mxu0 0.0
        %4419 = vmatpush2.msra.mxu0 0.0
        %4420 = vmatprep.subr.mxu0 0.0
        %4421 = vmatpush2.msra.mxu0 0.0
        %4422 = vmatprep.subr.mxu0 0.0
        %4423 = vmatpush2.msra.mxu0 0.0
        %4424 = vmatprep.subr.mxu0 0.0
        %4425 = vmatpush2.msra.mxu0 0.0
        %4426 = vmatprep.subr.mxu0 0.0
        %4427 = vmatpush2.msra.mxu0 0.0
        %4428 = vmatprep.subr.mxu0 0.0
        %4429 = vmatpush2.msra.mxu0 0.0
        %4430 = vmatprep.subr.mxu0 0.0
        %4431 = vmatpush2.msra.mxu0 0.0
        %4432 = vmatprep.subr.mxu0 0.0
        %4433 = vmatpush2.msra.mxu0 0.0
        %4434 = vmatprep.subr.mxu0 0.0
        %4435 = vmatpush2.msra.mxu0 0.0
        %4436 = vmatprep.subr.mxu0 0.0
        %4437 = vmatpush2.msra.mxu0 0.0
        %4438 = vmatprep.mubr.f32.mxu0 0.0
        %v4439 = vand.u32 %v4367, 4294901760
        %v4440 = vsub.f32 %v4367, %v4439
        %v4441 = vand.u32 %v4440, 4294901760
        %v4442 = vsub.f32 %v4440, %v4441
        %v4443 = vand.u32 %v4442, 4294901760
        %4444 = vmatmul.mubr.f32.gmra.mxu0 %v4443
        %v4445 = vpop.f32.mrf.mxu0
        %v4446 = vpop.f32.mrf.mxu0
        %4447 = vmatprep.mubr.f32.mxu0 0.0
        %v4448 = vand.u32 %v4370, 4294901760
        %v4449 = vsub.f32 %v4370, %v4448
        %v4450 = vand.u32 %v4449, 4294901760
        %v4451 = vsub.f32 %v4449, %v4450
        %v4452 = vand.u32 %v4451, 4294901760
        %4453 = vmatmul.mubr.f32.gmra.mxu0 %v4452
        %v4454 = vpop.f32.mrf.mxu0
        %v4455 = vadd.f32 0.0, %v4454
        %v4456 = vpop.f32.mrf.mxu0
        %4457 = vdwg.mxu0
        %4458 = vmatprep.subr.mxu0 0.0
        %4459 = vmatpush1.msra.mxu0 0.0
        %4460 = vmatprep.subr.mxu0 0.0
        %4461 = vmatpush1.msra.mxu0 0.0
        %4462 = vmatprep.subr.mxu0 0.0
        %4463 = vmatpush1.msra.mxu0 0.0
        %4464 = vmatprep.subr.mxu0 0.0
        %4465 = vmatpush1.msra.mxu0 0.0
        %4466 = vmatprep.subr.mxu0 0.0
        %4467 = vmatpush1.msra.mxu0 0.0
        %4468 = vmatprep.subr.mxu0 0.0
        %4469 = vmatpush1.msra.mxu0 0.0
        %4470 = vmatprep.subr.mxu0 0.0
        %4471 = vmatpush1.msra.mxu0 0.0
        %4472 = vmatprep.subr.mxu0 0.0
        %4473 = vmatpush1.msra.mxu0 0.0
        %4474 = vmatprep.subr.mxu0 0.0
        %4475 = vmatpush1.msra.mxu0 0.0
        %4476 = vmatprep.subr.mxu0 0.0
        %4477 = vmatpush1.msra.mxu0 0.0
        %4478 = vmatprep.subr.mxu0 0.0
        %4479 = vmatpush1.msra.mxu0 0.0
        %4480 = vmatprep.subr.mxu0 0.0
        %4481 = vmatpush1.msra.mxu0 0.0
        %4482 = vmatprep.subr.mxu0 0.0
        %4483 = vmatpush1.msra.mxu0 0.0
        %4484 = vmatprep.subr.mxu0 0.0
        %4485 = vmatpush1.msra.mxu0 0.0
        %4486 = vmatprep.subr.mxu0 0.0
        %v4487 = vand.u32 %v4362, 4294901760
        %v4488 = vsub.f32 %v4362, %v4487
        %v4489 = vand.u32 %v4488, 4294901760
        %v4490 = vsub.f32 %v4488, %v4489
        %v4491 = vand.u32 %v4490, 4294901760
        %4492 = vmatpush1.msra.mxu0 %v4491
        %4493 = vmatprep.subr.mxu0 0.0
        %v4494 = vand.u32 %v4361, 4294901760
        %v4495 = vsub.f32 %v4361, %v4494
        %v4496 = vand.u32 %v4495, 4294901760
        %v4497 = vsub.f32 %v4495, %v4496
        %v4498 = vand.u32 %v4497, 4294901760
        %4499 = vmatpush1.msra.mxu0 %v4498
        %4500 = vmatprep.subr.mxu0 0.0
        %4501 = vmatpush2.msra.mxu0 0.0
        %4502 = vmatprep.subr.mxu0 0.0
        %4503 = vmatpush2.msra.mxu0 0.0
        %4504 = vmatprep.subr.mxu0 0.0
        %4505 = vmatpush2.msra.mxu0 0.0
        %4506 = vmatprep.subr.mxu0 0.0
        %4507 = vmatpush2.msra.mxu0 0.0
        %4508 = vmatprep.subr.mxu0 0.0
        %4509 = vmatpush2.msra.mxu0 0.0
        %4510 = vmatprep.subr.mxu0 0.0
        %4511 = vmatpush2.msra.mxu0 0.0
        %4512 = vmatprep.subr.mxu0 0.0
        %4513 = vmatpush2.msra.mxu0 0.0
        %4514 = vmatprep.subr.mxu0 0.0
        %4515 = vmatpush2.msra.mxu0 0.0
        %4516 = vmatprep.subr.mxu0 0.0
        %4517 = vmatpush2.msra.mxu0 0.0
        %4518 = vmatprep.subr.mxu0 0.0
        %4519 = vmatpush2.msra.mxu0 0.0
        %4520 = vmatprep.subr.mxu0 0.0
        %4521 = vmatpush2.msra.mxu0 0.0
        %4522 = vmatprep.subr.mxu0 0.0
        %4523 = vmatpush2.msra.mxu0 0.0
        %4524 = vmatprep.subr.mxu0 0.0
        %4525 = vmatpush2.msra.mxu0 0.0
        %4526 = vmatprep.subr.mxu0 0.0
        %4527 = vmatpush2.msra.mxu0 0.0
        %4528 = vmatprep.subr.mxu0 0.0
        %4529 = vmatpush2.msra.mxu0 0.0
        %4530 = vmatprep.subr.mxu0 0.0
        %4531 = vmatpush2.msra.mxu0 0.0
        %4532 = vmatprep.mubr.f32.mxu0 0.0
        %v4533 = vand.u32 %v4367, 4294901760
        %4534 = vmatmul.mubr.f32.gmra.mxu0 %v4533
        %v4535 = vpop.f32.mrf.mxu0
        %v4536 = vpop.f32.mrf.mxu0
        %4537 = vmatprep.mubr.f32.mxu0 0.0
        %v4538 = vand.u32 %v4370, 4294901760
        %4539 = vmatmul.mubr.f32.gmra.mxu0 %v4538
        %v4540 = vpop.f32.mrf.mxu0
        %v4541 = vadd.f32 %v4455, %v4540
        %v4542 = vpop.f32.mrf.mxu0
        %4543 = vdwg.mxu0
        %4544 = vmatprep.subr.mxu0 0.0
        %4545 = vmatpush1.msra.mxu0 0.0
        %4546 = vmatprep.subr.mxu0 0.0
        %4547 = vmatpush1.msra.mxu0 0.0
        %4548 = vmatprep.subr.mxu0 0.0
        %4549 = vmatpush1.msra.mxu0 0.0
        %4550 = vmatprep.subr.mxu0 0.0
        %4551 = vmatpush1.msra.mxu0 0.0
        %4552 = vmatprep.subr.mxu0 0.0
        %4553 = vmatpush1.msra.mxu0 0.0
        %4554 = vmatprep.subr.mxu0 0.0
        %4555 = vmatpush1.msra.mxu0 0.0
        %4556 = vmatprep.subr.mxu0 0.0
        %4557 = vmatpush1.msra.mxu0 0.0
        %4558 = vmatprep.subr.mxu0 0.0
        %4559 = vmatpush1.msra.mxu0 0.0
        %4560 = vmatprep.subr.mxu0 0.0
        %4561 = vmatpush1.msra.mxu0 0.0
        %4562 = vmatprep.subr.mxu0 0.0
        %4563 = vmatpush1.msra.mxu0 0.0
        %4564 = vmatprep.subr.mxu0 0.0
        %4565 = vmatpush1.msra.mxu0 0.0
        %4566 = vmatprep.subr.mxu0 0.0
        %4567 = vmatpush1.msra.mxu0 0.0
        %4568 = vmatprep.subr.mxu0 0.0
        %4569 = vmatpush1.msra.mxu0 0.0
        %4570 = vmatprep.subr.mxu0 0.0
        %4571 = vmatpush1.msra.mxu0 0.0
        %4572 = vmatprep.subr.mxu0 0.0
        %v4573 = vand.u32 %v4362, 4294901760
        %v4574 = vsub.f32 %v4362, %v4573
        %4575 = vmatpush1.msra.mxu0 %v4574
        %4576 = vmatprep.subr.mxu0 0.0
        %v4577 = vand.u32 %v4361, 4294901760
        %v4578 = vsub.f32 %v4361, %v4577
        %4579 = vmatpush1.msra.mxu0 %v4578
        %4580 = vmatprep.subr.mxu0 0.0
        %4581 = vmatpush2.msra.mxu0 0.0
        %4582 = vmatprep.subr.mxu0 0.0
        %4583 = vmatpush2.msra.mxu0 0.0
        %4584 = vmatprep.subr.mxu0 0.0
        %4585 = vmatpush2.msra.mxu0 0.0
        %4586 = vmatprep.subr.mxu0 0.0
        %4587 = vmatpush2.msra.mxu0 0.0
        %4588 = vmatprep.subr.mxu0 0.0
        %4589 = vmatpush2.msra.mxu0 0.0
        %4590 = vmatprep.subr.mxu0 0.0
        %4591 = vmatpush2.msra.mxu0 0.0
        %4592 = vmatprep.subr.mxu0 0.0
        %4593 = vmatpush2.msra.mxu0 0.0
        %4594 = vmatprep.subr.mxu0 0.0
        %4595 = vmatpush2.msra.mxu0 0.0
        %4596 = vmatprep.subr.mxu0 0.0
        %4597 = vmatpush2.msra.mxu0 0.0
        %4598 = vmatprep.subr.mxu0 0.0
        %4599 = vmatpush2.msra.mxu0 0.0
        %4600 = vmatprep.subr.mxu0 0.0
        %4601 = vmatpush2.msra.mxu0 0.0
        %4602 = vmatprep.subr.mxu0 0.0
        %4603 = vmatpush2.msra.mxu0 0.0
        %4604 = vmatprep.subr.mxu0 0.0
        %4605 = vmatpush2.msra.mxu0 0.0
        %4606 = vmatprep.subr.mxu0 0.0
        %4607 = vmatpush2.msra.mxu0 0.0
        %4608 = vmatprep.subr.mxu0 0.0
        %4609 = vmatpush2.msra.mxu0 0.0
        %4610 = vmatprep.subr.mxu0 0.0
        %4611 = vmatpush2.msra.mxu0 0.0
        %4612 = vmatprep.mubr.f32.mxu0 0.0
        %v4613 = vand.u32 %v4367, 4294901760
        %v4614 = vsub.f32 %v4367, %v4613
        %4615 = vmatmul.mubr.f32.gmra.mxu0 %v4614
        %v4616 = vpop.f32.mrf.mxu0
        %v4617 = vpop.f32.mrf.mxu0
        %4618 = vmatprep.mubr.f32.mxu0 0.0
        %v4619 = vand.u32 %v4370, 4294901760
        %v4620 = vsub.f32 %v4370, %v4619
        %4621 = vmatmul.mubr.f32.gmra.mxu0 %v4620
        %v4622 = vpop.f32.mrf.mxu0
        %v4623 = vadd.f32 %v4541, %v4622
        %v4624 = vpop.f32.mrf.mxu0
        %4625 = vdwg.mxu0
        %4626 = vmatprep.subr.mxu0 0.0
        %4627 = vmatpush1.msra.mxu0 0.0
        %4628 = vmatprep.subr.mxu0 0.0
        %4629 = vmatpush1.msra.mxu0 0.0
        %4630 = vmatprep.subr.mxu0 0.0
        %4631 = vmatpush1.msra.mxu0 0.0
        %4632 = vmatprep.subr.mxu0 0.0
        %4633 = vmatpush1.msra.mxu0 0.0
        %4634 = vmatprep.subr.mxu0 0.0
        %4635 = vmatpush1.msra.mxu0 0.0
        %4636 = vmatprep.subr.mxu0 0.0
        %4637 = vmatpush1.msra.mxu0 0.0
        %4638 = vmatprep.subr.mxu0 0.0
        %4639 = vmatpush1.msra.mxu0 0.0
        %4640 = vmatprep.subr.mxu0 0.0
        %4641 = vmatpush1.msra.mxu0 0.0
        %4642 = vmatprep.subr.mxu0 0.0
        %4643 = vmatpush1.msra.mxu0 0.0
        %4644 = vmatprep.subr.mxu0 0.0
        %4645 = vmatpush1.msra.mxu0 0.0
        %4646 = vmatprep.subr.mxu0 0.0
        %4647 = vmatpush1.msra.mxu0 0.0
        %4648 = vmatprep.subr.mxu0 0.0
        %4649 = vmatpush1.msra.mxu0 0.0
        %4650 = vmatprep.subr.mxu0 0.0
        %4651 = vmatpush1.msra.mxu0 0.0
        %4652 = vmatprep.subr.mxu0 0.0
        %4653 = vmatpush1.msra.mxu0 0.0
        %4654 = vmatprep.subr.mxu0 0.0
        %v4655 = vand.u32 %v4362, 4294901760
        %4656 = vmatpush1.msra.mxu0 %v4655
        %4657 = vmatprep.subr.mxu0 0.0
        %v4658 = vand.u32 %v4361, 4294901760
        %4659 = vmatpush1.msra.mxu0 %v4658
        %4660 = vmatprep.subr.mxu0 0.0
        %4661 = vmatpush2.msra.mxu0 0.0
        %4662 = vmatprep.subr.mxu0 0.0
        %4663 = vmatpush2.msra.mxu0 0.0
        %4664 = vmatprep.subr.mxu0 0.0
        %4665 = vmatpush2.msra.mxu0 0.0
        %4666 = vmatprep.subr.mxu0 0.0
        %4667 = vmatpush2.msra.mxu0 0.0
        %4668 = vmatprep.subr.mxu0 0.0
        %4669 = vmatpush2.msra.mxu0 0.0
        %4670 = vmatprep.subr.mxu0 0.0
        %4671 = vmatpush2.msra.mxu0 0.0
        %4672 = vmatprep.subr.mxu0 0.0
        %4673 = vmatpush2.msra.mxu0 0.0
        %4674 = vmatprep.subr.mxu0 0.0
        %4675 = vmatpush2.msra.mxu0 0.0
        %4676 = vmatprep.subr.mxu0 0.0
        %4677 = vmatpush2.msra.mxu0 0.0
        %4678 = vmatprep.subr.mxu0 0.0
        %4679 = vmatpush2.msra.mxu0 0.0
        %4680 = vmatprep.subr.mxu0 0.0
        %4681 = vmatpush2.msra.mxu0 0.0
        %4682 = vmatprep.subr.mxu0 0.0
        %4683 = vmatpush2.msra.mxu0 0.0
        %4684 = vmatprep.subr.mxu0 0.0
        %4685 = vmatpush2.msra.mxu0 0.0
        %4686 = vmatprep.subr.mxu0 0.0
        %4687 = vmatpush2.msra.mxu0 0.0
        %4688 = vmatprep.subr.mxu0 0.0
        %4689 = vmatpush2.msra.mxu0 0.0
        %4690 = vmatprep.subr.mxu0 0.0
        %4691 = vmatpush2.msra.mxu0 0.0
        %4692 = vmatprep.mubr.f32.mxu0 0.0
        %v4693 = vand.u32 %v4367, 4294901760
        %v4694 = vsub.f32 %v4367, %v4693
        %v4695 = vand.u32 %v4694, 4294901760
        %4696 = vmatmul.mubr.f32.gmra.mxu0 %v4695
        %v4697 = vpop.f32.mrf.mxu0
        %v4698 = vpop.f32.mrf.mxu0
        %4699 = vmatprep.mubr.f32.mxu0 0.0
        %v4700 = vand.u32 %v4370, 4294901760
        %v4701 = vsub.f32 %v4370, %v4700
        %v4702 = vand.u32 %v4701, 4294901760
        %4703 = vmatmul.mubr.f32.gmra.mxu0 %v4702
        %v4704 = vpop.f32.mrf.mxu0
        %v4705 = vadd.f32 %v4623, %v4704
        %v4706 = vpop.f32.mrf.mxu0
        %4707 = vdwg.mxu0
        %4708 = vmatprep.subr.mxu0 0.0
        %4709 = vmatpush1.msra.mxu0 0.0
        %4710 = vmatprep.subr.mxu0 0.0
        %4711 = vmatpush1.msra.mxu0 0.0
        %4712 = vmatprep.subr.mxu0 0.0
        %4713 = vmatpush1.msra.mxu0 0.0
        %4714 = vmatprep.subr.mxu0 0.0
        %4715 = vmatpush1.msra.mxu0 0.0
        %4716 = vmatprep.subr.mxu0 0.0
        %4717 = vmatpush1.msra.mxu0 0.0
        %4718 = vmatprep.subr.mxu0 0.0
        %4719 = vmatpush1.msra.mxu0 0.0
        %4720 = vmatprep.subr.mxu0 0.0
        %4721 = vmatpush1.msra.mxu0 0.0
        %4722 = vmatprep.subr.mxu0 0.0
        %4723 = vmatpush1.msra.mxu0 0.0
        %4724 = vmatprep.subr.mxu0 0.0
        %4725 = vmatpush1.msra.mxu0 0.0
        %4726 = vmatprep.subr.mxu0 0.0
        %4727 = vmatpush1.msra.mxu0 0.0
        %4728 = vmatprep.subr.mxu0 0.0
        %4729 = vmatpush1.msra.mxu0 0.0
        %4730 = vmatprep.subr.mxu0 0.0
        %4731 = vmatpush1.msra.mxu0 0.0
        %4732 = vmatprep.subr.mxu0 0.0
        %4733 = vmatpush1.msra.mxu0 0.0
        %4734 = vmatprep.subr.mxu0 0.0
        %4735 = vmatpush1.msra.mxu0 0.0
        %4736 = vmatprep.subr.mxu0 0.0
        %v4737 = vand.u32 %v4362, 4294901760
        %v4738 = vsub.f32 %v4362, %v4737
        %v4739 = vand.u32 %v4738, 4294901760
        %4740 = vmatpush1.msra.mxu0 %v4739
        %4741 = vmatprep.subr.mxu0 0.0
        %v4742 = vand.u32 %v4361, 4294901760
        %v4743 = vsub.f32 %v4361, %v4742
        %v4744 = vand.u32 %v4743, 4294901760
        %4745 = vmatpush1.msra.mxu0 %v4744
        %4746 = vmatprep.subr.mxu0 0.0
        %4747 = vmatpush2.msra.mxu0 0.0
        %4748 = vmatprep.subr.mxu0 0.0
        %4749 = vmatpush2.msra.mxu0 0.0
        %4750 = vmatprep.subr.mxu0 0.0
        %4751 = vmatpush2.msra.mxu0 0.0
        %4752 = vmatprep.subr.mxu0 0.0
        %4753 = vmatpush2.msra.mxu0 0.0
        %4754 = vmatprep.subr.mxu0 0.0
        %4755 = vmatpush2.msra.mxu0 0.0
        %4756 = vmatprep.subr.mxu0 0.0
        %4757 = vmatpush2.msra.mxu0 0.0
        %4758 = vmatprep.subr.mxu0 0.0
        %4759 = vmatpush2.msra.mxu0 0.0
        %4760 = vmatprep.subr.mxu0 0.0
        %4761 = vmatpush2.msra.mxu0 0.0
        %4762 = vmatprep.subr.mxu0 0.0
        %4763 = vmatpush2.msra.mxu0 0.0
        %4764 = vmatprep.subr.mxu0 0.0
        %4765 = vmatpush2.msra.mxu0 0.0
        %4766 = vmatprep.subr.mxu0 0.0
        %4767 = vmatpush2.msra.mxu0 0.0
        %4768 = vmatprep.subr.mxu0 0.0
        %4769 = vmatpush2.msra.mxu0 0.0
        %4770 = vmatprep.subr.mxu0 0.0
        %4771 = vmatpush2.msra.mxu0 0.0
        %4772 = vmatprep.subr.mxu0 0.0
        %4773 = vmatpush2.msra.mxu0 0.0
        %4774 = vmatprep.subr.mxu0 0.0
        %4775 = vmatpush2.msra.mxu0 0.0
        %4776 = vmatprep.subr.mxu0 0.0
        %4777 = vmatpush2.msra.mxu0 0.0
        %4778 = vmatprep.mubr.f32.mxu0 0.0
        %v4779 = vand.u32 %v4367, 4294901760
        %4780 = vmatmul.mubr.f32.gmra.mxu0 %v4779
        %v4781 = vpop.f32.mrf.mxu0
        %v4782 = vpop.f32.mrf.mxu0
        %4783 = vmatprep.mubr.f32.mxu0 0.0
        %v4784 = vand.u32 %v4370, 4294901760
        %4785 = vmatmul.mubr.f32.gmra.mxu0 %v4784
        %v4786 = vpop.f32.mrf.mxu0
        %v4787 = vadd.f32 %v4705, %v4786
        %v4788 = vpop.f32.mrf.mxu0
        %4789 = vdwg.mxu0
        %4790 = vmatprep.subr.mxu0 0.0
        %4791 = vmatpush1.msra.mxu0 0.0
        %4792 = vmatprep.subr.mxu0 0.0
        %4793 = vmatpush1.msra.mxu0 0.0
        %4794 = vmatprep.subr.mxu0 0.0
        %4795 = vmatpush1.msra.mxu0 0.0
        %4796 = vmatprep.subr.mxu0 0.0
        %4797 = vmatpush1.msra.mxu0 0.0
        %4798 = vmatprep.subr.mxu0 0.0
        %4799 = vmatpush1.msra.mxu0 0.0
        %4800 = vmatprep.subr.mxu0 0.0
        %4801 = vmatpush1.msra.mxu0 0.0
        %4802 = vmatprep.subr.mxu0 0.0
        %4803 = vmatpush1.msra.mxu0 0.0
        %4804 = vmatprep.subr.mxu0 0.0
        %4805 = vmatpush1.msra.mxu0 0.0
        %4806 = vmatprep.subr.mxu0 0.0
        %4807 = vmatpush1.msra.mxu0 0.0
        %4808 = vmatprep.subr.mxu0 0.0
        %4809 = vmatpush1.msra.mxu0 0.0
        %4810 = vmatprep.subr.mxu0 0.0
        %4811 = vmatpush1.msra.mxu0 0.0
        %4812 = vmatprep.subr.mxu0 0.0
        %4813 = vmatpush1.msra.mxu0 0.0
        %4814 = vmatprep.subr.mxu0 0.0
        %4815 = vmatpush1.msra.mxu0 0.0
        %4816 = vmatprep.subr.mxu0 0.0
        %4817 = vmatpush1.msra.mxu0 0.0
        %4818 = vmatprep.subr.mxu0 0.0
        %v4819 = vand.u32 %v4362, 4294901760
        %4820 = vmatpush1.msra.mxu0 %v4819
        %4821 = vmatprep.subr.mxu0 0.0
        %v4822 = vand.u32 %v4361, 4294901760
        %4823 = vmatpush1.msra.mxu0 %v4822
        %4824 = vmatprep.subr.mxu0 0.0
        %4825 = vmatpush2.msra.mxu0 0.0
        %4826 = vmatprep.subr.mxu0 0.0
        %4827 = vmatpush2.msra.mxu0 0.0
        %4828 = vmatprep.subr.mxu0 0.0
        %4829 = vmatpush2.msra.mxu0 0.0
        %4830 = vmatprep.subr.mxu0 0.0
        %4831 = vmatpush2.msra.mxu0 0.0
        %4832 = vmatprep.subr.mxu0 0.0
        %4833 = vmatpush2.msra.mxu0 0.0
        %4834 = vmatprep.subr.mxu0 0.0
        %4835 = vmatpush2.msra.mxu0 0.0
        %4836 = vmatprep.subr.mxu0 0.0
        %4837 = vmatpush2.msra.mxu0 0.0
        %4838 = vmatprep.subr.mxu0 0.0
        %4839 = vmatpush2.msra.mxu0 0.0
        %4840 = vmatprep.subr.mxu0 0.0
        %4841 = vmatpush2.msra.mxu0 0.0
        %4842 = vmatprep.subr.mxu0 0.0
        %4843 = vmatpush2.msra.mxu0 0.0
        %4844 = vmatprep.subr.mxu0 0.0
        %4845 = vmatpush2.msra.mxu0 0.0
        %4846 = vmatprep.subr.mxu0 0.0
        %4847 = vmatpush2.msra.mxu0 0.0
        %4848 = vmatprep.subr.mxu0 0.0
        %4849 = vmatpush2.msra.mxu0 0.0
        %4850 = vmatprep.subr.mxu0 0.0
        %4851 = vmatpush2.msra.mxu0 0.0
        %4852 = vmatprep.subr.mxu0 0.0
        %4853 = vmatpush2.msra.mxu0 0.0
        %4854 = vmatprep.subr.mxu0 0.0
        %4855 = vmatpush2.msra.mxu0 0.0
        %4856 = vmatprep.mubr.f32.mxu0 0.0
        %v4857 = vand.u32 %v4367, 4294901760
        %4858 = vmatmul.mubr.f32.gmra.mxu0 %v4857
        %v4859 = vpop.f32.mrf.mxu0
        %v4860 = vpop.f32.mrf.mxu0
        %4861 = vmatprep.mubr.f32.mxu0 0.0
        %v4862 = vand.u32 %v4370, 4294901760
        %4863 = vmatmul.mubr.f32.gmra.mxu0 %v4862
        %v4864 = vpop.f32.mrf.mxu0
        %v4865 = vadd.f32 %v4787, %v4864
        %v4866 = vpop.f32.mrf.mxu0
        %4867 = vdwg.mxu0
        %v4868 = vadd.f32 %v3729, %v4865
        %v4869 = vmax.f32 %v4868, 0.0
        %v4870 = vld [vmem:[%s4] sm:$0xff]
        %v4871 = vld [vmem:[%s4 + $0x8] sm:$0xff]
        %v4872 = vld [vmem:[%s4 + $0x10] sm:$0xff]
        %v4873 = vld [vmem:[%s4 + $0x18] sm:$0xff]
        %v4874 = vld [vmem:[%s5] sm:$0xff]
        %v4875 = vld [vmem:[%s5 + $0x8] sm:$0xff]
        %v4876 = vld [vmem:[%s5 + $0x10] sm:$0xff]
        %v4877 = vld [vmem:[%s5 + $0x18] sm:$0xff]
        %4879 = vset.pattern.permute.xlu0 0
        %4880 = vperm.xlu0 %4879, %v4874
        %v4881 = vpop.permute.xlu0 %4880
        %4884 = vset.pattern.permute.xlu0 0
        %4885 = vperm.xlu0 %4884, %v4875
        %v4886 = vpop.permute.xlu0 %4885
        %4889 = vset.pattern.permute.xlu0 0
        %4890 = vperm.xlu0 %4889, %v4876
        %v4891 = vpop.permute.xlu0 %4890
        %4894 = vset.pattern.permute.xlu0 0
        %4895 = vperm.xlu0 %4894, %v4877
        %v4896 = vpop.permute.xlu0 %4895
        %vm4898 = vcmask 64512
        %v4900 = vsel %vm4898, %v4870, 0
        %v4903 = vsel %vm4898, %v4871, 0
        %v4906 = vsel %vm4898, %v4872, 0
        %v4909 = vsel %vm4898, %v4873, 0
        %4911 = vmatprep.subr.mxu0 0.0
        %4912 = vmatpush1.msra.mxu0 0.0
        %4913 = vmatprep.subr.mxu0 0.0
        %4914 = vmatpush1.msra.mxu0 0.0
        %4915 = vmatprep.subr.mxu0 0.0
        %4916 = vmatpush1.msra.mxu0 0.0
        %4917 = vmatprep.subr.mxu0 0.0
        %4918 = vmatpush1.msra.mxu0 0.0
        %4919 = vmatprep.subr.mxu0 0.0
        %4920 = vmatpush1.msra.mxu0 0.0
        %4921 = vmatprep.subr.mxu0 0.0
        %4922 = vmatpush1.msra.mxu0 0.0
        %4923 = vmatprep.subr.mxu0 0.0
        %4924 = vmatpush1.msra.mxu0 0.0
        %4925 = vmatprep.subr.mxu0 0.0
        %4926 = vmatpush1.msra.mxu0 0.0
        %4927 = vmatprep.subr.mxu0 0.0
        %4928 = vmatpush1.msra.mxu0 0.0
        %4929 = vmatprep.subr.mxu0 0.0
        %4930 = vmatpush1.msra.mxu0 0.0
        %4931 = vmatprep.subr.mxu0 0.0
        %4932 = vmatpush1.msra.mxu0 0.0
        %4933 = vmatprep.subr.mxu0 0.0
        %4934 = vmatpush1.msra.mxu0 0.0
        %4935 = vmatprep.subr.mxu0 0.0
        %4936 = vmatpush1.msra.mxu0 0.0
        %4937 = vmatprep.subr.mxu0 0.0
        %4938 = vmatpush1.msra.mxu0 0.0
        %4939 = vmatprep.subr.mxu0 0.0
        %4940 = vmatpush1.msra.mxu0 0.0
        %4941 = vmatprep.subr.mxu0 0.0
        %v4942 = vand.u32 %v4869, 4294901760
        %4943 = vmatpush1.msra.mxu0 %v4942
        %4944 = vmatprep.subr.mxu0 0.0
        %4945 = vmatpush2.msra.mxu0 0.0
        %4946 = vmatprep.subr.mxu0 0.0
        %4947 = vmatpush2.msra.mxu0 0.0
        %4948 = vmatprep.subr.mxu0 0.0
        %4949 = vmatpush2.msra.mxu0 0.0
        %4950 = vmatprep.subr.mxu0 0.0
        %4951 = vmatpush2.msra.mxu0 0.0
        %4952 = vmatprep.subr.mxu0 0.0
        %4953 = vmatpush2.msra.mxu0 0.0
        %4954 = vmatprep.subr.mxu0 0.0
        %4955 = vmatpush2.msra.mxu0 0.0
        %4956 = vmatprep.subr.mxu0 0.0
        %4957 = vmatpush2.msra.mxu0 0.0
        %4958 = vmatprep.subr.mxu0 0.0
        %4959 = vmatpush2.msra.mxu0 0.0
        %4960 = vmatprep.subr.mxu0 0.0
        %4961 = vmatpush2.msra.mxu0 0.0
        %4962 = vmatprep.subr.mxu0 0.0
        %4963 = vmatpush2.msra.mxu0 0.0
        %4964 = vmatprep.subr.mxu0 0.0
        %4965 = vmatpush2.msra.mxu0 0.0
        %4966 = vmatprep.subr.mxu0 0.0
        %4967 = vmatpush2.msra.mxu0 0.0
        %4968 = vmatprep.subr.mxu0 0.0
        %4969 = vmatpush2.msra.mxu0 0.0
        %4970 = vmatprep.subr.mxu0 0.0
        %4971 = vmatpush2.msra.mxu0 0.0
        %4972 = vmatprep.subr.mxu0 0.0
        %4973 = vmatpush2.msra.mxu0 0.0
        %4974 = vmatprep.subr.mxu0 0.0
        %4975 = vmatpush2.msra.mxu0 0.0
        %4976 = vmatprep.mubr.f32.mxu0 0.0
        %v4977 = vand.u32 %v4900, 4294901760
        %v4978 = vsub.f32 %v4900, %v4977
        %v4979 = vand.u32 %v4978, 4294901760
        %v4980 = vsub.f32 %v4978, %v4979
        %v4981 = vand.u32 %v4980, 4294901760
        %4982 = vmatmul.mubr.f32.gmra.mxu0 %v4981
        %v4983 = vpop.f32.mrf.mxu0
        %v4984 = vadd.f32 %v4881, %v4983
        %v4985 = vpop.f32.mrf.mxu0
        %4986 = vmatprep.mubr.f32.mxu0 0.0
        %v4987 = vand.u32 %v4903, 4294901760
        %v4988 = vsub.f32 %v4903, %v4987
        %v4989 = vand.u32 %v4988, 4294901760
        %v4990 = vsub.f32 %v4988, %v4989
        %v4991 = vand.u32 %v4990, 4294901760
        %4992 = vmatmul.mubr.f32.gmra.mxu0 %v4991
        %v4993 = vpop.f32.mrf.mxu0
        %v4994 = vadd.f32 %v4886, %v4993
        %v4995 = vpop.f32.mrf.mxu0
        %4996 = vmatprep.mubr.f32.mxu0 0.0
        %v4997 = vand.u32 %v4906, 4294901760
        %v4998 = vsub.f32 %v4906, %v4997
        %v4999 = vand.u32 %v4998, 4294901760
        %v5000 = vsub.f32 %v4998, %v4999
        %v5001 = vand.u32 %v5000, 4294901760
        %5002 = vmatmul.mubr.f32.gmra.mxu0 %v5001
        %v5003 = vpop.f32.mrf.mxu0
        %v5004 = vadd.f32 %v4891, %v5003
        %v5005 = vpop.f32.mrf.mxu0
        %5006 = vmatprep.mubr.f32.mxu0 0.0
        %v5007 = vand.u32 %v4909, 4294901760
        %v5008 = vsub.f32 %v4909, %v5007
        %v5009 = vand.u32 %v5008, 4294901760
        %v5010 = vsub.f32 %v5008, %v5009
        %v5011 = vand.u32 %v5010, 4294901760
        %5012 = vmatmul.mubr.f32.gmra.mxu0 %v5011
        %v5013 = vpop.f32.mrf.mxu0
        %v5014 = vadd.f32 %v4896, %v5013
        %v5015 = vpop.f32.mrf.mxu0
        %5016 = vdwg.mxu0
        %5017 = vmatprep.subr.mxu0 0.0
        %5018 = vmatpush1.msra.mxu0 0.0
        %5019 = vmatprep.subr.mxu0 0.0
        %5020 = vmatpush1.msra.mxu0 0.0
        %5021 = vmatprep.subr.mxu0 0.0
        %5022 = vmatpush1.msra.mxu0 0.0
        %5023 = vmatprep.subr.mxu0 0.0
        %5024 = vmatpush1.msra.mxu0 0.0
        %5025 = vmatprep.subr.mxu0 0.0
        %5026 = vmatpush1.msra.mxu0 0.0
        %5027 = vmatprep.subr.mxu0 0.0
        %5028 = vmatpush1.msra.mxu0 0.0
        %5029 = vmatprep.subr.mxu0 0.0
        %5030 = vmatpush1.msra.mxu0 0.0
        %5031 = vmatprep.subr.mxu0 0.0
        %5032 = vmatpush1.msra.mxu0 0.0
        %5033 = vmatprep.subr.mxu0 0.0
        %5034 = vmatpush1.msra.mxu0 0.0
        %5035 = vmatprep.subr.mxu0 0.0
        %5036 = vmatpush1.msra.mxu0 0.0
        %5037 = vmatprep.subr.mxu0 0.0
        %5038 = vmatpush1.msra.mxu0 0.0
        %5039 = vmatprep.subr.mxu0 0.0
        %5040 = vmatpush1.msra.mxu0 0.0
        %5041 = vmatprep.subr.mxu0 0.0
        %5042 = vmatpush1.msra.mxu0 0.0
        %5043 = vmatprep.subr.mxu0 0.0
        %5044 = vmatpush1.msra.mxu0 0.0
        %5045 = vmatprep.subr.mxu0 0.0
        %5046 = vmatpush1.msra.mxu0 0.0
        %5047 = vmatprep.subr.mxu0 0.0
        %v5048 = vand.u32 %v4869, 4294901760
        %v5049 = vsub.f32 %v4869, %v5048
        %v5050 = vand.u32 %v5049, 4294901760
        %v5051 = vsub.f32 %v5049, %v5050
        %v5052 = vand.u32 %v5051, 4294901760
        %5053 = vmatpush1.msra.mxu0 %v5052
        %5054 = vmatprep.subr.mxu0 0.0
        %5055 = vmatpush2.msra.mxu0 0.0
        %5056 = vmatprep.subr.mxu0 0.0
        %5057 = vmatpush2.msra.mxu0 0.0
        %5058 = vmatprep.subr.mxu0 0.0
        %5059 = vmatpush2.msra.mxu0 0.0
        %5060 = vmatprep.subr.mxu0 0.0
        %5061 = vmatpush2.msra.mxu0 0.0
        %5062 = vmatprep.subr.mxu0 0.0
        %5063 = vmatpush2.msra.mxu0 0.0
        %5064 = vmatprep.subr.mxu0 0.0
        %5065 = vmatpush2.msra.mxu0 0.0
        %5066 = vmatprep.subr.mxu0 0.0
        %5067 = vmatpush2.msra.mxu0 0.0
        %5068 = vmatprep.subr.mxu0 0.0
        %5069 = vmatpush2.msra.mxu0 0.0
        %5070 = vmatprep.subr.mxu0 0.0
        %5071 = vmatpush2.msra.mxu0 0.0
        %5072 = vmatprep.subr.mxu0 0.0
        %5073 = vmatpush2.msra.mxu0 0.0
        %5074 = vmatprep.subr.mxu0 0.0
        %5075 = vmatpush2.msra.mxu0 0.0
        %5076 = vmatprep.subr.mxu0 0.0
        %5077 = vmatpush2.msra.mxu0 0.0
        %5078 = vmatprep.subr.mxu0 0.0
        %5079 = vmatpush2.msra.mxu0 0.0
        %5080 = vmatprep.subr.mxu0 0.0
        %5081 = vmatpush2.msra.mxu0 0.0
        %5082 = vmatprep.subr.mxu0 0.0
        %5083 = vmatpush2.msra.mxu0 0.0
        %5084 = vmatprep.subr.mxu0 0.0
        %5085 = vmatpush2.msra.mxu0 0.0
        %5086 = vmatprep.mubr.f32.mxu0 0.0
        %v5087 = vand.u32 %v4900, 4294901760
        %5088 = vmatmul.mubr.f32.gmra.mxu0 %v5087
        %v5089 = vpop.f32.mrf.mxu0
        %v5090 = vadd.f32 %v4984, %v5089
        %v5091 = vpop.f32.mrf.mxu0
        %5092 = vmatprep.mubr.f32.mxu0 0.0
        %v5093 = vand.u32 %v4903, 4294901760
        %5094 = vmatmul.mubr.f32.gmra.mxu0 %v5093
        %v5095 = vpop.f32.mrf.mxu0
        %v5096 = vadd.f32 %v4994, %v5095
        %v5097 = vpop.f32.mrf.mxu0
        %5098 = vmatprep.mubr.f32.mxu0 0.0
        %v5099 = vand.u32 %v4906, 4294901760
        %5100 = vmatmul.mubr.f32.gmra.mxu0 %v5099
        %v5101 = vpop.f32.mrf.mxu0
        %v5102 = vadd.f32 %v5004, %v5101
        %v5103 = vpop.f32.mrf.mxu0
        %5104 = vmatprep.mubr.f32.mxu0 0.0
        %v5105 = vand.u32 %v4909, 4294901760
        %5106 = vmatmul.mubr.f32.gmra.mxu0 %v5105
        %v5107 = vpop.f32.mrf.mxu0
        %v5108 = vadd.f32 %v5014, %v5107
        %v5109 = vpop.f32.mrf.mxu0
        %5110 = vdwg.mxu0
        %5111 = vmatprep.subr.mxu0 0.0
        %5112 = vmatpush1.msra.mxu0 0.0
        %5113 = vmatprep.subr.mxu0 0.0
        %5114 = vmatpush1.msra.mxu0 0.0
        %5115 = vmatprep.subr.mxu0 0.0
        %5116 = vmatpush1.msra.mxu0 0.0
        %5117 = vmatprep.subr.mxu0 0.0
        %5118 = vmatpush1.msra.mxu0 0.0
        %5119 = vmatprep.subr.mxu0 0.0
        %5120 = vmatpush1.msra.mxu0 0.0
        %5121 = vmatprep.subr.mxu0 0.0
        %5122 = vmatpush1.msra.mxu0 0.0
        %5123 = vmatprep.subr.mxu0 0.0
        %5124 = vmatpush1.msra.mxu0 0.0
        %5125 = vmatprep.subr.mxu0 0.0
        %5126 = vmatpush1.msra.mxu0 0.0
        %5127 = vmatprep.subr.mxu0 0.0
        %5128 = vmatpush1.msra.mxu0 0.0
        %5129 = vmatprep.subr.mxu0 0.0
        %5130 = vmatpush1.msra.mxu0 0.0
        %5131 = vmatprep.subr.mxu0 0.0
        %5132 = vmatpush1.msra.mxu0 0.0
        %5133 = vmatprep.subr.mxu0 0.0
        %5134 = vmatpush1.msra.mxu0 0.0
        %5135 = vmatprep.subr.mxu0 0.0
        %5136 = vmatpush1.msra.mxu0 0.0
        %5137 = vmatprep.subr.mxu0 0.0
        %5138 = vmatpush1.msra.mxu0 0.0
        %5139 = vmatprep.subr.mxu0 0.0
        %5140 = vmatpush1.msra.mxu0 0.0
        %5141 = vmatprep.subr.mxu0 0.0
        %v5142 = vand.u32 %v4869, 4294901760
        %v5143 = vsub.f32 %v4869, %v5142
        %5144 = vmatpush1.msra.mxu0 %v5143
        %5145 = vmatprep.subr.mxu0 0.0
        %5146 = vmatpush2.msra.mxu0 0.0
        %5147 = vmatprep.subr.mxu0 0.0
        %5148 = vmatpush2.msra.mxu0 0.0
        %5149 = vmatprep.subr.mxu0 0.0
        %5150 = vmatpush2.msra.mxu0 0.0
        %5151 = vmatprep.subr.mxu0 0.0
        %5152 = vmatpush2.msra.mxu0 0.0
        %5153 = vmatprep.subr.mxu0 0.0
        %5154 = vmatpush2.msra.mxu0 0.0
        %5155 = vmatprep.subr.mxu0 0.0
        %5156 = vmatpush2.msra.mxu0 0.0
        %5157 = vmatprep.subr.mxu0 0.0
        %5158 = vmatpush2.msra.mxu0 0.0
        %5159 = vmatprep.subr.mxu0 0.0
        %5160 = vmatpush2.msra.mxu0 0.0
        %5161 = vmatprep.subr.mxu0 0.0
        %5162 = vmatpush2.msra.mxu0 0.0
        %5163 = vmatprep.subr.mxu0 0.0
        %5164 = vmatpush2.msra.mxu0 0.0
        %5165 = vmatprep.subr.mxu0 0.0
        %5166 = vmatpush2.msra.mxu0 0.0
        %5167 = vmatprep.subr.mxu0 0.0
        %5168 = vmatpush2.msra.mxu0 0.0
        %5169 = vmatprep.subr.mxu0 0.0
        %5170 = vmatpush2.msra.mxu0 0.0
        %5171 = vmatprep.subr.mxu0 0.0
        %5172 = vmatpush2.msra.mxu0 0.0
        %5173 = vmatprep.subr.mxu0 0.0
        %5174 = vmatpush2.msra.mxu0 0.0
        %5175 = vmatprep.subr.mxu0 0.0
        %5176 = vmatpush2.msra.mxu0 0.0
        %5177 = vmatprep.mubr.f32.mxu0 0.0
        %v5178 = vand.u32 %v4900, 4294901760
        %v5179 = vsub.f32 %v4900, %v5178
        %5180 = vmatmul.mubr.f32.gmra.mxu0 %v5179
        %v5181 = vpop.f32.mrf.mxu0
        %v5182 = vadd.f32 %v5090, %v5181
        %v5183 = vpop.f32.mrf.mxu0
        %5184 = vmatprep.mubr.f32.mxu0 0.0
        %v5185 = vand.u32 %v4903, 4294901760
        %v5186 = vsub.f32 %v4903, %v5185
        %5187 = vmatmul.mubr.f32.gmra.mxu0 %v5186
        %v5188 = vpop.f32.mrf.mxu0
        %v5189 = vadd.f32 %v5096, %v5188
        %v5190 = vpop.f32.mrf.mxu0
        %5191 = vmatprep.mubr.f32.mxu0 0.0
        %v5192 = vand.u32 %v4906, 4294901760
        %v5193 = vsub.f32 %v4906, %v5192
        %5194 = vmatmul.mubr.f32.gmra.mxu0 %v5193
        %v5195 = vpop.f32.mrf.mxu0
        %v5196 = vadd.f32 %v5102, %v5195
        %v5197 = vpop.f32.mrf.mxu0
        %5198 = vmatprep.mubr.f32.mxu0 0.0
        %v5199 = vand.u32 %v4909, 4294901760
        %v5200 = vsub.f32 %v4909, %v5199
        %5201 = vmatmul.mubr.f32.gmra.mxu0 %v5200
        %v5202 = vpop.f32.mrf.mxu0
        %v5203 = vadd.f32 %v5108, %v5202
        %v5204 = vpop.f32.mrf.mxu0
        %5205 = vdwg.mxu0
        %5206 = vmatprep.subr.mxu0 0.0
        %5207 = vmatpush1.msra.mxu0 0.0
        %5208 = vmatprep.subr.mxu0 0.0
        %5209 = vmatpush1.msra.mxu0 0.0
        %5210 = vmatprep.subr.mxu0 0.0
        %5211 = vmatpush1.msra.mxu0 0.0
        %5212 = vmatprep.subr.mxu0 0.0
        %5213 = vmatpush1.msra.mxu0 0.0
        %5214 = vmatprep.subr.mxu0 0.0
        %5215 = vmatpush1.msra.mxu0 0.0
        %5216 = vmatprep.subr.mxu0 0.0
        %5217 = vmatpush1.msra.mxu0 0.0
        %5218 = vmatprep.subr.mxu0 0.0
        %5219 = vmatpush1.msra.mxu0 0.0
        %5220 = vmatprep.subr.mxu0 0.0
        %5221 = vmatpush1.msra.mxu0 0.0
        %5222 = vmatprep.subr.mxu0 0.0
        %5223 = vmatpush1.msra.mxu0 0.0
        %5224 = vmatprep.subr.mxu0 0.0
        %5225 = vmatpush1.msra.mxu0 0.0
        %5226 = vmatprep.subr.mxu0 0.0
        %5227 = vmatpush1.msra.mxu0 0.0
        %5228 = vmatprep.subr.mxu0 0.0
        %5229 = vmatpush1.msra.mxu0 0.0
        %5230 = vmatprep.subr.mxu0 0.0
        %5231 = vmatpush1.msra.mxu0 0.0
        %5232 = vmatprep.subr.mxu0 0.0
        %5233 = vmatpush1.msra.mxu0 0.0
        %5234 = vmatprep.subr.mxu0 0.0
        %5235 = vmatpush1.msra.mxu0 0.0
        %5236 = vmatprep.subr.mxu0 0.0
        %v5237 = vand.u32 %v4869, 4294901760
        %5238 = vmatpush1.msra.mxu0 %v5237
        %5239 = vmatprep.subr.mxu0 0.0
        %5240 = vmatpush2.msra.mxu0 0.0
        %5241 = vmatprep.subr.mxu0 0.0
        %5242 = vmatpush2.msra.mxu0 0.0
        %5243 = vmatprep.subr.mxu0 0.0
        %5244 = vmatpush2.msra.mxu0 0.0
        %5245 = vmatprep.subr.mxu0 0.0
        %5246 = vmatpush2.msra.mxu0 0.0
        %5247 = vmatprep.subr.mxu0 0.0
        %5248 = vmatpush2.msra.mxu0 0.0
        %5249 = vmatprep.subr.mxu0 0.0
        %5250 = vmatpush2.msra.mxu0 0.0
        %5251 = vmatprep.subr.mxu0 0.0
        %5252 = vmatpush2.msra.mxu0 0.0
        %5253 = vmatprep.subr.mxu0 0.0
        %5254 = vmatpush2.msra.mxu0 0.0
        %5255 = vmatprep.subr.mxu0 0.0
        %5256 = vmatpush2.msra.mxu0 0.0
        %5257 = vmatprep.subr.mxu0 0.0
        %5258 = vmatpush2.msra.mxu0 0.0
        %5259 = vmatprep.subr.mxu0 0.0
        %5260 = vmatpush2.msra.mxu0 0.0
        %5261 = vmatprep.subr.mxu0 0.0
        %5262 = vmatpush2.msra.mxu0 0.0
        %5263 = vmatprep.subr.mxu0 0.0
        %5264 = vmatpush2.msra.mxu0 0.0
        %5265 = vmatprep.subr.mxu0 0.0
        %5266 = vmatpush2.msra.mxu0 0.0
        %5267 = vmatprep.subr.mxu0 0.0
        %5268 = vmatpush2.msra.mxu0 0.0
        %5269 = vmatprep.subr.mxu0 0.0
        %5270 = vmatpush2.msra.mxu0 0.0
        %5271 = vmatprep.mubr.f32.mxu0 0.0
        %v5272 = vand.u32 %v4900, 4294901760
        %v5273 = vsub.f32 %v4900, %v5272
        %v5274 = vand.u32 %v5273, 4294901760
        %5275 = vmatmul.mubr.f32.gmra.mxu0 %v5274
        %v5276 = vpop.f32.mrf.mxu0
        %v5277 = vadd.f32 %v5182, %v5276
        %v5278 = vpop.f32.mrf.mxu0
        %5279 = vmatprep.mubr.f32.mxu0 0.0
        %v5280 = vand.u32 %v4903, 4294901760
        %v5281 = vsub.f32 %v4903, %v5280
        %v5282 = vand.u32 %v5281, 4294901760
        %5283 = vmatmul.mubr.f32.gmra.mxu0 %v5282
        %v5284 = vpop.f32.mrf.mxu0
        %v5285 = vadd.f32 %v5189, %v5284
        %v5286 = vpop.f32.mrf.mxu0
        %5287 = vmatprep.mubr.f32.mxu0 0.0
        %v5288 = vand.u32 %v4906, 4294901760
        %v5289 = vsub.f32 %v4906, %v5288
        %v5290 = vand.u32 %v5289, 4294901760
        %5291 = vmatmul.mubr.f32.gmra.mxu0 %v5290
        %v5292 = vpop.f32.mrf.mxu0
        %v5293 = vadd.f32 %v5196, %v5292
        %v5294 = vpop.f32.mrf.mxu0
        %5295 = vmatprep.mubr.f32.mxu0 0.0
        %v5296 = vand.u32 %v4909, 4294901760
        %v5297 = vsub.f32 %v4909, %v5296
        %v5298 = vand.u32 %v5297, 4294901760
        %5299 = vmatmul.mubr.f32.gmra.mxu0 %v5298
        %v5300 = vpop.f32.mrf.mxu0
        %v5301 = vadd.f32 %v5203, %v5300
        %v5302 = vpop.f32.mrf.mxu0
        %5303 = vdwg.mxu0
        %5304 = vmatprep.subr.mxu0 0.0
        %5305 = vmatpush1.msra.mxu0 0.0
        %5306 = vmatprep.subr.mxu0 0.0
        %5307 = vmatpush1.msra.mxu0 0.0
        %5308 = vmatprep.subr.mxu0 0.0
        %5309 = vmatpush1.msra.mxu0 0.0
        %5310 = vmatprep.subr.mxu0 0.0
        %5311 = vmatpush1.msra.mxu0 0.0
        %5312 = vmatprep.subr.mxu0 0.0
        %5313 = vmatpush1.msra.mxu0 0.0
        %5314 = vmatprep.subr.mxu0 0.0
        %5315 = vmatpush1.msra.mxu0 0.0
        %5316 = vmatprep.subr.mxu0 0.0
        %5317 = vmatpush1.msra.mxu0 0.0
        %5318 = vmatprep.subr.mxu0 0.0
        %5319 = vmatpush1.msra.mxu0 0.0
        %5320 = vmatprep.subr.mxu0 0.0
        %5321 = vmatpush1.msra.mxu0 0.0
        %5322 = vmatprep.subr.mxu0 0.0
        %5323 = vmatpush1.msra.mxu0 0.0
        %5324 = vmatprep.subr.mxu0 0.0
        %5325 = vmatpush1.msra.mxu0 0.0
        %5326 = vmatprep.subr.mxu0 0.0
        %5327 = vmatpush1.msra.mxu0 0.0
        %5328 = vmatprep.subr.mxu0 0.0
        %5329 = vmatpush1.msra.mxu0 0.0
        %5330 = vmatprep.subr.mxu0 0.0
        %5331 = vmatpush1.msra.mxu0 0.0
        %5332 = vmatprep.subr.mxu0 0.0
        %5333 = vmatpush1.msra.mxu0 0.0
        %5334 = vmatprep.subr.mxu0 0.0
        %v5335 = vand.u32 %v4869, 4294901760
        %v5336 = vsub.f32 %v4869, %v5335
        %v5337 = vand.u32 %v5336, 4294901760
        %5338 = vmatpush1.msra.mxu0 %v5337
        %5339 = vmatprep.subr.mxu0 0.0
        %5340 = vmatpush2.msra.mxu0 0.0
        %5341 = vmatprep.subr.mxu0 0.0
        %5342 = vmatpush2.msra.mxu0 0.0
        %5343 = vmatprep.subr.mxu0 0.0
        %5344 = vmatpush2.msra.mxu0 0.0
        %5345 = vmatprep.subr.mxu0 0.0
        %5346 = vmatpush2.msra.mxu0 0.0
        %5347 = vmatprep.subr.mxu0 0.0
        %5348 = vmatpush2.msra.mxu0 0.0
        %5349 = vmatprep.subr.mxu0 0.0
        %5350 = vmatpush2.msra.mxu0 0.0
        %5351 = vmatprep.subr.mxu0 0.0
        %5352 = vmatpush2.msra.mxu0 0.0
        %5353 = vmatprep.subr.mxu0 0.0
        %5354 = vmatpush2.msra.mxu0 0.0
        %5355 = vmatprep.subr.mxu0 0.0
        %5356 = vmatpush2.msra.mxu0 0.0
        %5357 = vmatprep.subr.mxu0 0.0
        %5358 = vmatpush2.msra.mxu0 0.0
        %5359 = vmatprep.subr.mxu0 0.0
        %5360 = vmatpush2.msra.mxu0 0.0
        %5361 = vmatprep.subr.mxu0 0.0
        %5362 = vmatpush2.msra.mxu0 0.0
        %5363 = vmatprep.subr.mxu0 0.0
        %5364 = vmatpush2.msra.mxu0 0.0
        %5365 = vmatprep.subr.mxu0 0.0
        %5366 = vmatpush2.msra.mxu0 0.0
        %5367 = vmatprep.subr.mxu0 0.0
        %5368 = vmatpush2.msra.mxu0 0.0
        %5369 = vmatprep.subr.mxu0 0.0
        %5370 = vmatpush2.msra.mxu0 0.0
        %5371 = vmatprep.mubr.f32.mxu0 0.0
        %v5372 = vand.u32 %v4900, 4294901760
        %5373 = vmatmul.mubr.f32.gmra.mxu0 %v5372
        %v5374 = vpop.f32.mrf.mxu0
        %v5375 = vadd.f32 %v5277, %v5374
        %v5376 = vpop.f32.mrf.mxu0
        %5377 = vmatprep.mubr.f32.mxu0 0.0
        %v5378 = vand.u32 %v4903, 4294901760
        %5379 = vmatmul.mubr.f32.gmra.mxu0 %v5378
        %v5380 = vpop.f32.mrf.mxu0
        %v5381 = vadd.f32 %v5285, %v5380
        %v5382 = vpop.f32.mrf.mxu0
        %5383 = vmatprep.mubr.f32.mxu0 0.0
        %v5384 = vand.u32 %v4906, 4294901760
        %5385 = vmatmul.mubr.f32.gmra.mxu0 %v5384
        %v5386 = vpop.f32.mrf.mxu0
        %v5387 = vadd.f32 %v5293, %v5386
        %v5388 = vpop.f32.mrf.mxu0
        %5389 = vmatprep.mubr.f32.mxu0 0.0
        %v5390 = vand.u32 %v4909, 4294901760
        %5391 = vmatmul.mubr.f32.gmra.mxu0 %v5390
        %v5392 = vpop.f32.mrf.mxu0
        %v5393 = vadd.f32 %v5301, %v5392
        %v5394 = vpop.f32.mrf.mxu0
        %5395 = vdwg.mxu0
        %5396 = vmatprep.subr.mxu0 0.0
        %5397 = vmatpush1.msra.mxu0 0.0
        %5398 = vmatprep.subr.mxu0 0.0
        %5399 = vmatpush1.msra.mxu0 0.0
        %5400 = vmatprep.subr.mxu0 0.0
        %5401 = vmatpush1.msra.mxu0 0.0
        %5402 = vmatprep.subr.mxu0 0.0
        %5403 = vmatpush1.msra.mxu0 0.0
        %5404 = vmatprep.subr.mxu0 0.0
        %5405 = vmatpush1.msra.mxu0 0.0
        %5406 = vmatprep.subr.mxu0 0.0
        %5407 = vmatpush1.msra.mxu0 0.0
        %5408 = vmatprep.subr.mxu0 0.0
        %5409 = vmatpush1.msra.mxu0 0.0
        %5410 = vmatprep.subr.mxu0 0.0
        %5411 = vmatpush1.msra.mxu0 0.0
        %5412 = vmatprep.subr.mxu0 0.0
        %5413 = vmatpush1.msra.mxu0 0.0
        %5414 = vmatprep.subr.mxu0 0.0
        %5415 = vmatpush1.msra.mxu0 0.0
        %5416 = vmatprep.subr.mxu0 0.0
        %5417 = vmatpush1.msra.mxu0 0.0
        %5418 = vmatprep.subr.mxu0 0.0
        %5419 = vmatpush1.msra.mxu0 0.0
        %5420 = vmatprep.subr.mxu0 0.0
        %5421 = vmatpush1.msra.mxu0 0.0
        %5422 = vmatprep.subr.mxu0 0.0
        %5423 = vmatpush1.msra.mxu0 0.0
        %5424 = vmatprep.subr.mxu0 0.0
        %5425 = vmatpush1.msra.mxu0 0.0
        %5426 = vmatprep.subr.mxu0 0.0
        %v5427 = vand.u32 %v4869, 4294901760
        %5428 = vmatpush1.msra.mxu0 %v5427
        %5429 = vmatprep.subr.mxu0 0.0
        %5430 = vmatpush2.msra.mxu0 0.0
        %5431 = vmatprep.subr.mxu0 0.0
        %5432 = vmatpush2.msra.mxu0 0.0
        %5433 = vmatprep.subr.mxu0 0.0
        %5434 = vmatpush2.msra.mxu0 0.0
        %5435 = vmatprep.subr.mxu0 0.0
        %5436 = vmatpush2.msra.mxu0 0.0
        %5437 = vmatprep.subr.mxu0 0.0
        %5438 = vmatpush2.msra.mxu0 0.0
        %5439 = vmatprep.subr.mxu0 0.0
        %5440 = vmatpush2.msra.mxu0 0.0
        %5441 = vmatprep.subr.mxu0 0.0
        %5442 = vmatpush2.msra.mxu0 0.0
        %5443 = vmatprep.subr.mxu0 0.0
        %5444 = vmatpush2.msra.mxu0 0.0
        %5445 = vmatprep.subr.mxu0 0.0
        %5446 = vmatpush2.msra.mxu0 0.0
        %5447 = vmatprep.subr.mxu0 0.0
        %5448 = vmatpush2.msra.mxu0 0.0
        %5449 = vmatprep.subr.mxu0 0.0
        %5450 = vmatpush2.msra.mxu0 0.0
        %5451 = vmatprep.subr.mxu0 0.0
        %5452 = vmatpush2.msra.mxu0 0.0
        %5453 = vmatprep.subr.mxu0 0.0
        %5454 = vmatpush2.msra.mxu0 0.0
        %5455 = vmatprep.subr.mxu0 0.0
        %5456 = vmatpush2.msra.mxu0 0.0
        %5457 = vmatprep.subr.mxu0 0.0
        %5458 = vmatpush2.msra.mxu0 0.0
        %5459 = vmatprep.subr.mxu0 0.0
        %5460 = vmatpush2.msra.mxu0 0.0
        %5461 = vmatprep.mubr.f32.mxu0 0.0
        %v5462 = vand.u32 %v4900, 4294901760
        %5463 = vmatmul.mubr.f32.gmra.mxu0 %v5462
        %v5464 = vpop.f32.mrf.mxu0
        %v5465 = vadd.f32 %v5375, %v5464
        %v5466 = vpop.f32.mrf.mxu0
        %5467 = vmatprep.mubr.f32.mxu0 0.0
        %v5468 = vand.u32 %v4903, 4294901760
        %5469 = vmatmul.mubr.f32.gmra.mxu0 %v5468
        %v5470 = vpop.f32.mrf.mxu0
        %v5471 = vadd.f32 %v5381, %v5470
        %v5472 = vpop.f32.mrf.mxu0
        %5473 = vmatprep.mubr.f32.mxu0 0.0
        %v5474 = vand.u32 %v4906, 4294901760
        %5475 = vmatmul.mubr.f32.gmra.mxu0 %v5474
        %v5476 = vpop.f32.mrf.mxu0
        %v5477 = vadd.f32 %v5387, %v5476
        %v5478 = vpop.f32.mrf.mxu0
        %5479 = vmatprep.mubr.f32.mxu0 0.0
        %v5480 = vand.u32 %v4909, 4294901760
        %5481 = vmatmul.mubr.f32.gmra.mxu0 %v5480
        %v5482 = vpop.f32.mrf.mxu0
        %v5483 = vadd.f32 %v5393, %v5482
        %v5484 = vpop.f32.mrf.mxu0
        %5485 = vdwg.mxu0
        %v5486 = vmax.f32 %v5465, 0.0
        %v5487 = vmax.f32 %v5471, 0.0
        %v5488 = vmax.f32 %v5477, 0.0
        %v5489 = vmax.f32 %v5483, 0.0
        %v5490 = vld [vmem:[%s6] sm:$0xff]
        %v5491 = vld [vmem:[%s6 + $0x8] sm:$0xff]
        %v5492 = vld [vmem:[%s6 + $0x10] sm:$0xff]
        %v5493 = vld [vmem:[%s6 + $0x18] sm:$0xff]
        %vm5494 = vcmask 261120
        %v5496 = vsel %vm5494, %v5490, 0
        %v5499 = vsel %vm5494, %v5491, 0
        %v5502 = vsel %vm5494, %v5492, 0
        %v5505 = vsel %vm5494, %v5493, 0
        %5507 = vmatprep.subr.mxu0 0.0
        %5508 = vmatpush1.msra.mxu0 0.0
        %5509 = vmatprep.subr.mxu0 0.0
        %5510 = vmatpush1.msra.mxu0 0.0
        %5511 = vmatprep.subr.mxu0 0.0
        %5512 = vmatpush1.msra.mxu0 0.0
        %5513 = vmatprep.subr.mxu0 0.0
        %5514 = vmatpush1.msra.mxu0 0.0
        %5515 = vmatprep.subr.mxu0 0.0
        %5516 = vmatpush1.msra.mxu0 0.0
        %5517 = vmatprep.subr.mxu0 0.0
        %5518 = vmatpush1.msra.mxu0 0.0
        %5519 = vmatprep.subr.mxu0 0.0
        %5520 = vmatpush1.msra.mxu0 0.0
        %5521 = vmatprep.subr.mxu0 0.0
        %5522 = vmatpush1.msra.mxu0 0.0
        %5523 = vmatprep.subr.mxu0 0.0
        %5524 = vmatpush1.msra.mxu0 0.0
        %5525 = vmatprep.subr.mxu0 0.0
        %5526 = vmatpush1.msra.mxu0 0.0
        %5527 = vmatprep.subr.mxu0 0.0
        %5528 = vmatpush1.msra.mxu0 0.0
        %5529 = vmatprep.subr.mxu0 0.0
        %5530 = vmatpush1.msra.mxu0 0.0
        %5531 = vmatprep.subr.mxu0 0.0
        %v5532 = vand.u32 %v5489, 4294901760
        %5533 = vmatpush1.msra.mxu0 %v5532
        %5534 = vmatprep.subr.mxu0 0.0
        %v5535 = vand.u32 %v5488, 4294901760
        %5536 = vmatpush1.msra.mxu0 %v5535
        %5537 = vmatprep.subr.mxu0 0.0
        %v5538 = vand.u32 %v5487, 4294901760
        %5539 = vmatpush1.msra.mxu0 %v5538
        %5540 = vmatprep.subr.mxu0 0.0
        %v5541 = vand.u32 %v5486, 4294901760
        %5542 = vmatpush1.msra.mxu0 %v5541
        %5543 = vmatprep.subr.mxu0 0.0
        %5544 = vmatpush2.msra.mxu0 0.0
        %5545 = vmatprep.subr.mxu0 0.0
        %5546 = vmatpush2.msra.mxu0 0.0
        %5547 = vmatprep.subr.mxu0 0.0
        %5548 = vmatpush2.msra.mxu0 0.0
        %5549 = vmatprep.subr.mxu0 0.0
        %5550 = vmatpush2.msra.mxu0 0.0
        %5551 = vmatprep.subr.mxu0 0.0
        %5552 = vmatpush2.msra.mxu0 0.0
        %5553 = vmatprep.subr.mxu0 0.0
        %5554 = vmatpush2.msra.mxu0 0.0
        %5555 = vmatprep.subr.mxu0 0.0
        %5556 = vmatpush2.msra.mxu0 0.0
        %5557 = vmatprep.subr.mxu0 0.0
        %5558 = vmatpush2.msra.mxu0 0.0
        %5559 = vmatprep.subr.mxu0 0.0
        %5560 = vmatpush2.msra.mxu0 0.0
        %5561 = vmatprep.subr.mxu0 0.0
        %5562 = vmatpush2.msra.mxu0 0.0
        %5563 = vmatprep.subr.mxu0 0.0
        %5564 = vmatpush2.msra.mxu0 0.0
        %5565 = vmatprep.subr.mxu0 0.0
        %5566 = vmatpush2.msra.mxu0 0.0
        %5567 = vmatprep.subr.mxu0 0.0
        %5568 = vmatpush2.msra.mxu0 0.0
        %5569 = vmatprep.subr.mxu0 0.0
        %5570 = vmatpush2.msra.mxu0 0.0
        %5571 = vmatprep.subr.mxu0 0.0
        %5572 = vmatpush2.msra.mxu0 0.0
        %5573 = vmatprep.subr.mxu0 0.0
        %5574 = vmatpush2.msra.mxu0 0.0
        %5575 = vmatprep.mubr.f32.mxu0 0.0
        %v5576 = vand.u32 %v5496, 4294901760
        %v5577 = vsub.f32 %v5496, %v5576
        %v5578 = vand.u32 %v5577, 4294901760
        %v5579 = vsub.f32 %v5577, %v5578
        %v5580 = vand.u32 %v5579, 4294901760
        %5581 = vmatmul.mubr.f32.gmra.mxu0 %v5580
        %v5582 = vpop.f32.mrf.mxu0
        %v5583 = vadd.f32 0.0, %v5582
        %v5584 = vpop.f32.mrf.mxu0
        %5585 = vmatprep.mubr.f32.mxu0 0.0
        %v5586 = vand.u32 %v5499, 4294901760
        %v5587 = vsub.f32 %v5499, %v5586
        %v5588 = vand.u32 %v5587, 4294901760
        %v5589 = vsub.f32 %v5587, %v5588
        %v5590 = vand.u32 %v5589, 4294901760
        %5591 = vmatmul.mubr.f32.gmra.mxu0 %v5590
        %v5592 = vpop.f32.mrf.mxu0
        %v5593 = vadd.f32 0.0, %v5592
        %v5594 = vpop.f32.mrf.mxu0
        %5595 = vmatprep.mubr.f32.mxu0 0.0
        %v5596 = vand.u32 %v5502, 4294901760
        %v5597 = vsub.f32 %v5502, %v5596
        %v5598 = vand.u32 %v5597, 4294901760
        %v5599 = vsub.f32 %v5597, %v5598
        %v5600 = vand.u32 %v5599, 4294901760
        %5601 = vmatmul.mubr.f32.gmra.mxu0 %v5600
        %v5602 = vpop.f32.mrf.mxu0
        %v5603 = vadd.f32 0.0, %v5602
        %v5604 = vpop.f32.mrf.mxu0
        %5605 = vmatprep.mubr.f32.mxu0 0.0
        %v5606 = vand.u32 %v5505, 4294901760
        %v5607 = vsub.f32 %v5505, %v5606
        %v5608 = vand.u32 %v5607, 4294901760
        %v5609 = vsub.f32 %v5607, %v5608
        %v5610 = vand.u32 %v5609, 4294901760
        %5611 = vmatmul.mubr.f32.gmra.mxu0 %v5610
        %v5612 = vpop.f32.mrf.mxu0
        %v5613 = vadd.f32 0.0, %v5612
        %v5614 = vpop.f32.mrf.mxu0
        %5615 = vdwg.mxu0
        %5616 = vmatprep.subr.mxu0 0.0
        %5617 = vmatpush1.msra.mxu0 0.0
        %5618 = vmatprep.subr.mxu0 0.0
        %5619 = vmatpush1.msra.mxu0 0.0
        %5620 = vmatprep.subr.mxu0 0.0
        %5621 = vmatpush1.msra.mxu0 0.0
        %5622 = vmatprep.subr.mxu0 0.0
        %5623 = vmatpush1.msra.mxu0 0.0
        %5624 = vmatprep.subr.mxu0 0.0
        %5625 = vmatpush1.msra.mxu0 0.0
        %5626 = vmatprep.subr.mxu0 0.0
        %5627 = vmatpush1.msra.mxu0 0.0
        %5628 = vmatprep.subr.mxu0 0.0
        %5629 = vmatpush1.msra.mxu0 0.0
        %5630 = vmatprep.subr.mxu0 0.0
        %5631 = vmatpush1.msra.mxu0 0.0
        %5632 = vmatprep.subr.mxu0 0.0
        %5633 = vmatpush1.msra.mxu0 0.0
        %5634 = vmatprep.subr.mxu0 0.0
        %5635 = vmatpush1.msra.mxu0 0.0
        %5636 = vmatprep.subr.mxu0 0.0
        %5637 = vmatpush1.msra.mxu0 0.0
        %5638 = vmatprep.subr.mxu0 0.0
        %5639 = vmatpush1.msra.mxu0 0.0
        %5640 = vmatprep.subr.mxu0 0.0
        %v5641 = vand.u32 %v5489, 4294901760
        %v5642 = vsub.f32 %v5489, %v5641
        %v5643 = vand.u32 %v5642, 4294901760
        %v5644 = vsub.f32 %v5642, %v5643
        %v5645 = vand.u32 %v5644, 4294901760
        %5646 = vmatpush1.msra.mxu0 %v5645
        %5647 = vmatprep.subr.mxu0 0.0
        %v5648 = vand.u32 %v5488, 4294901760
        %v5649 = vsub.f32 %v5488, %v5648
        %v5650 = vand.u32 %v5649, 4294901760
        %v5651 = vsub.f32 %v5649, %v5650
        %v5652 = vand.u32 %v5651, 4294901760
        %5653 = vmatpush1.msra.mxu0 %v5652
        %5654 = vmatprep.subr.mxu0 0.0
        %v5655 = vand.u32 %v5487, 4294901760
        %v5656 = vsub.f32 %v5487, %v5655
        %v5657 = vand.u32 %v5656, 4294901760
        %v5658 = vsub.f32 %v5656, %v5657
        %v5659 = vand.u32 %v5658, 4294901760
        %5660 = vmatpush1.msra.mxu0 %v5659
        %5661 = vmatprep.subr.mxu0 0.0
        %v5662 = vand.u32 %v5486, 4294901760
        %v5663 = vsub.f32 %v5486, %v5662
        %v5664 = vand.u32 %v5663, 4294901760
        %v5665 = vsub.f32 %v5663, %v5664
        %v5666 = vand.u32 %v5665, 4294901760
        %5667 = vmatpush1.msra.mxu0 %v5666
        %5668 = vmatprep.subr.mxu0 0.0
        %5669 = vmatpush2.msra.mxu0 0.0
        %5670 = vmatprep.subr.mxu0 0.0
        %5671 = vmatpush2.msra.mxu0 0.0
        %5672 = vmatprep.subr.mxu0 0.0
        %5673 = vmatpush2.msra.mxu0 0.0
        %5674 = vmatprep.subr.mxu0 0.0
        %5675 = vmatpush2.msra.mxu0 0.0
        %5676 = vmatprep.subr.mxu0 0.0
        %5677 = vmatpush2.msra.mxu0 0.0
        %5678 = vmatprep.subr.mxu0 0.0
        %5679 = vmatpush2.msra.mxu0 0.0
        %5680 = vmatprep.subr.mxu0 0.0
        %5681 = vmatpush2.msra.mxu0 0.0
        %5682 = vmatprep.subr.mxu0 0.0
        %5683 = vmatpush2.msra.mxu0 0.0
        %5684 = vmatprep.subr.mxu0 0.0
        %5685 = vmatpush2.msra.mxu0 0.0
        %5686 = vmatprep.subr.mxu0 0.0
        %5687 = vmatpush2.msra.mxu0 0.0
        %5688 = vmatprep.subr.mxu0 0.0
        %5689 = vmatpush2.msra.mxu0 0.0
        %5690 = vmatprep.subr.mxu0 0.0
        %5691 = vmatpush2.msra.mxu0 0.0
        %5692 = vmatprep.subr.mxu0 0.0
        %5693 = vmatpush2.msra.mxu0 0.0
        %5694 = vmatprep.subr.mxu0 0.0
        %5695 = vmatpush2.msra.mxu0 0.0
        %5696 = vmatprep.subr.mxu0 0.0
        %5697 = vmatpush2.msra.mxu0 0.0
        %5698 = vmatprep.subr.mxu0 0.0
        %5699 = vmatpush2.msra.mxu0 0.0
        %5700 = vmatprep.mubr.f32.mxu0 0.0
        %v5701 = vand.u32 %v5496, 4294901760
        %5702 = vmatmul.mubr.f32.gmra.mxu0 %v5701
        %v5703 = vpop.f32.mrf.mxu0
        %v5704 = vadd.f32 %v5583, %v5703
        %v5705 = vpop.f32.mrf.mxu0
        %5706 = vmatprep.mubr.f32.mxu0 0.0
        %v5707 = vand.u32 %v5499, 4294901760
        %5708 = vmatmul.mubr.f32.gmra.mxu0 %v5707
        %v5709 = vpop.f32.mrf.mxu0
        %v5710 = vadd.f32 %v5593, %v5709
        %v5711 = vpop.f32.mrf.mxu0
        %5712 = vmatprep.mubr.f32.mxu0 0.0
        %v5713 = vand.u32 %v5502, 4294901760
        %5714 = vmatmul.mubr.f32.gmra.mxu0 %v5713
        %v5715 = vpop.f32.mrf.mxu0
        %v5716 = vadd.f32 %v5603, %v5715
        %v5717 = vpop.f32.mrf.mxu0
        %5718 = vmatprep.mubr.f32.mxu0 0.0
        %v5719 = vand.u32 %v5505, 4294901760
        %5720 = vmatmul.mubr.f32.gmra.mxu0 %v5719
        %v5721 = vpop.f32.mrf.mxu0
        %v5722 = vadd.f32 %v5613, %v5721
        %v5723 = vpop.f32.mrf.mxu0
        %5724 = vdwg.mxu0
        %5725 = vmatprep.subr.mxu0 0.0
        %5726 = vmatpush1.msra.mxu0 0.0
        %5727 = vmatprep.subr.mxu0 0.0
        %5728 = vmatpush1.msra.mxu0 0.0
        %5729 = vmatprep.subr.mxu0 0.0
        %5730 = vmatpush1.msra.mxu0 0.0
        %5731 = vmatprep.subr.mxu0 0.0
        %5732 = vmatpush1.msra.mxu0 0.0
        %5733 = vmatprep.subr.mxu0 0.0
        %5734 = vmatpush1.msra.mxu0 0.0
        %5735 = vmatprep.subr.mxu0 0.0
        %5736 = vmatpush1.msra.mxu0 0.0
        %5737 = vmatprep.subr.mxu0 0.0
        %5738 = vmatpush1.msra.mxu0 0.0
        %5739 = vmatprep.subr.mxu0 0.0
        %5740 = vmatpush1.msra.mxu0 0.0
        %5741 = vmatprep.subr.mxu0 0.0
        %5742 = vmatpush1.msra.mxu0 0.0
        %5743 = vmatprep.subr.mxu0 0.0
        %5744 = vmatpush1.msra.mxu0 0.0
        %5745 = vmatprep.subr.mxu0 0.0
        %5746 = vmatpush1.msra.mxu0 0.0
        %5747 = vmatprep.subr.mxu0 0.0
        %5748 = vmatpush1.msra.mxu0 0.0
        %5749 = vmatprep.subr.mxu0 0.0
        %v5750 = vand.u32 %v5489, 4294901760
        %v5751 = vsub.f32 %v5489, %v5750
        %5752 = vmatpush1.msra.mxu0 %v5751
        %5753 = vmatprep.subr.mxu0 0.0
        %v5754 = vand.u32 %v5488, 4294901760
        %v5755 = vsub.f32 %v5488, %v5754
        %5756 = vmatpush1.msra.mxu0 %v5755
        %5757 = vmatprep.subr.mxu0 0.0
        %v5758 = vand.u32 %v5487, 4294901760
        %v5759 = vsub.f32 %v5487, %v5758
        %5760 = vmatpush1.msra.mxu0 %v5759
        %5761 = vmatprep.subr.mxu0 0.0
        %v5762 = vand.u32 %v5486, 4294901760
        %v5763 = vsub.f32 %v5486, %v5762
        %5764 = vmatpush1.msra.mxu0 %v5763
        %5765 = vmatprep.subr.mxu0 0.0
        %5766 = vmatpush2.msra.mxu0 0.0
        %5767 = vmatprep.subr.mxu0 0.0
        %5768 = vmatpush2.msra.mxu0 0.0
        %5769 = vmatprep.subr.mxu0 0.0
        %5770 = vmatpush2.msra.mxu0 0.0
        %5771 = vmatprep.subr.mxu0 0.0
        %5772 = vmatpush2.msra.mxu0 0.0
        %5773 = vmatprep.subr.mxu0 0.0
        %5774 = vmatpush2.msra.mxu0 0.0
        %5775 = vmatprep.subr.mxu0 0.0
        %5776 = vmatpush2.msra.mxu0 0.0
        %5777 = vmatprep.subr.mxu0 0.0
        %5778 = vmatpush2.msra.mxu0 0.0
        %5779 = vmatprep.subr.mxu0 0.0
        %5780 = vmatpush2.msra.mxu0 0.0
        %5781 = vmatprep.subr.mxu0 0.0
        %5782 = vmatpush2.msra.mxu0 0.0
        %5783 = vmatprep.subr.mxu0 0.0
        %5784 = vmatpush2.msra.mxu0 0.0
        %5785 = vmatprep.subr.mxu0 0.0
        %5786 = vmatpush2.msra.mxu0 0.0
        %5787 = vmatprep.subr.mxu0 0.0
        %5788 = vmatpush2.msra.mxu0 0.0
        %5789 = vmatprep.subr.mxu0 0.0
        %5790 = vmatpush2.msra.mxu0 0.0
        %5791 = vmatprep.subr.mxu0 0.0
        %5792 = vmatpush2.msra.mxu0 0.0
        %5793 = vmatprep.subr.mxu0 0.0
        %5794 = vmatpush2.msra.mxu0 0.0
        %5795 = vmatprep.subr.mxu0 0.0
        %5796 = vmatpush2.msra.mxu0 0.0
        %5797 = vmatprep.mubr.f32.mxu0 0.0
        %v5798 = vand.u32 %v5496, 4294901760
        %v5799 = vsub.f32 %v5496, %v5798
        %5800 = vmatmul.mubr.f32.gmra.mxu0 %v5799
        %v5801 = vpop.f32.mrf.mxu0
        %v5802 = vadd.f32 %v5704, %v5801
        %v5803 = vpop.f32.mrf.mxu0
        %5804 = vmatprep.mubr.f32.mxu0 0.0
        %v5805 = vand.u32 %v5499, 4294901760
        %v5806 = vsub.f32 %v5499, %v5805
        %5807 = vmatmul.mubr.f32.gmra.mxu0 %v5806
        %v5808 = vpop.f32.mrf.mxu0
        %v5809 = vadd.f32 %v5710, %v5808
        %v5810 = vpop.f32.mrf.mxu0
        %5811 = vmatprep.mubr.f32.mxu0 0.0
        %v5812 = vand.u32 %v5502, 4294901760
        %v5813 = vsub.f32 %v5502, %v5812
        %5814 = vmatmul.mubr.f32.gmra.mxu0 %v5813
        %v5815 = vpop.f32.mrf.mxu0
        %v5816 = vadd.f32 %v5716, %v5815
        %v5817 = vpop.f32.mrf.mxu0
        %5818 = vmatprep.mubr.f32.mxu0 0.0
        %v5819 = vand.u32 %v5505, 4294901760
        %v5820 = vsub.f32 %v5505, %v5819
        %5821 = vmatmul.mubr.f32.gmra.mxu0 %v5820
        %v5822 = vpop.f32.mrf.mxu0
        %v5823 = vadd.f32 %v5722, %v5822
        %v5824 = vpop.f32.mrf.mxu0
        %5825 = vdwg.mxu0
        %5826 = vmatprep.subr.mxu0 0.0
        %5827 = vmatpush1.msra.mxu0 0.0
        %5828 = vmatprep.subr.mxu0 0.0
        %5829 = vmatpush1.msra.mxu0 0.0
        %5830 = vmatprep.subr.mxu0 0.0
        %5831 = vmatpush1.msra.mxu0 0.0
        %5832 = vmatprep.subr.mxu0 0.0
        %5833 = vmatpush1.msra.mxu0 0.0
        %5834 = vmatprep.subr.mxu0 0.0
        %5835 = vmatpush1.msra.mxu0 0.0
        %5836 = vmatprep.subr.mxu0 0.0
        %5837 = vmatpush1.msra.mxu0 0.0
        %5838 = vmatprep.subr.mxu0 0.0
        %5839 = vmatpush1.msra.mxu0 0.0
        %5840 = vmatprep.subr.mxu0 0.0
        %5841 = vmatpush1.msra.mxu0 0.0
        %5842 = vmatprep.subr.mxu0 0.0
        %5843 = vmatpush1.msra.mxu0 0.0
        %5844 = vmatprep.subr.mxu0 0.0
        %5845 = vmatpush1.msra.mxu0 0.0
        %5846 = vmatprep.subr.mxu0 0.0
        %5847 = vmatpush1.msra.mxu0 0.0
        %5848 = vmatprep.subr.mxu0 0.0
        %5849 = vmatpush1.msra.mxu0 0.0
        %5850 = vmatprep.subr.mxu0 0.0
        %v5851 = vand.u32 %v5489, 4294901760
        %5852 = vmatpush1.msra.mxu0 %v5851
        %5853 = vmatprep.subr.mxu0 0.0
        %v5854 = vand.u32 %v5488, 4294901760
        %5855 = vmatpush1.msra.mxu0 %v5854
        %5856 = vmatprep.subr.mxu0 0.0
        %v5857 = vand.u32 %v5487, 4294901760
        %5858 = vmatpush1.msra.mxu0 %v5857
        %5859 = vmatprep.subr.mxu0 0.0
        %v5860 = vand.u32 %v5486, 4294901760
        %5861 = vmatpush1.msra.mxu0 %v5860
        %5862 = vmatprep.subr.mxu0 0.0
        %5863 = vmatpush2.msra.mxu0 0.0
        %5864 = vmatprep.subr.mxu0 0.0
        %5865 = vmatpush2.msra.mxu0 0.0
        %5866 = vmatprep.subr.mxu0 0.0
        %5867 = vmatpush2.msra.mxu0 0.0
        %5868 = vmatprep.subr.mxu0 0.0
        %5869 = vmatpush2.msra.mxu0 0.0
        %5870 = vmatprep.subr.mxu0 0.0
        %5871 = vmatpush2.msra.mxu0 0.0
        %5872 = vmatprep.subr.mxu0 0.0
        %5873 = vmatpush2.msra.mxu0 0.0
        %5874 = vmatprep.subr.mxu0 0.0
        %5875 = vmatpush2.msra.mxu0 0.0
        %5876 = vmatprep.subr.mxu0 0.0
        %5877 = vmatpush2.msra.mxu0 0.0
        %5878 = vmatprep.subr.mxu0 0.0
        %5879 = vmatpush2.msra.mxu0 0.0
        %5880 = vmatprep.subr.mxu0 0.0
        %5881 = vmatpush2.msra.mxu0 0.0
        %5882 = vmatprep.subr.mxu0 0.0
        %5883 = vmatpush2.msra.mxu0 0.0
        %5884 = vmatprep.subr.mxu0 0.0
        %5885 = vmatpush2.msra.mxu0 0.0
        %5886 = vmatprep.subr.mxu0 0.0
        %5887 = vmatpush2.msra.mxu0 0.0
        %5888 = vmatprep.subr.mxu0 0.0
        %5889 = vmatpush2.msra.mxu0 0.0
        %5890 = vmatprep.subr.mxu0 0.0
        %5891 = vmatpush2.msra.mxu0 0.0
        %5892 = vmatprep.subr.mxu0 0.0
        %5893 = vmatpush2.msra.mxu0 0.0
        %5894 = vmatprep.mubr.f32.mxu0 0.0
        %v5895 = vand.u32 %v5496, 4294901760
        %v5896 = vsub.f32 %v5496, %v5895
        %v5897 = vand.u32 %v5896, 4294901760
        %5898 = vmatmul.mubr.f32.gmra.mxu0 %v5897
        %v5899 = vpop.f32.mrf.mxu0
        %v5900 = vadd.f32 %v5802, %v5899
        %v5901 = vpop.f32.mrf.mxu0
        %5902 = vmatprep.mubr.f32.mxu0 0.0
        %v5903 = vand.u32 %v5499, 4294901760
        %v5904 = vsub.f32 %v5499, %v5903
        %v5905 = vand.u32 %v5904, 4294901760
        %5906 = vmatmul.mubr.f32.gmra.mxu0 %v5905
        %v5907 = vpop.f32.mrf.mxu0
        %v5908 = vadd.f32 %v5809, %v5907
        %v5909 = vpop.f32.mrf.mxu0
        %5910 = vmatprep.mubr.f32.mxu0 0.0
        %v5911 = vand.u32 %v5502, 4294901760
        %v5912 = vsub.f32 %v5502, %v5911
        %v5913 = vand.u32 %v5912, 4294901760
        %5914 = vmatmul.mubr.f32.gmra.mxu0 %v5913
        %v5915 = vpop.f32.mrf.mxu0
        %v5916 = vadd.f32 %v5816, %v5915
        %v5917 = vpop.f32.mrf.mxu0
        %5918 = vmatprep.mubr.f32.mxu0 0.0
        %v5919 = vand.u32 %v5505, 4294901760
        %v5920 = vsub.f32 %v5505, %v5919
        %v5921 = vand.u32 %v5920, 4294901760
        %5922 = vmatmul.mubr.f32.gmra.mxu0 %v5921
        %v5923 = vpop.f32.mrf.mxu0
        %v5924 = vadd.f32 %v5823, %v5923
        %v5925 = vpop.f32.mrf.mxu0
        %5926 = vdwg.mxu0
        %5927 = vmatprep.subr.mxu0 0.0
        %5928 = vmatpush1.msra.mxu0 0.0
        %5929 = vmatprep.subr.mxu0 0.0
        %5930 = vmatpush1.msra.mxu0 0.0
        %5931 = vmatprep.subr.mxu0 0.0
        %5932 = vmatpush1.msra.mxu0 0.0
        %5933 = vmatprep.subr.mxu0 0.0
        %5934 = vmatpush1.msra.mxu0 0.0
        %5935 = vmatprep.subr.mxu0 0.0
        %5936 = vmatpush1.msra.mxu0 0.0
        %5937 = vmatprep.subr.mxu0 0.0
        %5938 = vmatpush1.msra.mxu0 0.0
        %5939 = vmatprep.subr.mxu0 0.0
        %5940 = vmatpush1.msra.mxu0 0.0
        %5941 = vmatprep.subr.mxu0 0.0
        %5942 = vmatpush1.msra.mxu0 0.0
        %5943 = vmatprep.subr.mxu0 0.0
        %5944 = vmatpush1.msra.mxu0 0.0
        %5945 = vmatprep.subr.mxu0 0.0
        %5946 = vmatpush1.msra.mxu0 0.0
        %5947 = vmatprep.subr.mxu0 0.0
        %5948 = vmatpush1.msra.mxu0 0.0
        %5949 = vmatprep.subr.mxu0 0.0
        %5950 = vmatpush1.msra.mxu0 0.0
        %5951 = vmatprep.subr.mxu0 0.0
        %v5952 = vand.u32 %v5489, 4294901760
        %v5953 = vsub.f32 %v5489, %v5952
        %v5954 = vand.u32 %v5953, 4294901760
        %5955 = vmatpush1.msra.mxu0 %v5954
        %5956 = vmatprep.subr.mxu0 0.0
        %v5957 = vand.u32 %v5488, 4294901760
        %v5958 = vsub.f32 %v5488, %v5957
        %v5959 = vand.u32 %v5958, 4294901760
        %5960 = vmatpush1.msra.mxu0 %v5959
        %5961 = vmatprep.subr.mxu0 0.0
        %v5962 = vand.u32 %v5487, 4294901760
        %v5963 = vsub.f32 %v5487, %v5962
        %v5964 = vand.u32 %v5963, 4294901760
        %5965 = vmatpush1.msra.mxu0 %v5964
        %5966 = vmatprep.subr.mxu0 0.0
        %v5967 = vand.u32 %v5486, 4294901760
        %v5968 = vsub.f32 %v5486, %v5967
        %v5969 = vand.u32 %v5968, 4294901760
        %5970 = vmatpush1.msra.mxu0 %v5969
        %5971 = vmatprep.subr.mxu0 0.0
        %5972 = vmatpush2.msra.mxu0 0.0
        %5973 = vmatprep.subr.mxu0 0.0
        %5974 = vmatpush2.msra.mxu0 0.0
        %5975 = vmatprep.subr.mxu0 0.0
        %5976 = vmatpush2.msra.mxu0 0.0
        %5977 = vmatprep.subr.mxu0 0.0
        %5978 = vmatpush2.msra.mxu0 0.0
        %5979 = vmatprep.subr.mxu0 0.0
        %5980 = vmatpush2.msra.mxu0 0.0
        %5981 = vmatprep.subr.mxu0 0.0
        %5982 = vmatpush2.msra.mxu0 0.0
        %5983 = vmatprep.subr.mxu0 0.0
        %5984 = vmatpush2.msra.mxu0 0.0
        %5985 = vmatprep.subr.mxu0 0.0
        %5986 = vmatpush2.msra.mxu0 0.0
        %5987 = vmatprep.subr.mxu0 0.0
        %5988 = vmatpush2.msra.mxu0 0.0
        %5989 = vmatprep.subr.mxu0 0.0
        %5990 = vmatpush2.msra.mxu0 0.0
        %5991 = vmatprep.subr.mxu0 0.0
        %5992 = vmatpush2.msra.mxu0 0.0
        %5993 = vmatprep.subr.mxu0 0.0
        %5994 = vmatpush2.msra.mxu0 0.0
        %5995 = vmatprep.subr.mxu0 0.0
        %5996 = vmatpush2.msra.mxu0 0.0
        %5997 = vmatprep.subr.mxu0 0.0
        %5998 = vmatpush2.msra.mxu0 0.0
        %5999 = vmatprep.subr.mxu0 0.0
        %6000 = vmatpush2.msra.mxu0 0.0
        %6001 = vmatprep.subr.mxu0 0.0
        %6002 = vmatpush2.msra.mxu0 0.0
        %6003 = vmatprep.mubr.f32.mxu0 0.0
        %v6004 = vand.u32 %v5496, 4294901760
        %6005 = vmatmul.mubr.f32.gmra.mxu0 %v6004
        %v6006 = vpop.f32.mrf.mxu0
        %v6007 = vadd.f32 %v5900, %v6006
        %v6008 = vpop.f32.mrf.mxu0
        %6009 = vmatprep.mubr.f32.mxu0 0.0
        %v6010 = vand.u32 %v5499, 4294901760
        %6011 = vmatmul.mubr.f32.gmra.mxu0 %v6010
        %v6012 = vpop.f32.mrf.mxu0
        %v6013 = vadd.f32 %v5908, %v6012
        %v6014 = vpop.f32.mrf.mxu0
        %6015 = vmatprep.mubr.f32.mxu0 0.0
        %v6016 = vand.u32 %v5502, 4294901760
        %6017 = vmatmul.mubr.f32.gmra.mxu0 %v6016
        %v6018 = vpop.f32.mrf.mxu0
        %v6019 = vadd.f32 %v5916, %v6018
        %v6020 = vpop.f32.mrf.mxu0
        %6021 = vmatprep.mubr.f32.mxu0 0.0
        %v6022 = vand.u32 %v5505, 4294901760
        %6023 = vmatmul.mubr.f32.gmra.mxu0 %v6022
        %v6024 = vpop.f32.mrf.mxu0
        %v6025 = vadd.f32 %v5924, %v6024
        %v6026 = vpop.f32.mrf.mxu0
        %6027 = vdwg.mxu0
        %6028 = vmatprep.subr.mxu0 0.0
        %6029 = vmatpush1.msra.mxu0 0.0
        %6030 = vmatprep.subr.mxu0 0.0
        %6031 = vmatpush1.msra.mxu0 0.0
        %6032 = vmatprep.subr.mxu0 0.0
        %6033 = vmatpush1.msra.mxu0 0.0
        %6034 = vmatprep.subr.mxu0 0.0
        %6035 = vmatpush1.msra.mxu0 0.0
        %6036 = vmatprep.subr.mxu0 0.0
        %6037 = vmatpush1.msra.mxu0 0.0
        %6038 = vmatprep.subr.mxu0 0.0
        %6039 = vmatpush1.msra.mxu0 0.0
        %6040 = vmatprep.subr.mxu0 0.0
        %6041 = vmatpush1.msra.mxu0 0.0
        %6042 = vmatprep.subr.mxu0 0.0
        %6043 = vmatpush1.msra.mxu0 0.0
        %6044 = vmatprep.subr.mxu0 0.0
        %6045 = vmatpush1.msra.mxu0 0.0
        %6046 = vmatprep.subr.mxu0 0.0
        %6047 = vmatpush1.msra.mxu0 0.0
        %6048 = vmatprep.subr.mxu0 0.0
        %6049 = vmatpush1.msra.mxu0 0.0
        %6050 = vmatprep.subr.mxu0 0.0
        %6051 = vmatpush1.msra.mxu0 0.0
        %6052 = vmatprep.subr.mxu0 0.0
        %v6053 = vand.u32 %v5489, 4294901760
        %6054 = vmatpush1.msra.mxu0 %v6053
        %6055 = vmatprep.subr.mxu0 0.0
        %v6056 = vand.u32 %v5488, 4294901760
        %6057 = vmatpush1.msra.mxu0 %v6056
        %6058 = vmatprep.subr.mxu0 0.0
        %v6059 = vand.u32 %v5487, 4294901760
        %6060 = vmatpush1.msra.mxu0 %v6059
        %6061 = vmatprep.subr.mxu0 0.0
        %v6062 = vand.u32 %v5486, 4294901760
        %6063 = vmatpush1.msra.mxu0 %v6062
        %6064 = vmatprep.subr.mxu0 0.0
        %6065 = vmatpush2.msra.mxu0 0.0
        %6066 = vmatprep.subr.mxu0 0.0
        %6067 = vmatpush2.msra.mxu0 0.0
        %6068 = vmatprep.subr.mxu0 0.0
        %6069 = vmatpush2.msra.mxu0 0.0
        %6070 = vmatprep.subr.mxu0 0.0
        %6071 = vmatpush2.msra.mxu0 0.0
        %6072 = vmatprep.subr.mxu0 0.0
        %6073 = vmatpush2.msra.mxu0 0.0
        %6074 = vmatprep.subr.mxu0 0.0
        %6075 = vmatpush2.msra.mxu0 0.0
        %6076 = vmatprep.subr.mxu0 0.0
        %6077 = vmatpush2.msra.mxu0 0.0
        %6078 = vmatprep.subr.mxu0 0.0
        %6079 = vmatpush2.msra.mxu0 0.0
        %6080 = vmatprep.subr.mxu0 0.0
        %6081 = vmatpush2.msra.mxu0 0.0
        %6082 = vmatprep.subr.mxu0 0.0
        %6083 = vmatpush2.msra.mxu0 0.0
        %6084 = vmatprep.subr.mxu0 0.0
        %6085 = vmatpush2.msra.mxu0 0.0
        %6086 = vmatprep.subr.mxu0 0.0
        %6087 = vmatpush2.msra.mxu0 0.0
        %6088 = vmatprep.subr.mxu0 0.0
        %6089 = vmatpush2.msra.mxu0 0.0
        %6090 = vmatprep.subr.mxu0 0.0
        %6091 = vmatpush2.msra.mxu0 0.0
        %6092 = vmatprep.subr.mxu0 0.0
        %6093 = vmatpush2.msra.mxu0 0.0
        %6094 = vmatprep.subr.mxu0 0.0
        %6095 = vmatpush2.msra.mxu0 0.0
        %6096 = vmatprep.mubr.f32.mxu0 0.0
        %v6097 = vand.u32 %v5496, 4294901760
        %6098 = vmatmul.mubr.f32.gmra.mxu0 %v6097
        %v6099 = vpop.f32.mrf.mxu0
        %v6100 = vadd.f32 %v6007, %v6099
        %v6101 = vpop.f32.mrf.mxu0
        %6102 = vmatprep.mubr.f32.mxu0 0.0
        %v6103 = vand.u32 %v5499, 4294901760
        %6104 = vmatmul.mubr.f32.gmra.mxu0 %v6103
        %v6105 = vpop.f32.mrf.mxu0
        %v6106 = vadd.f32 %v6013, %v6105
        %v6107 = vpop.f32.mrf.mxu0
        %6108 = vmatprep.mubr.f32.mxu0 0.0
        %v6109 = vand.u32 %v5502, 4294901760
        %6110 = vmatmul.mubr.f32.gmra.mxu0 %v6109
        %v6111 = vpop.f32.mrf.mxu0
        %v6112 = vadd.f32 %v6019, %v6111
        %v6113 = vpop.f32.mrf.mxu0
        %6114 = vmatprep.mubr.f32.mxu0 0.0
        %v6115 = vand.u32 %v5505, 4294901760
        %6116 = vmatmul.mubr.f32.gmra.mxu0 %v6115
        %v6117 = vpop.f32.mrf.mxu0
        %v6118 = vadd.f32 %v6025, %v6117
        %v6119 = vpop.f32.mrf.mxu0
        %6120 = vdwg.mxu0
        %6121 = vst [vmem:[%s267] sm:$0xff] %v6100
        %6122 = vst [vmem:[%s267 + $0x8] sm:$0xff] %v6106
        %6123 = vst [vmem:[%s267 + $0x10] sm:$0xff] %v6112
        %6124 = vst [vmem:[%s267 + $0x18] sm:$0xff] %v6118
        %s6125 = sand.u32 %s181, 1
        %s6126 = scalar_lea.sflag [#allocation4], %s6125
        %s6127 = sand.u32 %s181, 1
        %s6128 = smul.addr %s6127, 32
        %s6129 = scalar_lea.vmem [#allocation3], %s6128
        // Predicated region
        $region53: #{tpu_custom_call.1} parent=47 // pred_check
          %p6130 = pneg %p191
        $region54: #{tpu_custom_call.1} parent=47 // pred_check_branch
          %6132 = sbr.rel (%p6130) target = $region56
        $region55: #{tpu_custom_call.1} parent=47 // pred_region
          %s6134 = ssub.s32 512, 512
          %6135 = vsyncadd %s6126, %s6134
          %s6136 = smul.addr %s21, 128
          %s6137 = scalar_lea.hbm %s7, %s6136
          %s6138 = sshll.u32 %s6129, 4
          %s6139 = int_to_ptr.vmem [resolvable:$true] %s6138
          %6144 = dma.vmem_to_hbm [thread:$0]  %s6139, 512, %s6137, %s6126, 128, 512, 8
        $region56: #{tpu_custom_call.1} parent=47 // pred_fallthru
          _
      $region48: #{tpu_custom_call.1} parent=5 // pred_fallthru
        _
      %p6145 = scmp.le.s32.totalorder 2, %s16
      // Predicated region
      $region57: #{tpu_custom_call.1} parent=5 // pred_check
        %p6146 = pneg %p6145
      $region58: #{tpu_custom_call.1} parent=5 // pred_check_branch
        %6148 = sbr.rel (%p6146) target = $region60
      $region59: #{tpu_custom_call.1} parent=5 // pred_region
        %s6149 = ssub.s32 %s16, 2
        // Predicated region
        $region61: #{tpu_custom_call.1} parent=59 // pred_check
          %p6150 = pneg %p197
        $region62: #{tpu_custom_call.1} parent=59 // pred_check_branch
          %6152 = sbr.rel (%p6150) target = $region64
        $region63: #{tpu_custom_call.1} parent=59 // pred_region
          %s6153 = sand.u32 %s182, 1
          %s6154 = scalar_lea.sflag [#allocation4], %s6153
          %s6155 = sand.u32 %s182, 1
          %s6156 = smul.addr %s6155, 32
          %s6157 = scalar_lea.vmem [#allocation3], %s6156
          %6158 = dma.done %s6154, 512
        $region64: #{tpu_custom_call.1} parent=59 // pred_fallthru
          _
      $region60: #{tpu_custom_call.1} parent=5 // pred_fallthru
        _
    $region6: #{tpu_custom_call.1} parent=1 // loop_footer
      %s20 = sadd.s32 1, %s16
    $region7: #{tpu_custom_call.1} parent=1 // loop_footer_branch
      %15 = sbr.rel target = $region3
    $region8: #{tpu_custom_call.1} parent=1 // loop_exit
      _
    %6159 = vsyncpa [#allocation4], 1
    %s6160 = scalar_lea.sflag [#allocation4], 1
    %6161 = vsyncpa %s6160, 1

</llo_original>
